<compile_context>
chip_gen: v6e
topology: v6e:2x2x1
jax: 0.10.0
libtpu: 0.0.40
codegen_flags: <defaults>
</compile_context>

<pallas_src>
import functools

import jax
import jax.numpy as jnp
from jax import lax
from jax.experimental import pallas as pl
from jax.experimental.pallas import tpu as pltpu


# ----------------------------- Pallas kernel -------------------------------

def _dense_bottleneck_kernel(x_ref, sb1_ref, w1_ref, w2_ref, mask_ref, o_ref,
                             *, H, W):
    # x_ref   : (N, Cin, H*W)   channel-first, lane-dense (H*W on the lane axis)
    # sb1_ref : (Cin, 2)        col 0 = folded BN1 scale, col 1 = folded BN1 bias
    # w1_ref  : (Cmid, Cin+1)   1x1 weight with BN2 scale folded; last col = BN2 bias
    # w2_ref  : (G, 9*Cmid)     3x3 weight, K ordered (ky, kx, c)
    # mask_ref: (8, H*W)        {0,1} boundary masks for the 8 non-center taps
    # o_ref   : (N, Cin+G, H*W) concat([x, residual]) along channels
    HW = H * W
    N = x_ref.shape[0]
    Cin = x_ref.shape[1]
    Cmid = w1_ref.shape[0]
    G = w2_ref.shape[0]
    HIGH = lax.Precision.HIGHEST

    # Hoist all small loads out of the per-image loop (JAX does not CSE these).
    s1 = sb1_ref[:, 0:1]                         # (Cin, 1)
    b1 = sb1_ref[:, 1:2]                         # (Cin, 1)
    w1 = w1_ref[:, 0:Cin]                        # (Cmid, Cin)
    b2 = w1_ref[:, Cin:Cin + 1]                  # (Cmid, 1)
    w2 = w2_ref[...]                             # (G, 9*Cmid)
    masks = [mask_ref[t:t + 1, :] for t in range(8)]   # each (1, HW)

    for n in range(N):                           # N tiny & static -> full unroll
        x = x_ref[n]                             # (Cin, HW) f32

        # BN1 + ReLU (f32 on VPU)
        h1 = jnp.maximum(x * s1 + b1, 0.0)

        # 1x1 conv (BN2 scale pre-folded) + BN2 bias + ReLU
        h2 = jnp.maximum(
            jnp.dot(w1, h1, preferred_element_type=jnp.float32,
                    precision=HIGH) + b2,
            0.0)                                 # (Cmid, HW)

        # 3x3 conv, padding=1, as one K=9*Cmid matmul over an in-VMEM im2col.
        # Spatial shifts are cyclic lane rolls (XLU); boundary zeroing is a
        # single vmul per tap against the precomputed (1, HW) masks.  Wrapped
        # lanes land only on masked (out-of-image) positions, so the roll
        # trick is exact for padding=1.
        blocks = []
        t = 0
        for dy in (-1, 0, 1):
            for dx in (-1, 0, 1):
                if dy == 0 and dx == 0:
                    blocks.append(h2)
                    continue
                s = dy * W + dx
                rolled = pltpu.roll(h2, (-s) % HW, 1)
                blocks.append(rolled * masks[t])
                t += 1
        im2col = jnp.concatenate(blocks, axis=0)            # (9*Cmid, HW)

        res = jnp.dot(w2, im2col, preferred_element_type=jnp.float32,
                      precision=HIGH)                        # (G, HW)

        # channel concat: identity first, residual second -- two sublane stores.
        o_ref[n, 0:Cin, :] = x
        o_ref[n, Cin:Cin + G, :] = res


def dense_bottleneck_block_pallas(x_nchw, params):
    """x_nchw: (N, Cin, H, W) float32.  Returns (N, Cin+G, H, W) float32."""
    (sb1, w1aug, w2mat) = params
    N, Cin, H, W = x_nchw.shape
    HW = H * W
    Cmid = w1aug.shape[0]
    G = w2mat.shape[0]
    Cout = Cin + G

    x = x_nchw.reshape(N, Cin, HW)          # free reshape, no transpose

    # Precompute the 8 {0,1} boundary masks (depend only on H, W).
    yy = jnp.arange(HW, dtype=jnp.int32) // W
    xx = jnp.arange(HW, dtype=jnp.int32) % W
    mask_rows = []
    for dy in (-1, 0, 1):
        for dx in (-1, 0, 1):
            if dy == 0 and dx == 0:
                continue
            valid = ((yy + dy >= 0) & (yy + dy < H) &
                     (xx + dx >= 0) & (xx + dx < W))
            mask_rows.append(valid.astype(jnp.float32))
    masks = jnp.stack(mask_rows, axis=0)    # (8, HW)

    flops = 2 * N * HW * (Cmid * (Cin + 1) + 9 * Cmid * G)
    bytes_accessed = (x.size + N * Cout * HW + sb1.size + w1aug.size
                      + w2mat.size + masks.size) * 4

    kernel = functools.partial(_dense_bottleneck_kernel, H=H, W=W)
    out = pl.pallas_call(
        kernel,
        out_shape=jax.ShapeDtypeStruct((N, Cout, HW), jnp.float32),
        grid=(1,),                          # single step: whole batch per block
        in_specs=[
            pl.BlockSpec((N, Cin, HW), lambda i: (0, 0, 0)),
            pl.BlockSpec((Cin, 2), lambda i: (0, 0)),
            pl.BlockSpec((Cmid, Cin + 1), lambda i: (0, 0)),
            pl.BlockSpec((G, 9 * Cmid), lambda i: (0, 0)),
            pl.BlockSpec((8, HW), lambda i: (0, 0)),
        ],
        out_specs=pl.BlockSpec((N, Cout, HW), lambda i: (0, 0, 0)),
        compiler_params=pltpu.CompilerParams(
            dimension_semantics=("arbitrary",)),
        cost_estimate=pl.CostEstimate(flops=flops, transcendentals=0,
                                      bytes_accessed=bytes_accessed),
    )(x, sb1, w1aug, w2mat, masks)

    return out.reshape(N, Cout, H, W)


# --------------------------- parameter setup --------------------------------

def make_params(key, in_channels, growth_rate=8, expansion_rate=4):
    inner = expansion_rate * growth_rate
    eps = 1e-5
    ks = jax.random.split(key, 10)

    # BN1
    gamma1 = jax.random.uniform(ks[0], (in_channels,), minval=0.5, maxval=1.5)
    beta1 = jax.random.normal(ks[1], (in_channels,)) * 0.1
    mean1 = jax.random.normal(ks[2], (in_channels,)) * 0.1
    var1 = jax.random.uniform(ks[3], (in_channels,), minval=0.5, maxval=1.5)
    # Conv1x1: PyTorch OIHW (inner, in, 1, 1)
    w1_oihw = jax.random.normal(ks[4], (inner, in_channels, 1, 1)) * 0.1
    # BN2
    gamma2 = jax.random.uniform(ks[5], (inner,), minval=0.5, maxval=1.5)
    beta2 = jax.random.normal(ks[6], (inner,)) * 0.1
    mean2 = jax.random.normal(ks[7], (inner,)) * 0.1
    var2 = jax.random.uniform(ks[8], (inner,), minval=0.5, maxval=1.5)
    # Conv3x3: PyTorch OIHW (growth, inner, 3, 3)
    w2_oihw = jax.random.normal(ks[9], (growth_rate, inner, 3, 3)) * 0.05

    # Fold BN (inference mode) into scale / bias.
    s1 = gamma1 / jnp.sqrt(var1 + eps)
    b1 = beta1 - mean1 * s1
    s2 = gamma2 / jnp.sqrt(var2 + eps)
    b2 = beta2 - mean2 * s2

    # BN1 scale/bias packed into one (Cin, 2) array (single tiny DMA).
    sb1 = jnp.stack([s1, b1], axis=1).astype(jnp.float32)
    # 1x1 conv weight (Cmid, Cin) with BN2 scale folded in, plus BN2 bias as an
    # extra trailing column -> one (Cmid, Cin+1) array.
    w1aug = jnp.concatenate(
        [w1_oihw[:, :, 0, 0] * s2[:, None], b2[:, None]],
        axis=1).astype(jnp.float32)
    # 3x3 conv weight reshaped (G, 9*Cmid); K ordered (ky, kx, c) to match the
    # in-kernel im2col row ordering.
    w2mat = jnp.transpose(w2_oihw, (0, 2, 3, 1)).reshape(
        growth_rate, 9 * inner).astype(jnp.float32)

    kernel_params = (sb1, w1aug, w2mat)
    torch_like = (gamma1, beta1, mean1, var1, w1_oihw,
                  gamma2, beta2, mean2, var2, w2_oihw)
    return kernel_params, torch_like


# --------------------------- pure-JAX reference ------------------------------

def reference_forward(x_nchw, torch_like):
    eps = 1e-5
    (g1, be1, m1, v1, w1_oihw, g2, be2, m2, v2, w2_oihw) = torch_like

    def bn(x, g, b, m, v):
        return (x - m[None, :, None, None]) / jnp.sqrt(v + eps)[None, :, None, None] \
               * g[None, :, None, None] + b[None, :, None, None]

    h = jnp.maximum(bn(x_nchw, g1, be1, m1, v1), 0.0)
    h = lax.conv_general_dilated(h, w1_oihw, (1, 1), 'VALID',
                                 dimension_numbers=('NCHW', 'OIHW', 'NCHW'),
                                 precision=lax.Precision.HIGHEST)
    h = jnp.maximum(bn(h, g2, be2, m2, v2), 0.0)
    h = lax.conv_general_dilated(h, w2_oihw, (1, 1), ((1, 1), (1, 1)),
                                 dimension_numbers=('NCHW', 'OIHW', 'NCHW'),
                                 precision=lax.Precision.HIGHEST)
    return jnp.concatenate([x_nchw, h], axis=1)


# --------------------------------- main --------------------------------------

if __name__ == "__main__":
    key = jax.random.PRNGKey(0)
    k_x, k_p = jax.random.split(key)

    N, Cin, H, W = 2, 8, 16, 16
    growth_rate, expansion_rate = 8, 4

    x = jax.random.normal(k_x, (N, Cin, H, W), dtype=jnp.float32)
    kernel_params, torch_like = make_params(k_p, Cin, growth_rate, expansion_rate)

    out = dense_bottleneck_block_pallas(x, kernel_params)
    out = jax.block_until_ready(out)

    ref = jax.block_until_ready(reference_forward(x, torch_like))

    assert out.shape == (N, Cin + growth_rate, H, W), out.shape
    # all-f32 datapath (HIGHEST MXU precision) -> tight tolerance.
    assert jnp.allclose(out, ref, rtol=1e-3, atol=1e-3), \
        float(jnp.max(jnp.abs(out - ref)))

    print("KERNEL_OK")
</pallas_src>

<mosaic_0001>
module attributes {stable_mosaic.version = 11 : i64} {
  func.func @_dense_bottleneck_kernel(%arg0: i32, %arg1: memref<2x8x256xf32, #tpu.memory_space<vmem>>, %arg2: memref<8x2xf32, #tpu.memory_space<vmem>>, %arg3: memref<32x9xf32, #tpu.memory_space<vmem>>, %arg4: memref<8x288xf32, #tpu.memory_space<vmem>>, %arg5: memref<8x256xf32, #tpu.memory_space<vmem>>, %arg6: memref<2x16x256xf32, #tpu.memory_space<vmem>>) attributes {dimension_semantics = [#tpu.dimension_semantics<arbitrary>], iteration_bounds = array<i64: 1>, scalar_prefetch = 0 : i64, scratch_operands = 0 : i64, tpu.core_type = #tpu.core_type<tc>, window_params = [{pipeline_mode = #tpu.pipeline_mode<synchronous>, transform_indices = @transform_0, window_bounds = array<i64: 2, 8, 256>}, {pipeline_mode = #tpu.pipeline_mode<synchronous>, transform_indices = @transform_1, window_bounds = array<i64: 8, 2>}, {pipeline_mode = #tpu.pipeline_mode<synchronous>, transform_indices = @transform_2, window_bounds = array<i64: 32, 9>}, {pipeline_mode = #tpu.pipeline_mode<synchronous>, transform_indices = @transform_3, window_bounds = array<i64: 8, 288>}, {pipeline_mode = #tpu.pipeline_mode<synchronous>, transform_indices = @transform_4, window_bounds = array<i64: 8, 256>}, {pipeline_mode = #tpu.pipeline_mode<synchronous>, transform_indices = @transform_5, window_bounds = array<i64: 2, 16, 256>}]} {
    %c0 = arith.constant 0 : index
    %c0_0 = arith.constant 0 : index
    %0 = vector.load %arg2[%c0, %c0_0] : memref<8x2xf32, #tpu.memory_space<vmem>>, vector<8x1xf32>
    %c0_1 = arith.constant 0 : index
    %c1 = arith.constant 1 : index
    %1 = vector.load %arg2[%c0_1, %c1] : memref<8x2xf32, #tpu.memory_space<vmem>>, vector<8x1xf32>
    %c0_2 = arith.constant 0 : index
    %c0_3 = arith.constant 0 : index
    %2 = vector.load %arg3[%c0_2, %c0_3] : memref<32x9xf32, #tpu.memory_space<vmem>>, vector<32x8xf32>
    %c0_4 = arith.constant 0 : index
    %c8 = arith.constant 8 : index
    %3 = vector.load %arg3[%c0_4, %c8] : memref<32x9xf32, #tpu.memory_space<vmem>>, vector<32x1xf32>
    %c0_5 = arith.constant 0 : index
    %c0_6 = arith.constant 0 : index
    %4 = vector.load %arg4[%c0_5, %c0_6] : memref<8x288xf32, #tpu.memory_space<vmem>>, vector<8x288xf32>
    %c0_7 = arith.constant 0 : index
    %c0_8 = arith.constant 0 : index
    %5 = vector.load %arg5[%c0_7, %c0_8] : memref<8x256xf32, #tpu.memory_space<vmem>>, vector<1x256xf32>
    %c1_9 = arith.constant 1 : index
    %c0_10 = arith.constant 0 : index
    %6 = vector.load %arg5[%c1_9, %c0_10] : memref<8x256xf32, #tpu.memory_space<vmem>>, vector<1x256xf32>
    %c2 = arith.constant 2 : index
    %c0_11 = arith.constant 0 : index
    %7 = vector.load %arg5[%c2, %c0_11] : memref<8x256xf32, #tpu.memory_space<vmem>>, vector<1x256xf32>
    %c3 = arith.constant 3 : index
    %c0_12 = arith.constant 0 : index
    %8 = vector.load %arg5[%c3, %c0_12] : memref<8x256xf32, #tpu.memory_space<vmem>>, vector<1x256xf32>
    %c4 = arith.constant 4 : index
    %c0_13 = arith.constant 0 : index
    %9 = vector.load %arg5[%c4, %c0_13] : memref<8x256xf32, #tpu.memory_space<vmem>>, vector<1x256xf32>
    %c5 = arith.constant 5 : index
    %c0_14 = arith.constant 0 : index
    %10 = vector.load %arg5[%c5, %c0_14] : memref<8x256xf32, #tpu.memory_space<vmem>>, vector<1x256xf32>
    %c6 = arith.constant 6 : index
    %c0_15 = arith.constant 0 : index
    %11 = vector.load %arg5[%c6, %c0_15] : memref<8x256xf32, #tpu.memory_space<vmem>>, vector<1x256xf32>
    %c7 = arith.constant 7 : index
    %c0_16 = arith.constant 0 : index
    %12 = vector.load %arg5[%c7, %c0_16] : memref<8x256xf32, #tpu.memory_space<vmem>>, vector<1x256xf32>
    %c0_17 = arith.constant 0 : index
    %c0_18 = arith.constant 0 : index
    %c0_19 = arith.constant 0 : index
    %13 = vector.load %arg1[%c0_17, %c0_18, %c0_19] : memref<2x8x256xf32, #tpu.memory_space<vmem>>, vector<1x8x256xf32>
    %14 = vector.shape_cast %13 : vector<1x8x256xf32> to vector<8x256xf32>
    %15 = vector.broadcast %0 : vector<8x1xf32> to vector<8x256xf32>
    %16 = arith.mulf %14, %15 : vector<8x256xf32>
    %17 = vector.broadcast %1 : vector<8x1xf32> to vector<8x256xf32>
    %18 = arith.addf %16, %17 : vector<8x256xf32>
    %cst = arith.constant 0.000000e+00 : f32
    %19 = vector.broadcast %cst : f32 to vector<8x256xf32>
    %20 = arith.maximumf %18, %19 : vector<8x256xf32>
    %cst_20 = arith.constant dense<0.000000e+00> : vector<32x256xf32>
    %21 = tpu.matmul %2, %20, %cst_20 {dimension_numbers = #tpu.dot_dimension_numbers<[1], [0], [0], [1], [0, 0, 1, 1], [], []>, precision = #tpu.contract_precision<fp32>} : vector<32x8xf32>, vector<8x256xf32>, vector<32x256xf32> -> vector<32x256xf32>
    %22 = vector.broadcast %3 : vector<32x1xf32> to vector<32x256xf32>
    %23 = arith.addf %21, %22 : vector<32x256xf32>
    %cst_21 = arith.constant 0.000000e+00 : f32
    %24 = vector.broadcast %cst_21 : f32 to vector<32x256xf32>
    %25 = arith.maximumf %23, %24 : vector<32x256xf32>
    %c17_i32 = arith.constant 17 : i32
    %26 = tpu.dynamic_rotate %25 by %c17_i32 dim 1 : vector<32x256xf32>, i32 -> vector<32x256xf32>
    %27 = vector.broadcast %5 : vector<1x256xf32> to vector<32x256xf32>
    %28 = arith.mulf %26, %27 : vector<32x256xf32>
    %c16_i32 = arith.constant 16 : i32
    %29 = tpu.dynamic_rotate %25 by %c16_i32 dim 1 : vector<32x256xf32>, i32 -> vector<32x256xf32>
    %30 = vector.broadcast %6 : vector<1x256xf32> to vector<32x256xf32>
    %31 = arith.mulf %29, %30 : vector<32x256xf32>
    %c15_i32 = arith.constant 15 : i32
    %32 = tpu.dynamic_rotate %25 by %c15_i32 dim 1 : vector<32x256xf32>, i32 -> vector<32x256xf32>
    %33 = vector.broadcast %7 : vector<1x256xf32> to vector<32x256xf32>
    %34 = arith.mulf %32, %33 : vector<32x256xf32>
    %c1_i32 = arith.constant 1 : i32
    %35 = tpu.dynamic_rotate %25 by %c1_i32 dim 1 : vector<32x256xf32>, i32 -> vector<32x256xf32>
    %36 = vector.broadcast %8 : vector<1x256xf32> to vector<32x256xf32>
    %37 = arith.mulf %35, %36 : vector<32x256xf32>
    %c255_i32 = arith.constant 255 : i32
    %38 = tpu.dynamic_rotate %25 by %c255_i32 dim 1 : vector<32x256xf32>, i32 -> vector<32x256xf32>
    %39 = vector.broadcast %9 : vector<1x256xf32> to vector<32x256xf32>
    %40 = arith.mulf %38, %39 : vector<32x256xf32>
    %c241_i32 = arith.constant 241 : i32
    %41 = tpu.dynamic_rotate %25 by %c241_i32 dim 1 : vector<32x256xf32>, i32 -> vector<32x256xf32>
    %42 = vector.broadcast %10 : vector<1x256xf32> to vector<32x256xf32>
    %43 = arith.mulf %41, %42 : vector<32x256xf32>
    %c240_i32 = arith.constant 240 : i32
    %44 = tpu.dynamic_rotate %25 by %c240_i32 dim 1 : vector<32x256xf32>, i32 -> vector<32x256xf32>
    %45 = vector.broadcast %11 : vector<1x256xf32> to vector<32x256xf32>
    %46 = arith.mulf %44, %45 : vector<32x256xf32>
    %c239_i32 = arith.constant 239 : i32
    %47 = tpu.dynamic_rotate %25 by %c239_i32 dim 1 : vector<32x256xf32>, i32 -> vector<32x256xf32>
    %48 = vector.broadcast %12 : vector<1x256xf32> to vector<32x256xf32>
    %49 = arith.mulf %47, %48 : vector<32x256xf32>
    %50 = tpu.concatenate %28, %31, %34, %37, %25, %40, %43, %46, %49 in 0 : vector<32x256xf32>, vector<32x256xf32>, vector<32x256xf32>, vector<32x256xf32>, vector<32x256xf32>, vector<32x256xf32>, vector<32x256xf32>, vector<32x256xf32>, vector<32x256xf32> -> vector<288x256xf32>
    %cst_22 = arith.constant dense<0.000000e+00> : vector<8x256xf32>
    %51 = tpu.matmul %4, %50, %cst_22 {dimension_numbers = #tpu.dot_dimension_numbers<[1], [0], [0], [1], [0, 0, 1, 1], [], []>, precision = #tpu.contract_precision<fp32>} : vector<8x288xf32>, vector<288x256xf32>, vector<8x256xf32> -> vector<8x256xf32>
    %c0_23 = arith.constant 0 : index
    %c0_24 = arith.constant 0 : index
    %c0_25 = arith.constant 0 : index
    %52 = vector.load %arg6[%c0_23, %c0_24, %c0_25] : memref<2x16x256xf32, #tpu.memory_space<vmem>>, vector<1x8x256xf32>
    %53 = vector.shape_cast %52 : vector<1x8x256xf32> to vector<8x256xf32>
    %54 = vector.shape_cast %14 : vector<8x256xf32> to vector<1x8x256xf32>
    tpu.vector_store %arg6[%c0_23, %c0_24, %c0_25], %54 {strides = array<i32>} : memref<2x16x256xf32, #tpu.memory_space<vmem>>, vector<1x8x256xf32>,
    %c0_26 = arith.constant 0 : index
    %c8_27 = arith.constant 8 : index
    %c0_28 = arith.constant 0 : index
    %55 = vector.load %arg6[%c0_26, %c8_27, %c0_28] : memref<2x16x256xf32, #tpu.memory_space<vmem>>, vector<1x8x256xf32>
    %56 = vector.shape_cast %55 : vector<1x8x256xf32> to vector<8x256xf32>
    %57 = vector.shape_cast %51 : vector<8x256xf32> to vector<1x8x256xf32>
    tpu.vector_store %arg6[%c0_26, %c8_27, %c0_28], %57 {strides = array<i32>} : memref<2x16x256xf32, #tpu.memory_space<vmem>>, vector<1x8x256xf32>,
    %c1_29 = arith.constant 1 : index
    %c0_30 = arith.constant 0 : index
    %c0_31 = arith.constant 0 : index
    %58 = vector.load %arg1[%c1_29, %c0_30, %c0_31] : memref<2x8x256xf32, #tpu.memory_space<vmem>>, vector<1x8x256xf32>
    %59 = vector.shape_cast %58 : vector<1x8x256xf32> to vector<8x256xf32>
    %60 = vector.broadcast %0 : vector<8x1xf32> to vector<8x256xf32>
    %61 = arith.mulf %59, %60 : vector<8x256xf32>
    %62 = vector.broadcast %1 : vector<8x1xf32> to vector<8x256xf32>
    %63 = arith.addf %61, %62 : vector<8x256xf32>
    %cst_32 = arith.constant 0.000000e+00 : f32
    %64 = vector.broadcast %cst_32 : f32 to vector<8x256xf32>
    %65 = arith.maximumf %63, %64 : vector<8x256xf32>
    %cst_33 = arith.constant dense<0.000000e+00> : vector<32x256xf32>
    %66 = tpu.matmul %2, %65, %cst_33 {dimension_numbers = #tpu.dot_dimension_numbers<[1], [0], [0], [1], [0, 0, 1, 1], [], []>, precision = #tpu.contract_precision<fp32>} : vector<32x8xf32>, vector<8x256xf32>, vector<32x256xf32> -> vector<32x256xf32>
    %67 = vector.broadcast %3 : vector<32x1xf32> to vector<32x256xf32>
    %68 = arith.addf %66, %67 : vector<32x256xf32>
    %cst_34 = arith.constant 0.000000e+00 : f32
    %69 = vector.broadcast %cst_34 : f32 to vector<32x256xf32>
    %70 = arith.maximumf %68, %69 : vector<32x256xf32>
    %c17_i32_35 = arith.constant 17 : i32
    %71 = tpu.dynamic_rotate %70 by %c17_i32_35 dim 1 : vector<32x256xf32>, i32 -> vector<32x256xf32>
    %72 = vector.broadcast %5 : vector<1x256xf32> to vector<32x256xf32>
    %73 = arith.mulf %71, %72 : vector<32x256xf32>
    %c16_i32_36 = arith.constant 16 : i32
    %74 = tpu.dynamic_rotate %70 by %c16_i32_36 dim 1 : vector<32x256xf32>, i32 -> vector<32x256xf32>
    %75 = vector.broadcast %6 : vector<1x256xf32> to vector<32x256xf32>
    %76 = arith.mulf %74, %75 : vector<32x256xf32>
    %c15_i32_37 = arith.constant 15 : i32
    %77 = tpu.dynamic_rotate %70 by %c15_i32_37 dim 1 : vector<32x256xf32>, i32 -> vector<32x256xf32>
    %78 = vector.broadcast %7 : vector<1x256xf32> to vector<32x256xf32>
    %79 = arith.mulf %77, %78 : vector<32x256xf32>
    %c1_i32_38 = arith.constant 1 : i32
    %80 = tpu.dynamic_rotate %70 by %c1_i32_38 dim 1 : vector<32x256xf32>, i32 -> vector<32x256xf32>
    %81 = vector.broadcast %8 : vector<1x256xf32> to vector<32x256xf32>
    %82 = arith.mulf %80, %81 : vector<32x256xf32>
    %c255_i32_39 = arith.constant 255 : i32
    %83 = tpu.dynamic_rotate %70 by %c255_i32_39 dim 1 : vector<32x256xf32>, i32 -> vector<32x256xf32>
    %84 = vector.broadcast %9 : vector<1x256xf32> to vector<32x256xf32>
    %85 = arith.mulf %83, %84 : vector<32x256xf32>
    %c241_i32_40 = arith.constant 241 : i32
    %86 = tpu.dynamic_rotate %70 by %c241_i32_40 dim 1 : vector<32x256xf32>, i32 -> vector<32x256xf32>
    %87 = vector.broadcast %10 : vector<1x256xf32> to vector<32x256xf32>
    %88 = arith.mulf %86, %87 : vector<32x256xf32>
    %c240_i32_41 = arith.constant 240 : i32
    %89 = tpu.dynamic_rotate %70 by %c240_i32_41 dim 1 : vector<32x256xf32>, i32 -> vector<32x256xf32>
    %90 = vector.broadcast %11 : vector<1x256xf32> to vector<32x256xf32>
    %91 = arith.mulf %89, %90 : vector<32x256xf32>
    %c239_i32_42 = arith.constant 239 : i32
    %92 = tpu.dynamic_rotate %70 by %c239_i32_42 dim 1 : vector<32x256xf32>, i32 -> vector<32x256xf32>
    %93 = vector.broadcast %12 : vector<1x256xf32> to vector<32x256xf32>
    %94 = arith.mulf %92, %93 : vector<32x256xf32>
    %95 = tpu.concatenate %73, %76, %79, %82, %70, %85, %88, %91, %94 in 0 : vector<32x256xf32>, vector<32x256xf32>, vector<32x256xf32>, vector<32x256xf32>, vector<32x256xf32>, vector<32x256xf32>, vector<32x256xf32>, vector<32x256xf32>, vector<32x256xf32> -> vector<288x256xf32>
    %cst_43 = arith.constant dense<0.000000e+00> : vector<8x256xf32>
    %96 = tpu.matmul %4, %95, %cst_43 {dimension_numbers = #tpu.dot_dimension_numbers<[1], [0], [0], [1], [0, 0, 1, 1], [], []>, precision = #tpu.contract_precision<fp32>} : vector<8x288xf32>, vector<288x256xf32>, vector<8x256xf32> -> vector<8x256xf32>
    %c1_44 = arith.constant 1 : index
    %c0_45 = arith.constant 0 : index
    %c0_46 = arith.constant 0 : index
    %97 = vector.load %arg6[%c1_44, %c0_45, %c0_46] : memref<2x16x256xf32, #tpu.memory_space<vmem>>, vector<1x8x256xf32>
    %98 = vector.shape_cast %97 : vector<1x8x256xf32> to vector<8x256xf32>
    %99 = vector.shape_cast %59 : vector<8x256xf32> to vector<1x8x256xf32>
    tpu.vector_store %arg6[%c1_44, %c0_45, %c0_46], %99 {strides = array<i32>} : memref<2x16x256xf32, #tpu.memory_space<vmem>>, vector<1x8x256xf32>,
    %c1_47 = arith.constant 1 : index
    %c8_48 = arith.constant 8 : index
    %c0_49 = arith.constant 0 : index
    %100 = vector.load %arg6[%c1_47, %c8_48, %c0_49] : memref<2x16x256xf32, #tpu.memory_space<vmem>>, vector<1x8x256xf32>
    %101 = vector.shape_cast %100 : vector<1x8x256xf32> to vector<8x256xf32>
    %102 = vector.shape_cast %96 : vector<8x256xf32> to vector<1x8x256xf32>
    tpu.vector_store %arg6[%c1_47, %c8_48, %c0_49], %102 {strides = array<i32>} : memref<2x16x256xf32, #tpu.memory_space<vmem>>, vector<1x8x256xf32>,
    return
  }
  func.func @transform_0(%arg0: i32) -> (i32, i32, i32) {
    %c0_i32 = arith.constant 0 : i32
    %c0_i32_0 = arith.constant 0 : i32
    %c0_i32_1 = arith.constant 0 : i32
    %c0_i32_2 = arith.constant 0 : i32
    return %c0_i32, %c0_i32_0, %c0_i32_1 : i32, i32, i32
  }
  func.func @transform_1(%arg0: i32) -> (i32, i32) {
    %c0_i32 = arith.constant 0 : i32
    %c0_i32_0 = arith.constant 0 : i32
    %c0_i32_1 = arith.constant 0 : i32
    return %c0_i32, %c0_i32_0 : i32, i32
  }
  func.func @transform_2(%arg0: i32) -> (i32, i32) {
    %c0_i32 = arith.constant 0 : i32
    %c0_i32_0 = arith.constant 0 : i32
    %c0_i32_1 = arith.constant 0 : i32
    return %c0_i32, %c0_i32_0 : i32, i32
  }
  func.func @transform_3(%arg0: i32) -> (i32, i32) {
    %c0_i32 = arith.constant 0 : i32
    %c0_i32_0 = arith.constant 0 : i32
    %c0_i32_1 = arith.constant 0 : i32
    return %c0_i32, %c0_i32_0 : i32, i32
  }
  func.func @transform_4(%arg0: i32) -> (i32, i32) {
    %c0_i32 = arith.constant 0 : i32
    %c0_i32_0 = arith.constant 0 : i32
    %c0_i32_1 = arith.constant 0 : i32
    return %c0_i32, %c0_i32_0 : i32, i32
  }
  func.func @transform_5(%arg0: i32) -> (i32, i32, i32) {
    %c0_i32 = arith.constant 0 : i32
    %c0_i32_0 = arith.constant 0 : i32
    %c0_i32_1 = arith.constant 0 : i32
    %c0_i32_2 = arith.constant 0 : i32
    return %c0_i32, %c0_i32_0, %c0_i32_1 : i32, i32, i32
  }
}

</mosaic_0001>

<llo_original>
// kernel: tpu_custom_call.1
$region0: #{tpu_custom_call.1}
  #allocation0 [shape = 'u32[]', space=smem, size = 0x4, offset = 0x4, fixed_abs, tag = 'smem constant byte address 0x4 - core index']
  #allocation1 [shape = 'u32[144,128]{1,0:T(1,128)}', space=vmem, size = 0x12000, scoped, tag = 'internal scratch']
  %s0 = inlined_call_operand.vmem [shape: f32[2,8,256], index: 0, kind: input, shape index: {}]
  %s1 = inlined_call_operand.vmem [shape: f32[8,2], index: 1, kind: input, shape index: {}]
  %s2 = inlined_call_operand.vmem [shape: f32[32,9], index: 2, kind: input, shape index: {}]
  %s3 = inlined_call_operand.vmem [shape: f32[8,288], index: 3, kind: input, shape index: {}]
  %s4 = inlined_call_operand.hbm [shape: f32[8,256], index: 4, kind: input, shape index: {}]
  %s5 = inlined_call_operand.hbm [shape: f32[2,16,256], index: 5, kind: output, shape index: {}]
  %s6 = sld [smem:[#allocation0]]
  $region34: #{tpu_custom_call.1} parent=0
    _
  %s8 = ssub.s32 1, %s6
  %s9 = scalar_select 0, %s8, %s6
  $region1: #{tpu_custom_call.1} parent=0
    #allocation2 [shape = 'u8[8192]{0}', space=vmem, size = 0x2000, scoped, tag = 'input window, operand 4, single buffered']
    #allocation3 [shape = 's32[1]{0}', space=sflag, size = 0x4, scoped, tag = 'scoped memory for tpu_custom_call.1']
    #allocation4 [shape = 's32[1]{0}', space=sflag, size = 0x4, scoped, tag = 'scoped memory for tpu_custom_call.1']
    #allocation5 [shape = 'u8[32768]{0}', space=vmem, size = 0x8000, scoped, tag = 'output window, operand 0, single buffered']
    %10 = vsyncpa [#allocation3], 0
    %11 = vsyncpa [#allocation4], 0
    // Predicated region
    $region2: #{tpu_custom_call.1} parent=1 // pred_check
      _
    $region3: #{tpu_custom_call.1} parent=1 // pred_check_branch
      %13 = sbr.rel (0) target = $region5
    $region4: #{tpu_custom_call.1} parent=1 // pred_region
      _
    $region5: #{tpu_custom_call.1} parent=1 // pred_fallthru
      _
    // Predicated region
    $region6: #{tpu_custom_call.1} parent=1 // pred_check
      _
    $region7: #{tpu_custom_call.1} parent=1 // pred_check_branch
      %15 = sbr.rel (0) target = $region9
    $region8: #{tpu_custom_call.1} parent=1 // pred_region
      _
    $region9: #{tpu_custom_call.1} parent=1 // pred_fallthru
      _
    // Predicated region
    $region10: #{tpu_custom_call.1} parent=1 // pred_check
      _
    $region11: #{tpu_custom_call.1} parent=1 // pred_check_branch
      %17 = sbr.rel (0) target = $region13
    $region12: #{tpu_custom_call.1} parent=1 // pred_region
      _
    $region13: #{tpu_custom_call.1} parent=1 // pred_fallthru
      _
    // Predicated region
    $region14: #{tpu_custom_call.1} parent=1 // pred_check
      _
    $region15: #{tpu_custom_call.1} parent=1 // pred_check_branch
      %19 = sbr.rel (0) target = $region17
    $region16: #{tpu_custom_call.1} parent=1 // pred_region
      _
    $region17: #{tpu_custom_call.1} parent=1 // pred_fallthru
      _
    // Predicated region
    $region18: #{tpu_custom_call.1} parent=1 // pred_check
      _
    $region19: #{tpu_custom_call.1} parent=1 // pred_check_branch
      %21 = sbr.rel (0) target = $region21
    $region20: #{tpu_custom_call.1} parent=1 // pred_region
      %s23 = ssub.s32 256, 256
      %24 = vsyncadd [#allocation3], %s23
      %s26 = sshll.u32 [#allocation2], 4
      %s27 = int_to_ptr.vmem [resolvable:$true] %s26
      %29 = dma.hbm_to_vmem [thread:$0]  %s4, 256, %s27, [#allocation3]
    $region21: #{tpu_custom_call.1} parent=1 // pred_fallthru
      _
    // Predicated region
    $region22: #{tpu_custom_call.1} parent=1 // pred_check
      _
    $region23: #{tpu_custom_call.1} parent=1 // pred_check_branch
      %31 = sbr.rel (0) target = $region25
    $region24: #{tpu_custom_call.1} parent=1 // pred_region
      %32 = dma.done [#allocation3], 256
    $region25: #{tpu_custom_call.1} parent=1 // pred_fallthru
      _
    %v33 = vld [vmem:[%s1] sm:$0xff]
    %v34 = vld [vmem:[%s2] sm:$0xff]
    %v35 = vld [vmem:[%s2 + $0x8] sm:$0xff]
    %v36 = vld [vmem:[%s2 + $0x10] sm:$0xff]
    %v37 = vld [vmem:[%s2 + $0x18] sm:$0xff]
    %v38 = vld [vmem:[%s3] sm:$0xff]
    %v39 = vld [vmem:[%s3 + $0x8] sm:$0xff]
    %v40 = vld [vmem:[%s3 + $0x10] sm:$0xff]
    %v41 = vld [vmem:[#allocation2] ss:$8 sm:$0x3]
    %s42 = scalar_lea.vmem [#allocation2], 1
    %v43 = vld [vmem:[%s42] ss:$8 sm:$0x3]
    %s44 = scalar_lea.vmem [#allocation2], 2
    %v45 = vld [vmem:[%s44] ss:$8 sm:$0x3]
    %s46 = scalar_lea.vmem [#allocation2], 3
    %v47 = vld [vmem:[%s46] ss:$8 sm:$0x3]
    %s48 = scalar_lea.vmem [#allocation2], 4
    %v49 = vld [vmem:[%s48] ss:$8 sm:$0x3]
    %s50 = scalar_lea.vmem [#allocation2], 5
    %v51 = vld [vmem:[%s50] ss:$8 sm:$0x3]
    %s52 = scalar_lea.vmem [#allocation2], 6
    %v53 = vld [vmem:[%s52] ss:$8 sm:$0x3]
    %s54 = scalar_lea.vmem [#allocation2], 7
    %v55 = vld [vmem:[%s54] ss:$8 sm:$0x3]
    %v56 = vld [vmem:[%s0] sm:$0xff]
    %v57 = vld [vmem:[%s0 + $0x8] sm:$0xff]
    %59 = vset.pattern.permute.xlu0 0
    %60 = vperm.xlu0 %59, %v33
    %v61 = vpop.permute.xlu0 %60
    %v63 = vmul.f32 %v56, %v61
    %v64 = vmul.f32 %v57, %v61
    %65 = vset.pattern.permute.xlu0 1
    %66 = vperm.xlu0 %65, %v33
    %v67 = vpop.permute.xlu0 %66
    %v69 = vadd.f32 %v63, %v67
    %v70 = vadd.f32 %v64, %v67
    %v71 = vmax.f32 %v69, 0.0
    %v72 = vmax.f32 %v70, 0.0
    %74 = vset.pattern.permute.xlu0 8
    %75 = vperm.xlu0 %74, %v34
    %v76 = vpop.permute.xlu0 %75
    %79 = vset.pattern.permute.xlu0 8
    %80 = vperm.xlu0 %79, %v35
    %v81 = vpop.permute.xlu0 %80
    %84 = vset.pattern.permute.xlu0 8
    %85 = vperm.xlu0 %84, %v36
    %v86 = vpop.permute.xlu0 %85
    %89 = vset.pattern.permute.xlu0 8
    %90 = vperm.xlu0 %89, %v37
    %v91 = vpop.permute.xlu0 %90
    %vm93 = vcmask 64512
    %v94 = vsel %vm93, %v34, 0
    %v96 = vsel %vm93, %v35, 0
    %v98 = vsel %vm93, %v36, 0
    %v100 = vsel %vm93, %v37, 0
    %102 = vmatprep.subr.mxu0 0.0
    %103 = vmatpush1.msra.mxu0 0.0
    %104 = vmatprep.subr.mxu0 0.0
    %105 = vmatpush1.msra.mxu0 0.0
    %106 = vmatprep.subr.mxu0 0.0
    %107 = vmatpush1.msra.mxu0 0.0
    %108 = vmatprep.subr.mxu0 0.0
    %109 = vmatpush1.msra.mxu0 0.0
    %110 = vmatprep.subr.mxu0 0.0
    %111 = vmatpush1.msra.mxu0 0.0
    %112 = vmatprep.subr.mxu0 0.0
    %113 = vmatpush1.msra.mxu0 0.0
    %114 = vmatprep.subr.mxu0 0.0
    %115 = vmatpush1.msra.mxu0 0.0
    %116 = vmatprep.subr.mxu0 0.0
    %117 = vmatpush1.msra.mxu0 0.0
    %118 = vmatprep.subr.mxu0 0.0
    %119 = vmatpush1.msra.mxu0 0.0
    %120 = vmatprep.subr.mxu0 0.0
    %121 = vmatpush1.msra.mxu0 0.0
    %122 = vmatprep.subr.mxu0 0.0
    %123 = vmatpush1.msra.mxu0 0.0
    %124 = vmatprep.subr.mxu0 0.0
    %125 = vmatpush1.msra.mxu0 0.0
    %126 = vmatprep.subr.mxu0 0.0
    %127 = vmatpush1.msra.mxu0 0.0
    %128 = vmatprep.subr.mxu0 0.0
    %129 = vmatpush1.msra.mxu0 0.0
    %130 = vmatprep.subr.mxu0 0.0
    %131 = vmatpush1.msra.mxu0 0.0
    %v132 = vand.u32 %v72, 4294901760
    %133 = vmatprep.subr.mxu0 %v132
    %v134 = vand.u32 %v71, 4294901760
    %135 = vmatpush1.msra.mxu0 %v134
    %136 = vmatprep.subr.mxu0 0.0
    %137 = vmatpush2.msra.mxu0 0.0
    %138 = vmatprep.subr.mxu0 0.0
    %139 = vmatpush2.msra.mxu0 0.0
    %140 = vmatprep.subr.mxu0 0.0
    %141 = vmatpush2.msra.mxu0 0.0
    %142 = vmatprep.subr.mxu0 0.0
    %143 = vmatpush2.msra.mxu0 0.0
    %144 = vmatprep.subr.mxu0 0.0
    %145 = vmatpush2.msra.mxu0 0.0
    %146 = vmatprep.subr.mxu0 0.0
    %147 = vmatpush2.msra.mxu0 0.0
    %148 = vmatprep.subr.mxu0 0.0
    %149 = vmatpush2.msra.mxu0 0.0
    %150 = vmatprep.subr.mxu0 0.0
    %151 = vmatpush2.msra.mxu0 0.0
    %152 = vmatprep.subr.mxu0 0.0
    %153 = vmatpush2.msra.mxu0 0.0
    %154 = vmatprep.subr.mxu0 0.0
    %155 = vmatpush2.msra.mxu0 0.0
    %156 = vmatprep.subr.mxu0 0.0
    %157 = vmatpush2.msra.mxu0 0.0
    %158 = vmatprep.subr.mxu0 0.0
    %159 = vmatpush2.msra.mxu0 0.0
    %160 = vmatprep.subr.mxu0 0.0
    %161 = vmatpush2.msra.mxu0 0.0
    %162 = vmatprep.subr.mxu0 0.0
    %163 = vmatpush2.msra.mxu0 0.0
    %164 = vmatprep.subr.mxu0 0.0
    %165 = vmatpush2.msra.mxu0 0.0
    %166 = vmatprep.subr.mxu0 0.0
    %167 = vmatpush2.msra.mxu0 0.0
    %168 = vmatprep.mubr.f32.mxu0 0.0
    %v169 = vand.u32 %v94, 4294901760
    %v170 = vsub.f32 %v94, %v169
    %v171 = vand.u32 %v170, 4294901760
    %v172 = vsub.f32 %v170, %v171
    %v173 = vand.u32 %v172, 4294901760
    %174 = vmatmul.mubr.f32.gmra.mxu0 %v173
    %v175 = vpop.f32.mrf.mxu0
    %v176 = vadd.f32 %v76, %v175
    %v177 = vpop.f32.mrf.mxu0
    %v178 = vadd.f32 %v76, %v177
    %179 = vmatprep.mubr.f32.mxu0 0.0
    %v180 = vand.u32 %v96, 4294901760
    %v181 = vsub.f32 %v96, %v180
    %v182 = vand.u32 %v181, 4294901760
    %v183 = vsub.f32 %v181, %v182
    %v184 = vand.u32 %v183, 4294901760
    %185 = vmatmul.mubr.f32.gmra.mxu0 %v184
    %v186 = vpop.f32.mrf.mxu0
    %v187 = vadd.f32 %v81, %v186
    %v188 = vpop.f32.mrf.mxu0
    %v189 = vadd.f32 %v81, %v188
    %190 = vmatprep.mubr.f32.mxu0 0.0
    %v191 = vand.u32 %v98, 4294901760
    %v192 = vsub.f32 %v98, %v191
    %v193 = vand.u32 %v192, 4294901760
    %v194 = vsub.f32 %v192, %v193
    %v195 = vand.u32 %v194, 4294901760
    %196 = vmatmul.mubr.f32.gmra.mxu0 %v195
    %v197 = vpop.f32.mrf.mxu0
    %v198 = vadd.f32 %v86, %v197
    %v199 = vpop.f32.mrf.mxu0
    %v200 = vadd.f32 %v86, %v199
    %201 = vmatprep.mubr.f32.mxu0 0.0
    %v202 = vand.u32 %v100, 4294901760
    %v203 = vsub.f32 %v100, %v202
    %v204 = vand.u32 %v203, 4294901760
    %v205 = vsub.f32 %v203, %v204
    %v206 = vand.u32 %v205, 4294901760
    %207 = vmatmul.mubr.f32.gmra.mxu0 %v206
    %v208 = vpop.f32.mrf.mxu0
    %v209 = vadd.f32 %v91, %v208
    %v210 = vpop.f32.mrf.mxu0
    %v211 = vadd.f32 %v91, %v210
    %212 = vdwg.mxu0
    %213 = vmatprep.subr.mxu0 0.0
    %214 = vmatpush1.msra.mxu0 0.0
    %215 = vmatprep.subr.mxu0 0.0
    %216 = vmatpush1.msra.mxu0 0.0
    %217 = vmatprep.subr.mxu0 0.0
    %218 = vmatpush1.msra.mxu0 0.0
    %219 = vmatprep.subr.mxu0 0.0
    %220 = vmatpush1.msra.mxu0 0.0
    %221 = vmatprep.subr.mxu0 0.0
    %222 = vmatpush1.msra.mxu0 0.0
    %223 = vmatprep.subr.mxu0 0.0
    %224 = vmatpush1.msra.mxu0 0.0
    %225 = vmatprep.subr.mxu0 0.0
    %226 = vmatpush1.msra.mxu0 0.0
    %227 = vmatprep.subr.mxu0 0.0
    %228 = vmatpush1.msra.mxu0 0.0
    %229 = vmatprep.subr.mxu0 0.0
    %230 = vmatpush1.msra.mxu0 0.0
    %231 = vmatprep.subr.mxu0 0.0
    %232 = vmatpush1.msra.mxu0 0.0
    %233 = vmatprep.subr.mxu0 0.0
    %234 = vmatpush1.msra.mxu0 0.0
    %235 = vmatprep.subr.mxu0 0.0
    %236 = vmatpush1.msra.mxu0 0.0
    %237 = vmatprep.subr.mxu0 0.0
    %238 = vmatpush1.msra.mxu0 0.0
    %239 = vmatprep.subr.mxu0 0.0
    %240 = vmatpush1.msra.mxu0 0.0
    %241 = vmatprep.subr.mxu0 0.0
    %242 = vmatpush1.msra.mxu0 0.0
    %v243 = vand.u32 %v72, 4294901760
    %v244 = vsub.f32 %v72, %v243
    %v245 = vand.u32 %v244, 4294901760
    %v246 = vsub.f32 %v244, %v245
    %v247 = vand.u32 %v246, 4294901760
    %248 = vmatprep.subr.mxu0 %v247
    %v249 = vand.u32 %v71, 4294901760
    %v250 = vsub.f32 %v71, %v249
    %v251 = vand.u32 %v250, 4294901760
    %v252 = vsub.f32 %v250, %v251
    %v253 = vand.u32 %v252, 4294901760
    %254 = vmatpush1.msra.mxu0 %v253
    %255 = vmatprep.subr.mxu0 0.0
    %256 = vmatpush2.msra.mxu0 0.0
    %257 = vmatprep.subr.mxu0 0.0
    %258 = vmatpush2.msra.mxu0 0.0
    %259 = vmatprep.subr.mxu0 0.0
    %260 = vmatpush2.msra.mxu0 0.0
    %261 = vmatprep.subr.mxu0 0.0
    %262 = vmatpush2.msra.mxu0 0.0
    %263 = vmatprep.subr.mxu0 0.0
    %264 = vmatpush2.msra.mxu0 0.0
    %265 = vmatprep.subr.mxu0 0.0
    %266 = vmatpush2.msra.mxu0 0.0
    %267 = vmatprep.subr.mxu0 0.0
    %268 = vmatpush2.msra.mxu0 0.0
    %269 = vmatprep.subr.mxu0 0.0
    %270 = vmatpush2.msra.mxu0 0.0
    %271 = vmatprep.subr.mxu0 0.0
    %272 = vmatpush2.msra.mxu0 0.0
    %273 = vmatprep.subr.mxu0 0.0
    %274 = vmatpush2.msra.mxu0 0.0
    %275 = vmatprep.subr.mxu0 0.0
    %276 = vmatpush2.msra.mxu0 0.0
    %277 = vmatprep.subr.mxu0 0.0
    %278 = vmatpush2.msra.mxu0 0.0
    %279 = vmatprep.subr.mxu0 0.0
    %280 = vmatpush2.msra.mxu0 0.0
    %281 = vmatprep.subr.mxu0 0.0
    %282 = vmatpush2.msra.mxu0 0.0
    %283 = vmatprep.subr.mxu0 0.0
    %284 = vmatpush2.msra.mxu0 0.0
    %285 = vmatprep.subr.mxu0 0.0
    %286 = vmatpush2.msra.mxu0 0.0
    %287 = vmatprep.mubr.f32.mxu0 0.0
    %v288 = vand.u32 %v94, 4294901760
    %289 = vmatmul.mubr.f32.gmra.mxu0 %v288
    %v290 = vpop.f32.mrf.mxu0
    %v291 = vadd.f32 %v176, %v290
    %v292 = vpop.f32.mrf.mxu0
    %v293 = vadd.f32 %v178, %v292
    %294 = vmatprep.mubr.f32.mxu0 0.0
    %v295 = vand.u32 %v96, 4294901760
    %296 = vmatmul.mubr.f32.gmra.mxu0 %v295
    %v297 = vpop.f32.mrf.mxu0
    %v298 = vadd.f32 %v187, %v297
    %v299 = vpop.f32.mrf.mxu0
    %v300 = vadd.f32 %v189, %v299
    %301 = vmatprep.mubr.f32.mxu0 0.0
    %v302 = vand.u32 %v98, 4294901760
    %303 = vmatmul.mubr.f32.gmra.mxu0 %v302
    %v304 = vpop.f32.mrf.mxu0
    %v305 = vadd.f32 %v198, %v304
    %v306 = vpop.f32.mrf.mxu0
    %v307 = vadd.f32 %v200, %v306
    %308 = vmatprep.mubr.f32.mxu0 0.0
    %v309 = vand.u32 %v100, 4294901760
    %310 = vmatmul.mubr.f32.gmra.mxu0 %v309
    %v311 = vpop.f32.mrf.mxu0
    %v312 = vadd.f32 %v209, %v311
    %v313 = vpop.f32.mrf.mxu0
    %v314 = vadd.f32 %v211, %v313
    %315 = vdwg.mxu0
    %316 = vmatprep.subr.mxu0 0.0
    %317 = vmatpush1.msra.mxu0 0.0
    %318 = vmatprep.subr.mxu0 0.0
    %319 = vmatpush1.msra.mxu0 0.0
    %320 = vmatprep.subr.mxu0 0.0
    %321 = vmatpush1.msra.mxu0 0.0
    %322 = vmatprep.subr.mxu0 0.0
    %323 = vmatpush1.msra.mxu0 0.0
    %324 = vmatprep.subr.mxu0 0.0
    %325 = vmatpush1.msra.mxu0 0.0
    %326 = vmatprep.subr.mxu0 0.0
    %327 = vmatpush1.msra.mxu0 0.0
    %328 = vmatprep.subr.mxu0 0.0
    %329 = vmatpush1.msra.mxu0 0.0
    %330 = vmatprep.subr.mxu0 0.0
    %331 = vmatpush1.msra.mxu0 0.0
    %332 = vmatprep.subr.mxu0 0.0
    %333 = vmatpush1.msra.mxu0 0.0
    %334 = vmatprep.subr.mxu0 0.0
    %335 = vmatpush1.msra.mxu0 0.0
    %336 = vmatprep.subr.mxu0 0.0
    %337 = vmatpush1.msra.mxu0 0.0
    %338 = vmatprep.subr.mxu0 0.0
    %339 = vmatpush1.msra.mxu0 0.0
    %340 = vmatprep.subr.mxu0 0.0
    %341 = vmatpush1.msra.mxu0 0.0
    %342 = vmatprep.subr.mxu0 0.0
    %343 = vmatpush1.msra.mxu0 0.0
    %344 = vmatprep.subr.mxu0 0.0
    %345 = vmatpush1.msra.mxu0 0.0
    %v346 = vand.u32 %v72, 4294901760
    %v347 = vsub.f32 %v72, %v346
    %348 = vmatprep.subr.mxu0 %v347
    %v349 = vand.u32 %v71, 4294901760
    %v350 = vsub.f32 %v71, %v349
    %351 = vmatpush1.msra.mxu0 %v350
    %352 = vmatprep.subr.mxu0 0.0
    %353 = vmatpush2.msra.mxu0 0.0
    %354 = vmatprep.subr.mxu0 0.0
    %355 = vmatpush2.msra.mxu0 0.0
    %356 = vmatprep.subr.mxu0 0.0
    %357 = vmatpush2.msra.mxu0 0.0
    %358 = vmatprep.subr.mxu0 0.0
    %359 = vmatpush2.msra.mxu0 0.0
    %360 = vmatprep.subr.mxu0 0.0
    %361 = vmatpush2.msra.mxu0 0.0
    %362 = vmatprep.subr.mxu0 0.0
    %363 = vmatpush2.msra.mxu0 0.0
    %364 = vmatprep.subr.mxu0 0.0
    %365 = vmatpush2.msra.mxu0 0.0
    %366 = vmatprep.subr.mxu0 0.0
    %367 = vmatpush2.msra.mxu0 0.0
    %368 = vmatprep.subr.mxu0 0.0
    %369 = vmatpush2.msra.mxu0 0.0
    %370 = vmatprep.subr.mxu0 0.0
    %371 = vmatpush2.msra.mxu0 0.0
    %372 = vmatprep.subr.mxu0 0.0
    %373 = vmatpush2.msra.mxu0 0.0
    %374 = vmatprep.subr.mxu0 0.0
    %375 = vmatpush2.msra.mxu0 0.0
    %376 = vmatprep.subr.mxu0 0.0
    %377 = vmatpush2.msra.mxu0 0.0
    %378 = vmatprep.subr.mxu0 0.0
    %379 = vmatpush2.msra.mxu0 0.0
    %380 = vmatprep.subr.mxu0 0.0
    %381 = vmatpush2.msra.mxu0 0.0
    %382 = vmatprep.subr.mxu0 0.0
    %383 = vmatpush2.msra.mxu0 0.0
    %384 = vmatprep.mubr.f32.mxu0 0.0
    %v385 = vand.u32 %v94, 4294901760
    %v386 = vsub.f32 %v94, %v385
    %387 = vmatmul.mubr.f32.gmra.mxu0 %v386
    %v388 = vpop.f32.mrf.mxu0
    %v389 = vadd.f32 %v291, %v388
    %v390 = vpop.f32.mrf.mxu0
    %v391 = vadd.f32 %v293, %v390
    %392 = vmatprep.mubr.f32.mxu0 0.0
    %v393 = vand.u32 %v96, 4294901760
    %v394 = vsub.f32 %v96, %v393
    %395 = vmatmul.mubr.f32.gmra.mxu0 %v394
    %v396 = vpop.f32.mrf.mxu0
    %v397 = vadd.f32 %v298, %v396
    %v398 = vpop.f32.mrf.mxu0
    %v399 = vadd.f32 %v300, %v398
    %400 = vmatprep.mubr.f32.mxu0 0.0
    %v401 = vand.u32 %v98, 4294901760
    %v402 = vsub.f32 %v98, %v401
    %403 = vmatmul.mubr.f32.gmra.mxu0 %v402
    %v404 = vpop.f32.mrf.mxu0
    %v405 = vadd.f32 %v305, %v404
    %v406 = vpop.f32.mrf.mxu0
    %v407 = vadd.f32 %v307, %v406
    %408 = vmatprep.mubr.f32.mxu0 0.0
    %v409 = vand.u32 %v100, 4294901760
    %v410 = vsub.f32 %v100, %v409
    %411 = vmatmul.mubr.f32.gmra.mxu0 %v410
    %v412 = vpop.f32.mrf.mxu0
    %v413 = vadd.f32 %v312, %v412
    %v414 = vpop.f32.mrf.mxu0
    %v415 = vadd.f32 %v314, %v414
    %416 = vdwg.mxu0
    %417 = vmatprep.subr.mxu0 0.0
    %418 = vmatpush1.msra.mxu0 0.0
    %419 = vmatprep.subr.mxu0 0.0
    %420 = vmatpush1.msra.mxu0 0.0
    %421 = vmatprep.subr.mxu0 0.0
    %422 = vmatpush1.msra.mxu0 0.0
    %423 = vmatprep.subr.mxu0 0.0
    %424 = vmatpush1.msra.mxu0 0.0
    %425 = vmatprep.subr.mxu0 0.0
    %426 = vmatpush1.msra.mxu0 0.0
    %427 = vmatprep.subr.mxu0 0.0
    %428 = vmatpush1.msra.mxu0 0.0
    %429 = vmatprep.subr.mxu0 0.0
    %430 = vmatpush1.msra.mxu0 0.0
    %431 = vmatprep.subr.mxu0 0.0
    %432 = vmatpush1.msra.mxu0 0.0
    %433 = vmatprep.subr.mxu0 0.0
    %434 = vmatpush1.msra.mxu0 0.0
    %435 = vmatprep.subr.mxu0 0.0
    %436 = vmatpush1.msra.mxu0 0.0
    %437 = vmatprep.subr.mxu0 0.0
    %438 = vmatpush1.msra.mxu0 0.0
    %439 = vmatprep.subr.mxu0 0.0
    %440 = vmatpush1.msra.mxu0 0.0
    %441 = vmatprep.subr.mxu0 0.0
    %442 = vmatpush1.msra.mxu0 0.0
    %443 = vmatprep.subr.mxu0 0.0
    %444 = vmatpush1.msra.mxu0 0.0
    %445 = vmatprep.subr.mxu0 0.0
    %446 = vmatpush1.msra.mxu0 0.0
    %v447 = vand.u32 %v72, 4294901760
    %448 = vmatprep.subr.mxu0 %v447
    %v449 = vand.u32 %v71, 4294901760
    %450 = vmatpush1.msra.mxu0 %v449
    %451 = vmatprep.subr.mxu0 0.0
    %452 = vmatpush2.msra.mxu0 0.0
    %453 = vmatprep.subr.mxu0 0.0
    %454 = vmatpush2.msra.mxu0 0.0
    %455 = vmatprep.subr.mxu0 0.0
    %456 = vmatpush2.msra.mxu0 0.0
    %457 = vmatprep.subr.mxu0 0.0
    %458 = vmatpush2.msra.mxu0 0.0
    %459 = vmatprep.subr.mxu0 0.0
    %460 = vmatpush2.msra.mxu0 0.0
    %461 = vmatprep.subr.mxu0 0.0
    %462 = vmatpush2.msra.mxu0 0.0
    %463 = vmatprep.subr.mxu0 0.0
    %464 = vmatpush2.msra.mxu0 0.0
    %465 = vmatprep.subr.mxu0 0.0
    %466 = vmatpush2.msra.mxu0 0.0
    %467 = vmatprep.subr.mxu0 0.0
    %468 = vmatpush2.msra.mxu0 0.0
    %469 = vmatprep.subr.mxu0 0.0
    %470 = vmatpush2.msra.mxu0 0.0
    %471 = vmatprep.subr.mxu0 0.0
    %472 = vmatpush2.msra.mxu0 0.0
    %473 = vmatprep.subr.mxu0 0.0
    %474 = vmatpush2.msra.mxu0 0.0
    %475 = vmatprep.subr.mxu0 0.0
    %476 = vmatpush2.msra.mxu0 0.0
    %477 = vmatprep.subr.mxu0 0.0
    %478 = vmatpush2.msra.mxu0 0.0
    %479 = vmatprep.subr.mxu0 0.0
    %480 = vmatpush2.msra.mxu0 0.0
    %481 = vmatprep.subr.mxu0 0.0
    %482 = vmatpush2.msra.mxu0 0.0
    %483 = vmatprep.mubr.f32.mxu0 0.0
    %v484 = vand.u32 %v94, 4294901760
    %v485 = vsub.f32 %v94, %v484
    %v486 = vand.u32 %v485, 4294901760
    %487 = vmatmul.mubr.f32.gmra.mxu0 %v486
    %v488 = vpop.f32.mrf.mxu0
    %v489 = vadd.f32 %v389, %v488
    %v490 = vpop.f32.mrf.mxu0
    %v491 = vadd.f32 %v391, %v490
    %492 = vmatprep.mubr.f32.mxu0 0.0
    %v493 = vand.u32 %v96, 4294901760
    %v494 = vsub.f32 %v96, %v493
    %v495 = vand.u32 %v494, 4294901760
    %496 = vmatmul.mubr.f32.gmra.mxu0 %v495
    %v497 = vpop.f32.mrf.mxu0
    %v498 = vadd.f32 %v397, %v497
    %v499 = vpop.f32.mrf.mxu0
    %v500 = vadd.f32 %v399, %v499
    %501 = vmatprep.mubr.f32.mxu0 0.0
    %v502 = vand.u32 %v98, 4294901760
    %v503 = vsub.f32 %v98, %v502
    %v504 = vand.u32 %v503, 4294901760
    %505 = vmatmul.mubr.f32.gmra.mxu0 %v504
    %v506 = vpop.f32.mrf.mxu0
    %v507 = vadd.f32 %v405, %v506
    %v508 = vpop.f32.mrf.mxu0
    %v509 = vadd.f32 %v407, %v508
    %510 = vmatprep.mubr.f32.mxu0 0.0
    %v511 = vand.u32 %v100, 4294901760
    %v512 = vsub.f32 %v100, %v511
    %v513 = vand.u32 %v512, 4294901760
    %514 = vmatmul.mubr.f32.gmra.mxu0 %v513
    %v515 = vpop.f32.mrf.mxu0
    %v516 = vadd.f32 %v413, %v515
    %v517 = vpop.f32.mrf.mxu0
    %v518 = vadd.f32 %v415, %v517
    %519 = vdwg.mxu0
    %520 = vmatprep.subr.mxu0 0.0
    %521 = vmatpush1.msra.mxu0 0.0
    %522 = vmatprep.subr.mxu0 0.0
    %523 = vmatpush1.msra.mxu0 0.0
    %524 = vmatprep.subr.mxu0 0.0
    %525 = vmatpush1.msra.mxu0 0.0
    %526 = vmatprep.subr.mxu0 0.0
    %527 = vmatpush1.msra.mxu0 0.0
    %528 = vmatprep.subr.mxu0 0.0
    %529 = vmatpush1.msra.mxu0 0.0
    %530 = vmatprep.subr.mxu0 0.0
    %531 = vmatpush1.msra.mxu0 0.0
    %532 = vmatprep.subr.mxu0 0.0
    %533 = vmatpush1.msra.mxu0 0.0
    %534 = vmatprep.subr.mxu0 0.0
    %535 = vmatpush1.msra.mxu0 0.0
    %536 = vmatprep.subr.mxu0 0.0
    %537 = vmatpush1.msra.mxu0 0.0
    %538 = vmatprep.subr.mxu0 0.0
    %539 = vmatpush1.msra.mxu0 0.0
    %540 = vmatprep.subr.mxu0 0.0
    %541 = vmatpush1.msra.mxu0 0.0
    %542 = vmatprep.subr.mxu0 0.0
    %543 = vmatpush1.msra.mxu0 0.0
    %544 = vmatprep.subr.mxu0 0.0
    %545 = vmatpush1.msra.mxu0 0.0
    %546 = vmatprep.subr.mxu0 0.0
    %547 = vmatpush1.msra.mxu0 0.0
    %548 = vmatprep.subr.mxu0 0.0
    %549 = vmatpush1.msra.mxu0 0.0
    %v550 = vand.u32 %v72, 4294901760
    %v551 = vsub.f32 %v72, %v550
    %v552 = vand.u32 %v551, 4294901760
    %553 = vmatprep.subr.mxu0 %v552
    %v554 = vand.u32 %v71, 4294901760
    %v555 = vsub.f32 %v71, %v554
    %v556 = vand.u32 %v555, 4294901760
    %557 = vmatpush1.msra.mxu0 %v556
    %558 = vmatprep.subr.mxu0 0.0
    %559 = vmatpush2.msra.mxu0 0.0
    %560 = vmatprep.subr.mxu0 0.0
    %561 = vmatpush2.msra.mxu0 0.0
    %562 = vmatprep.subr.mxu0 0.0
    %563 = vmatpush2.msra.mxu0 0.0
    %564 = vmatprep.subr.mxu0 0.0
    %565 = vmatpush2.msra.mxu0 0.0
    %566 = vmatprep.subr.mxu0 0.0
    %567 = vmatpush2.msra.mxu0 0.0
    %568 = vmatprep.subr.mxu0 0.0
    %569 = vmatpush2.msra.mxu0 0.0
    %570 = vmatprep.subr.mxu0 0.0
    %571 = vmatpush2.msra.mxu0 0.0
    %572 = vmatprep.subr.mxu0 0.0
    %573 = vmatpush2.msra.mxu0 0.0
    %574 = vmatprep.subr.mxu0 0.0
    %575 = vmatpush2.msra.mxu0 0.0
    %576 = vmatprep.subr.mxu0 0.0
    %577 = vmatpush2.msra.mxu0 0.0
    %578 = vmatprep.subr.mxu0 0.0
    %579 = vmatpush2.msra.mxu0 0.0
    %580 = vmatprep.subr.mxu0 0.0
    %581 = vmatpush2.msra.mxu0 0.0
    %582 = vmatprep.subr.mxu0 0.0
    %583 = vmatpush2.msra.mxu0 0.0
    %584 = vmatprep.subr.mxu0 0.0
    %585 = vmatpush2.msra.mxu0 0.0
    %586 = vmatprep.subr.mxu0 0.0
    %587 = vmatpush2.msra.mxu0 0.0
    %588 = vmatprep.subr.mxu0 0.0
    %589 = vmatpush2.msra.mxu0 0.0
    %590 = vmatprep.mubr.f32.mxu0 0.0
    %v591 = vand.u32 %v94, 4294901760
    %592 = vmatmul.mubr.f32.gmra.mxu0 %v591
    %v593 = vpop.f32.mrf.mxu0
    %v594 = vadd.f32 %v489, %v593
    %v595 = vpop.f32.mrf.mxu0
    %v596 = vadd.f32 %v491, %v595
    %597 = vmatprep.mubr.f32.mxu0 0.0
    %v598 = vand.u32 %v96, 4294901760
    %599 = vmatmul.mubr.f32.gmra.mxu0 %v598
    %v600 = vpop.f32.mrf.mxu0
    %v601 = vadd.f32 %v498, %v600
    %v602 = vpop.f32.mrf.mxu0
    %v603 = vadd.f32 %v500, %v602
    %604 = vmatprep.mubr.f32.mxu0 0.0
    %v605 = vand.u32 %v98, 4294901760
    %606 = vmatmul.mubr.f32.gmra.mxu0 %v605
    %v607 = vpop.f32.mrf.mxu0
    %v608 = vadd.f32 %v507, %v607
    %v609 = vpop.f32.mrf.mxu0
    %v610 = vadd.f32 %v509, %v609
    %611 = vmatprep.mubr.f32.mxu0 0.0
    %v612 = vand.u32 %v100, 4294901760
    %613 = vmatmul.mubr.f32.gmra.mxu0 %v612
    %v614 = vpop.f32.mrf.mxu0
    %v615 = vadd.f32 %v516, %v614
    %v616 = vpop.f32.mrf.mxu0
    %v617 = vadd.f32 %v518, %v616
    %618 = vdwg.mxu0
    %619 = vmatprep.subr.mxu0 0.0
    %620 = vmatpush1.msra.mxu0 0.0
    %621 = vmatprep.subr.mxu0 0.0
    %622 = vmatpush1.msra.mxu0 0.0
    %623 = vmatprep.subr.mxu0 0.0
    %624 = vmatpush1.msra.mxu0 0.0
    %625 = vmatprep.subr.mxu0 0.0
    %626 = vmatpush1.msra.mxu0 0.0
    %627 = vmatprep.subr.mxu0 0.0
    %628 = vmatpush1.msra.mxu0 0.0
    %629 = vmatprep.subr.mxu0 0.0
    %630 = vmatpush1.msra.mxu0 0.0
    %631 = vmatprep.subr.mxu0 0.0
    %632 = vmatpush1.msra.mxu0 0.0
    %633 = vmatprep.subr.mxu0 0.0
    %634 = vmatpush1.msra.mxu0 0.0
    %635 = vmatprep.subr.mxu0 0.0
    %636 = vmatpush1.msra.mxu0 0.0
    %637 = vmatprep.subr.mxu0 0.0
    %638 = vmatpush1.msra.mxu0 0.0
    %639 = vmatprep.subr.mxu0 0.0
    %640 = vmatpush1.msra.mxu0 0.0
    %641 = vmatprep.subr.mxu0 0.0
    %642 = vmatpush1.msra.mxu0 0.0
    %643 = vmatprep.subr.mxu0 0.0
    %644 = vmatpush1.msra.mxu0 0.0
    %645 = vmatprep.subr.mxu0 0.0
    %646 = vmatpush1.msra.mxu0 0.0
    %647 = vmatprep.subr.mxu0 0.0
    %648 = vmatpush1.msra.mxu0 0.0
    %v649 = vand.u32 %v72, 4294901760
    %650 = vmatprep.subr.mxu0 %v649
    %v651 = vand.u32 %v71, 4294901760
    %652 = vmatpush1.msra.mxu0 %v651
    %653 = vmatprep.subr.mxu0 0.0
    %654 = vmatpush2.msra.mxu0 0.0
    %655 = vmatprep.subr.mxu0 0.0
    %656 = vmatpush2.msra.mxu0 0.0
    %657 = vmatprep.subr.mxu0 0.0
    %658 = vmatpush2.msra.mxu0 0.0
    %659 = vmatprep.subr.mxu0 0.0
    %660 = vmatpush2.msra.mxu0 0.0
    %661 = vmatprep.subr.mxu0 0.0
    %662 = vmatpush2.msra.mxu0 0.0
    %663 = vmatprep.subr.mxu0 0.0
    %664 = vmatpush2.msra.mxu0 0.0
    %665 = vmatprep.subr.mxu0 0.0
    %666 = vmatpush2.msra.mxu0 0.0
    %667 = vmatprep.subr.mxu0 0.0
    %668 = vmatpush2.msra.mxu0 0.0
    %669 = vmatprep.subr.mxu0 0.0
    %670 = vmatpush2.msra.mxu0 0.0
    %671 = vmatprep.subr.mxu0 0.0
    %672 = vmatpush2.msra.mxu0 0.0
    %673 = vmatprep.subr.mxu0 0.0
    %674 = vmatpush2.msra.mxu0 0.0
    %675 = vmatprep.subr.mxu0 0.0
    %676 = vmatpush2.msra.mxu0 0.0
    %677 = vmatprep.subr.mxu0 0.0
    %678 = vmatpush2.msra.mxu0 0.0
    %679 = vmatprep.subr.mxu0 0.0
    %680 = vmatpush2.msra.mxu0 0.0
    %681 = vmatprep.subr.mxu0 0.0
    %682 = vmatpush2.msra.mxu0 0.0
    %683 = vmatprep.subr.mxu0 0.0
    %684 = vmatpush2.msra.mxu0 0.0
    %685 = vmatprep.mubr.f32.mxu0 0.0
    %v686 = vand.u32 %v94, 4294901760
    %687 = vmatmul.mubr.f32.gmra.mxu0 %v686
    %v688 = vpop.f32.mrf.mxu0
    %v689 = vadd.f32 %v594, %v688
    %v690 = vpop.f32.mrf.mxu0
    %v691 = vadd.f32 %v596, %v690
    %692 = vmatprep.mubr.f32.mxu0 0.0
    %v693 = vand.u32 %v96, 4294901760
    %694 = vmatmul.mubr.f32.gmra.mxu0 %v693
    %v695 = vpop.f32.mrf.mxu0
    %v696 = vadd.f32 %v601, %v695
    %v697 = vpop.f32.mrf.mxu0
    %v698 = vadd.f32 %v603, %v697
    %699 = vmatprep.mubr.f32.mxu0 0.0
    %v700 = vand.u32 %v98, 4294901760
    %701 = vmatmul.mubr.f32.gmra.mxu0 %v700
    %v702 = vpop.f32.mrf.mxu0
    %v703 = vadd.f32 %v608, %v702
    %v704 = vpop.f32.mrf.mxu0
    %v705 = vadd.f32 %v610, %v704
    %706 = vmatprep.mubr.f32.mxu0 0.0
    %v707 = vand.u32 %v100, 4294901760
    %708 = vmatmul.mubr.f32.gmra.mxu0 %v707
    %v709 = vpop.f32.mrf.mxu0
    %v710 = vadd.f32 %v615, %v709
    %v711 = vpop.f32.mrf.mxu0
    %v712 = vadd.f32 %v617, %v711
    %713 = vdwg.mxu0
    %v714 = vmax.f32 %v689, 0.0
    %v715 = vmax.f32 %v691, 0.0
    %v716 = vmax.f32 %v696, 0.0
    %v717 = vmax.f32 %v698, 0.0
    %v718 = vmax.f32 %v703, 0.0
    %v719 = vmax.f32 %v705, 0.0
    %v720 = vmax.f32 %v710, 0.0
    %v721 = vmax.f32 %v712, 0.0
    %722 = vrot.lane.b32.xlu0 %v714, 17
    %v723 = vpop.permute.xlu0 %722
    %724 = vrot.lane.b32.xlu0 %v716, 17
    %v725 = vpop.permute.xlu0 %724
    %726 = vrot.lane.b32.xlu0 %v718, 17
    %v727 = vpop.permute.xlu0 %726
    %728 = vrot.lane.b32.xlu0 %v720, 17
    %v729 = vpop.permute.xlu0 %728
    %730 = vrot.lane.b32.xlu0 %v715, 17
    %v731 = vpop.permute.xlu0 %730
    %732 = vrot.lane.b32.xlu0 %v717, 17
    %v733 = vpop.permute.xlu0 %732
    %734 = vrot.lane.b32.xlu0 %v719, 17
    %v735 = vpop.permute.xlu0 %734
    %736 = vrot.lane.b32.xlu0 %v721, 17
    %v737 = vpop.permute.xlu0 %736
    %v738 = vlaneseq
    %v739 = vand.u32 %v738, 127
    %vm740 = vcmp.lt.s32.totalorder %v739, 17
    %v741 = vsel %vm740, %v723, %v731
    %v742 = vsel %vm740, %v725, %v733
    %v743 = vsel %vm740, %v727, %v735
    %v744 = vsel %vm740, %v729, %v737
    %v745 = vsel %vm740, %v731, %v723
    %v746 = vsel %vm740, %v733, %v725
    %v747 = vsel %vm740, %v735, %v727
    %v748 = vsel %vm740, %v737, %v729
    %v750 = vlaneseq
    %v751 = vshrl.u32 %v750, 7
    %v752 = vsub.s32 0, %v751
    %v753 = vrot.slane %v41, %v752
    %v754 = vlaneseq
    %v755 = vshrl.u32 %v754, 7
    %v756 = vsub.s32 1, %v755
    %v757 = vrot.slane %v41, %v756
    %v760 = vmul.f32 %v745, %v753
    %v761 = vmul.f32 %v741, %v757
    %v762 = vmul.f32 %v746, %v753
    %v763 = vmul.f32 %v742, %v757
    %v764 = vmul.f32 %v747, %v753
    %v765 = vmul.f32 %v743, %v757
    %v766 = vmul.f32 %v748, %v753
    %v767 = vmul.f32 %v744, %v757
    %768 = vrot.lane.b32.xlu0 %v714, 16
    %v769 = vpop.permute.xlu0 %768
    %770 = vrot.lane.b32.xlu0 %v716, 16
    %v771 = vpop.permute.xlu0 %770
    %772 = vrot.lane.b32.xlu0 %v718, 16
    %v773 = vpop.permute.xlu0 %772
    %774 = vrot.lane.b32.xlu0 %v720, 16
    %v775 = vpop.permute.xlu0 %774
    %776 = vrot.lane.b32.xlu0 %v715, 16
    %v777 = vpop.permute.xlu0 %776
    %778 = vrot.lane.b32.xlu0 %v717, 16
    %v779 = vpop.permute.xlu0 %778
    %780 = vrot.lane.b32.xlu0 %v719, 16
    %v781 = vpop.permute.xlu0 %780
    %782 = vrot.lane.b32.xlu0 %v721, 16
    %v783 = vpop.permute.xlu0 %782
    %vm784 = vcmp.lt.s32.totalorder %v739, 16
    %v785 = vsel %vm784, %v769, %v777
    %v786 = vsel %vm784, %v771, %v779
    %v787 = vsel %vm784, %v773, %v781
    %v788 = vsel %vm784, %v775, %v783
    %v789 = vsel %vm784, %v777, %v769
    %v790 = vsel %vm784, %v779, %v771
    %v791 = vsel %vm784, %v781, %v773
    %v792 = vsel %vm784, %v783, %v775
    %v794 = vlaneseq
    %v795 = vshrl.u32 %v794, 7
    %v796 = vsub.s32 0, %v795
    %v797 = vrot.slane %v43, %v796
    %v798 = vlaneseq
    %v799 = vshrl.u32 %v798, 7
    %v800 = vsub.s32 1, %v799
    %v801 = vrot.slane %v43, %v800
    %v804 = vmul.f32 %v789, %v797
    %v805 = vmul.f32 %v785, %v801
    %v806 = vmul.f32 %v790, %v797
    %v807 = vmul.f32 %v786, %v801
    %v808 = vmul.f32 %v791, %v797
    %v809 = vmul.f32 %v787, %v801
    %v810 = vmul.f32 %v792, %v797
    %v811 = vmul.f32 %v788, %v801
    %812 = vrot.lane.b32.xlu0 %v714, 15
    %v813 = vpop.permute.xlu0 %812
    %814 = vrot.lane.b32.xlu0 %v716, 15
    %v815 = vpop.permute.xlu0 %814
    %816 = vrot.lane.b32.xlu0 %v718, 15
    %v817 = vpop.permute.xlu0 %816
    %818 = vrot.lane.b32.xlu0 %v720, 15
    %v819 = vpop.permute.xlu0 %818
    %820 = vrot.lane.b32.xlu0 %v715, 15
    %v821 = vpop.permute.xlu0 %820
    %822 = vrot.lane.b32.xlu0 %v717, 15
    %v823 = vpop.permute.xlu0 %822
    %824 = vrot.lane.b32.xlu0 %v719, 15
    %v825 = vpop.permute.xlu0 %824
    %826 = vrot.lane.b32.xlu0 %v721, 15
    %v827 = vpop.permute.xlu0 %826
    %vm828 = vcmp.lt.s32.totalorder %v739, 15
    %v829 = vsel %vm828, %v813, %v821
    %v830 = vsel %vm828, %v815, %v823
    %v831 = vsel %vm828, %v817, %v825
    %v832 = vsel %vm828, %v819, %v827
    %v833 = vsel %vm828, %v821, %v813
    %v834 = vsel %vm828, %v823, %v815
    %v835 = vsel %vm828, %v825, %v817
    %v836 = vsel %vm828, %v827, %v819
    %v838 = vlaneseq
    %v839 = vshrl.u32 %v838, 7
    %v840 = vsub.s32 0, %v839
    %v841 = vrot.slane %v45, %v840
    %v842 = vlaneseq
    %v843 = vshrl.u32 %v842, 7
    %v844 = vsub.s32 1, %v843
    %v845 = vrot.slane %v45, %v844
    %v848 = vmul.f32 %v833, %v841
    %v849 = vmul.f32 %v829, %v845
    %v850 = vmul.f32 %v834, %v841
    %v851 = vmul.f32 %v830, %v845
    %v852 = vmul.f32 %v835, %v841
    %v853 = vmul.f32 %v831, %v845
    %v854 = vmul.f32 %v836, %v841
    %v855 = vmul.f32 %v832, %v845
    %856 = vrot.lane.b32.xlu0 %v714, 1
    %v857 = vpop.permute.xlu0 %856
    %858 = vrot.lane.b32.xlu0 %v716, 1
    %v859 = vpop.permute.xlu0 %858
    %860 = vrot.lane.b32.xlu0 %v718, 1
    %v861 = vpop.permute.xlu0 %860
    %862 = vrot.lane.b32.xlu0 %v720, 1
    %v863 = vpop.permute.xlu0 %862
    %864 = vrot.lane.b32.xlu0 %v715, 1
    %v865 = vpop.permute.xlu0 %864
    %866 = vrot.lane.b32.xlu0 %v717, 1
    %v867 = vpop.permute.xlu0 %866
    %868 = vrot.lane.b32.xlu0 %v719, 1
    %v869 = vpop.permute.xlu0 %868
    %870 = vrot.lane.b32.xlu0 %v721, 1
    %v871 = vpop.permute.xlu0 %870
    %vm872 = vcmp.lt.s32.totalorder %v739, 1
    %v873 = vsel %vm872, %v857, %v865
    %v874 = vsel %vm872, %v859, %v867
    %v875 = vsel %vm872, %v861, %v869
    %v876 = vsel %vm872, %v863, %v871
    %v877 = vsel %vm872, %v865, %v857
    %v878 = vsel %vm872, %v867, %v859
    %v879 = vsel %vm872, %v869, %v861
    %v880 = vsel %vm872, %v871, %v863
    %v882 = vlaneseq
    %v883 = vshrl.u32 %v882, 7
    %v884 = vsub.s32 0, %v883
    %v885 = vrot.slane %v47, %v884
    %v886 = vlaneseq
    %v887 = vshrl.u32 %v886, 7
    %v888 = vsub.s32 1, %v887
    %v889 = vrot.slane %v47, %v888
    %v892 = vmul.f32 %v877, %v885
    %v893 = vmul.f32 %v873, %v889
    %v894 = vmul.f32 %v878, %v885
    %v895 = vmul.f32 %v874, %v889
    %v896 = vmul.f32 %v879, %v885
    %v897 = vmul.f32 %v875, %v889
    %v898 = vmul.f32 %v880, %v885
    %v899 = vmul.f32 %v876, %v889
    %900 = vrot.lane.b32.xlu0 %v714, 127
    %v901 = vpop.permute.xlu0 %900
    %902 = vrot.lane.b32.xlu0 %v716, 127
    %v903 = vpop.permute.xlu0 %902
    %904 = vrot.lane.b32.xlu0 %v718, 127
    %v905 = vpop.permute.xlu0 %904
    %906 = vrot.lane.b32.xlu0 %v720, 127
    %v907 = vpop.permute.xlu0 %906
    %908 = vrot.lane.b32.xlu0 %v715, 127
    %v909 = vpop.permute.xlu0 %908
    %910 = vrot.lane.b32.xlu0 %v717, 127
    %v911 = vpop.permute.xlu0 %910
    %912 = vrot.lane.b32.xlu0 %v719, 127
    %v913 = vpop.permute.xlu0 %912
    %914 = vrot.lane.b32.xlu0 %v721, 127
    %v915 = vpop.permute.xlu0 %914
    %vm916 = vcmp.lt.s32.totalorder %v739, 127
    %v917 = vsel %vm916, %v901, %v909
    %v918 = vsel %vm916, %v903, %v911
    %v919 = vsel %vm916, %v905, %v913
    %v920 = vsel %vm916, %v907, %v915
    %v921 = vsel %vm916, %v909, %v901
    %v922 = vsel %vm916, %v911, %v903
    %v923 = vsel %vm916, %v913, %v905
    %v924 = vsel %vm916, %v915, %v907
    %v926 = vlaneseq
    %v927 = vshrl.u32 %v926, 7
    %v928 = vsub.s32 0, %v927
    %v929 = vrot.slane %v49, %v928
    %v930 = vlaneseq
    %v931 = vshrl.u32 %v930, 7
    %v932 = vsub.s32 1, %v931
    %v933 = vrot.slane %v49, %v932
    %v936 = vmul.f32 %v917, %v929
    %v937 = vmul.f32 %v921, %v933
    %v938 = vmul.f32 %v918, %v929
    %v939 = vmul.f32 %v922, %v933
    %v940 = vmul.f32 %v919, %v929
    %v941 = vmul.f32 %v923, %v933
    %v942 = vmul.f32 %v920, %v929
    %v943 = vmul.f32 %v924, %v933
    %944 = vrot.lane.b32.xlu0 %v714, 113
    %v945 = vpop.permute.xlu0 %944
    %946 = vrot.lane.b32.xlu0 %v716, 113
    %v947 = vpop.permute.xlu0 %946
    %948 = vrot.lane.b32.xlu0 %v718, 113
    %v949 = vpop.permute.xlu0 %948
    %950 = vrot.lane.b32.xlu0 %v720, 113
    %v951 = vpop.permute.xlu0 %950
    %952 = vrot.lane.b32.xlu0 %v715, 113
    %v953 = vpop.permute.xlu0 %952
    %954 = vrot.lane.b32.xlu0 %v717, 113
    %v955 = vpop.permute.xlu0 %954
    %956 = vrot.lane.b32.xlu0 %v719, 113
    %v957 = vpop.permute.xlu0 %956
    %958 = vrot.lane.b32.xlu0 %v721, 113
    %v959 = vpop.permute.xlu0 %958
    %vm960 = vcmp.lt.s32.totalorder %v739, 113
    %v961 = vsel %vm960, %v945, %v953
    %v962 = vsel %vm960, %v947, %v955
    %v963 = vsel %vm960, %v949, %v957
    %v964 = vsel %vm960, %v951, %v959
    %v965 = vsel %vm960, %v953, %v945
    %v966 = vsel %vm960, %v955, %v947
    %v967 = vsel %vm960, %v957, %v949
    %v968 = vsel %vm960, %v959, %v951
    %v970 = vlaneseq
    %v971 = vshrl.u32 %v970, 7
    %v972 = vsub.s32 0, %v971
    %v973 = vrot.slane %v51, %v972
    %v974 = vlaneseq
    %v975 = vshrl.u32 %v974, 7
    %v976 = vsub.s32 1, %v975
    %v977 = vrot.slane %v51, %v976
    %v980 = vmul.f32 %v961, %v973
    %v981 = vmul.f32 %v965, %v977
    %v982 = vmul.f32 %v962, %v973
    %v983 = vmul.f32 %v966, %v977
    %v984 = vmul.f32 %v963, %v973
    %v985 = vmul.f32 %v967, %v977
    %v986 = vmul.f32 %v964, %v973
    %v987 = vmul.f32 %v968, %v977
    %988 = vrot.lane.b32.xlu0 %v714, 112
    %v989 = vpop.permute.xlu0 %988
    %990 = vrot.lane.b32.xlu0 %v716, 112
    %v991 = vpop.permute.xlu0 %990
    %992 = vrot.lane.b32.xlu0 %v718, 112
    %v993 = vpop.permute.xlu0 %992
    %994 = vrot.lane.b32.xlu0 %v720, 112
    %v995 = vpop.permute.xlu0 %994
    %996 = vrot.lane.b32.xlu0 %v715, 112
    %v997 = vpop.permute.xlu0 %996
    %998 = vrot.lane.b32.xlu0 %v717, 112
    %v999 = vpop.permute.xlu0 %998
    %1000 = vrot.lane.b32.xlu0 %v719, 112
    %v1001 = vpop.permute.xlu0 %1000
    %1002 = vrot.lane.b32.xlu0 %v721, 112
    %v1003 = vpop.permute.xlu0 %1002
    %vm1004 = vcmp.lt.s32.totalorder %v739, 112
    %v1005 = vsel %vm1004, %v989, %v997
    %v1006 = vsel %vm1004, %v991, %v999
    %v1007 = vsel %vm1004, %v993, %v1001
    %v1008 = vsel %vm1004, %v995, %v1003
    %v1009 = vsel %vm1004, %v997, %v989
    %v1010 = vsel %vm1004, %v999, %v991
    %v1011 = vsel %vm1004, %v1001, %v993
    %v1012 = vsel %vm1004, %v1003, %v995
    %v1014 = vlaneseq
    %v1015 = vshrl.u32 %v1014, 7
    %v1016 = vsub.s32 0, %v1015
    %v1017 = vrot.slane %v53, %v1016
    %v1018 = vlaneseq
    %v1019 = vshrl.u32 %v1018, 7
    %v1020 = vsub.s32 1, %v1019
    %v1021 = vrot.slane %v53, %v1020
    %v1024 = vmul.f32 %v1005, %v1017
    %v1025 = vmul.f32 %v1009, %v1021
    %v1026 = vmul.f32 %v1006, %v1017
    %v1027 = vmul.f32 %v1010, %v1021
    %v1028 = vmul.f32 %v1007, %v1017
    %v1029 = vmul.f32 %v1011, %v1021
    %v1030 = vmul.f32 %v1008, %v1017
    %v1031 = vmul.f32 %v1012, %v1021
    %1032 = vrot.lane.b32.xlu0 %v714, 111
    %v1033 = vpop.permute.xlu0 %1032
    %1034 = vrot.lane.b32.xlu0 %v716, 111
    %v1035 = vpop.permute.xlu0 %1034
    %1036 = vrot.lane.b32.xlu0 %v718, 111
    %v1037 = vpop.permute.xlu0 %1036
    %1038 = vrot.lane.b32.xlu0 %v720, 111
    %v1039 = vpop.permute.xlu0 %1038
    %1040 = vrot.lane.b32.xlu0 %v715, 111
    %v1041 = vpop.permute.xlu0 %1040
    %1042 = vrot.lane.b32.xlu0 %v717, 111
    %v1043 = vpop.permute.xlu0 %1042
    %1044 = vrot.lane.b32.xlu0 %v719, 111
    %v1045 = vpop.permute.xlu0 %1044
    %1046 = vrot.lane.b32.xlu0 %v721, 111
    %v1047 = vpop.permute.xlu0 %1046
    %vm1048 = vcmp.lt.s32.totalorder %v739, 111
    %v1049 = vsel %vm1048, %v1033, %v1041
    %v1050 = vsel %vm1048, %v1035, %v1043
    %v1051 = vsel %vm1048, %v1037, %v1045
    %v1052 = vsel %vm1048, %v1039, %v1047
    %v1053 = vsel %vm1048, %v1041, %v1033
    %v1054 = vsel %vm1048, %v1043, %v1035
    %v1055 = vsel %vm1048, %v1045, %v1037
    %v1056 = vsel %vm1048, %v1047, %v1039
    %v1058 = vlaneseq
    %v1059 = vshrl.u32 %v1058, 7
    %v1060 = vsub.s32 0, %v1059
    %v1061 = vrot.slane %v55, %v1060
    %v1062 = vlaneseq
    %v1063 = vshrl.u32 %v1062, 7
    %v1064 = vsub.s32 1, %v1063
    %v1065 = vrot.slane %v55, %v1064
    %v1068 = vmul.f32 %v1049, %v1061
    %v1069 = vmul.f32 %v1053, %v1065
    %v1070 = vmul.f32 %v1050, %v1061
    %v1071 = vmul.f32 %v1054, %v1065
    %v1072 = vmul.f32 %v1051, %v1061
    %v1073 = vmul.f32 %v1055, %v1065
    %v1074 = vmul.f32 %v1052, %v1061
    %v1075 = vmul.f32 %v1056, %v1065
    %vm1076 = vcmask 261120
    %v1078 = vsel %vm1076, %v40, 0
    %v1080 = vand.u32 %v899, 4294901760
    %1081 = vmatprep.subr.mxu0 %v1080
    %v1082 = vand.u32 %v898, 4294901760
    %1083 = vmatpush1.msra.mxu0 %v1082
    %v1084 = vand.u32 %v897, 4294901760
    %1085 = vmatprep.subr.mxu0 %v1084
    %v1086 = vand.u32 %v896, 4294901760
    %1087 = vmatpush1.msra.mxu0 %v1086
    %v1088 = vand.u32 %v895, 4294901760
    %1089 = vmatprep.subr.mxu0 %v1088
    %v1090 = vand.u32 %v894, 4294901760
    %1091 = vmatpush1.msra.mxu0 %v1090
    %v1092 = vand.u32 %v893, 4294901760
    %1093 = vmatprep.subr.mxu0 %v1092
    %v1094 = vand.u32 %v892, 4294901760
    %1095 = vmatpush1.msra.mxu0 %v1094
    %v1096 = vand.u32 %v855, 4294901760
    %1097 = vmatprep.subr.mxu0 %v1096
    %v1098 = vand.u32 %v854, 4294901760
    %1099 = vmatpush1.msra.mxu0 %v1098
    %v1100 = vand.u32 %v853, 4294901760
    %1101 = vmatprep.subr.mxu0 %v1100
    %v1102 = vand.u32 %v852, 4294901760
    %1103 = vmatpush1.msra.mxu0 %v1102
    %v1104 = vand.u32 %v851, 4294901760
    %1105 = vmatprep.subr.mxu0 %v1104
    %v1106 = vand.u32 %v850, 4294901760
    %1107 = vmatpush1.msra.mxu0 %v1106
    %v1108 = vand.u32 %v849, 4294901760
    %1109 = vmatprep.subr.mxu0 %v1108
    %v1110 = vand.u32 %v848, 4294901760
    %1111 = vmatpush1.msra.mxu0 %v1110
    %v1112 = vand.u32 %v811, 4294901760
    %1113 = vmatprep.subr.mxu0 %v1112
    %v1114 = vand.u32 %v810, 4294901760
    %1115 = vmatpush1.msra.mxu0 %v1114
    %v1116 = vand.u32 %v809, 4294901760
    %1117 = vmatprep.subr.mxu0 %v1116
    %v1118 = vand.u32 %v808, 4294901760
    %1119 = vmatpush1.msra.mxu0 %v1118
    %v1120 = vand.u32 %v807, 4294901760
    %1121 = vmatprep.subr.mxu0 %v1120
    %v1122 = vand.u32 %v806, 4294901760
    %1123 = vmatpush1.msra.mxu0 %v1122
    %v1124 = vand.u32 %v805, 4294901760
    %1125 = vmatprep.subr.mxu0 %v1124
    %v1126 = vand.u32 %v804, 4294901760
    %1127 = vmatpush1.msra.mxu0 %v1126
    %v1128 = vand.u32 %v767, 4294901760
    %1129 = vmatprep.subr.mxu0 %v1128
    %v1130 = vand.u32 %v766, 4294901760
    %1131 = vmatpush1.msra.mxu0 %v1130
    %v1132 = vand.u32 %v765, 4294901760
    %1133 = vmatprep.subr.mxu0 %v1132
    %v1134 = vand.u32 %v764, 4294901760
    %1135 = vmatpush1.msra.mxu0 %v1134
    %v1136 = vand.u32 %v763, 4294901760
    %1137 = vmatprep.subr.mxu0 %v1136
    %v1138 = vand.u32 %v762, 4294901760
    %1139 = vmatpush1.msra.mxu0 %v1138
    %v1140 = vand.u32 %v761, 4294901760
    %1141 = vmatprep.subr.mxu0 %v1140
    %v1142 = vand.u32 %v760, 4294901760
    %1143 = vmatpush1.msra.mxu0 %v1142
    %v1144 = vand.u32 %v1031, 4294901760
    %1145 = vmatprep.subr.mxu0 %v1144
    %v1146 = vand.u32 %v1030, 4294901760
    %1147 = vmatpush2.msra.mxu0 %v1146
    %v1148 = vand.u32 %v1029, 4294901760
    %1149 = vmatprep.subr.mxu0 %v1148
    %v1150 = vand.u32 %v1028, 4294901760
    %1151 = vmatpush2.msra.mxu0 %v1150
    %v1152 = vand.u32 %v1027, 4294901760
    %1153 = vmatprep.subr.mxu0 %v1152
    %v1154 = vand.u32 %v1026, 4294901760
    %1155 = vmatpush2.msra.mxu0 %v1154
    %v1156 = vand.u32 %v1025, 4294901760
    %1157 = vmatprep.subr.mxu0 %v1156
    %v1158 = vand.u32 %v1024, 4294901760
    %1159 = vmatpush2.msra.mxu0 %v1158
    %v1160 = vand.u32 %v987, 4294901760
    %1161 = vmatprep.subr.mxu0 %v1160
    %v1162 = vand.u32 %v986, 4294901760
    %1163 = vmatpush2.msra.mxu0 %v1162
    %v1164 = vand.u32 %v985, 4294901760
    %1165 = vmatprep.subr.mxu0 %v1164
    %v1166 = vand.u32 %v984, 4294901760
    %1167 = vmatpush2.msra.mxu0 %v1166
    %v1168 = vand.u32 %v983, 4294901760
    %1169 = vmatprep.subr.mxu0 %v1168
    %v1170 = vand.u32 %v982, 4294901760
    %1171 = vmatpush2.msra.mxu0 %v1170
    %v1172 = vand.u32 %v981, 4294901760
    %1173 = vmatprep.subr.mxu0 %v1172
    %v1174 = vand.u32 %v980, 4294901760
    %1175 = vmatpush2.msra.mxu0 %v1174
    %v1176 = vand.u32 %v943, 4294901760
    %1177 = vmatprep.subr.mxu0 %v1176
    %v1178 = vand.u32 %v942, 4294901760
    %1179 = vmatpush2.msra.mxu0 %v1178
    %v1180 = vand.u32 %v941, 4294901760
    %1181 = vmatprep.subr.mxu0 %v1180
    %v1182 = vand.u32 %v940, 4294901760
    %1183 = vmatpush2.msra.mxu0 %v1182
    %v1184 = vand.u32 %v939, 4294901760
    %1185 = vmatprep.subr.mxu0 %v1184
    %v1186 = vand.u32 %v938, 4294901760
    %1187 = vmatpush2.msra.mxu0 %v1186
    %v1188 = vand.u32 %v937, 4294901760
    %1189 = vmatprep.subr.mxu0 %v1188
    %v1190 = vand.u32 %v936, 4294901760
    %1191 = vmatpush2.msra.mxu0 %v1190
    %v1192 = vand.u32 %v721, 4294901760
    %1193 = vmatprep.subr.mxu0 %v1192
    %v1194 = vand.u32 %v720, 4294901760
    %1195 = vmatpush2.msra.mxu0 %v1194
    %v1196 = vand.u32 %v719, 4294901760
    %1197 = vmatprep.subr.mxu0 %v1196
    %v1198 = vand.u32 %v718, 4294901760
    %1199 = vmatpush2.msra.mxu0 %v1198
    %v1200 = vand.u32 %v717, 4294901760
    %1201 = vmatprep.subr.mxu0 %v1200
    %v1202 = vand.u32 %v716, 4294901760
    %1203 = vmatpush2.msra.mxu0 %v1202
    %v1204 = vand.u32 %v715, 4294901760
    %1205 = vmatprep.subr.mxu0 %v1204
    %v1206 = vand.u32 %v714, 4294901760
    %1207 = vmatpush2.msra.mxu0 %v1206
    %v1208 = vand.u32 %v39, 4294901760
    %v1209 = vsub.f32 %v39, %v1208
    %v1210 = vand.u32 %v1209, 4294901760
    %v1211 = vsub.f32 %v1209, %v1210
    %v1212 = vand.u32 %v1211, 4294901760
    %1213 = vmatprep.mubr.f32.mxu0 %v1212
    %v1214 = vand.u32 %v38, 4294901760
    %v1215 = vsub.f32 %v38, %v1214
    %v1216 = vand.u32 %v1215, 4294901760
    %v1217 = vsub.f32 %v1215, %v1216
    %v1218 = vand.u32 %v1217, 4294901760
    %1219 = vmatmul.mubr.f32.gmra.mxu0 %v1218
    %v1220 = vpop.f32.mrf.mxu0
    %v1221 = vadd.f32 0.0, %v1220
    %v1222 = vpop.f32.mrf.mxu0
    %v1223 = vadd.f32 0.0, %v1222
    %1224 = vdwg.mxu0
    %v1225 = vand.u32 %v899, 4294901760
    %v1226 = vsub.f32 %v899, %v1225
    %v1227 = vand.u32 %v1226, 4294901760
    %v1228 = vsub.f32 %v1226, %v1227
    %v1229 = vand.u32 %v1228, 4294901760
    %1230 = vmatprep.subr.mxu0 %v1229
    %v1231 = vand.u32 %v898, 4294901760
    %v1232 = vsub.f32 %v898, %v1231
    %v1233 = vand.u32 %v1232, 4294901760
    %v1234 = vsub.f32 %v1232, %v1233
    %v1235 = vand.u32 %v1234, 4294901760
    %1236 = vmatpush1.msra.mxu0 %v1235
    %v1237 = vand.u32 %v897, 4294901760
    %v1238 = vsub.f32 %v897, %v1237
    %v1239 = vand.u32 %v1238, 4294901760
    %v1240 = vsub.f32 %v1238, %v1239
    %v1241 = vand.u32 %v1240, 4294901760
    %1242 = vmatprep.subr.mxu0 %v1241
    %v1243 = vand.u32 %v896, 4294901760
    %v1244 = vsub.f32 %v896, %v1243
    %v1245 = vand.u32 %v1244, 4294901760
    %v1246 = vsub.f32 %v1244, %v1245
    %v1247 = vand.u32 %v1246, 4294901760
    %1248 = vmatpush1.msra.mxu0 %v1247
    %v1249 = vand.u32 %v895, 4294901760
    %v1250 = vsub.f32 %v895, %v1249
    %v1251 = vand.u32 %v1250, 4294901760
    %v1252 = vsub.f32 %v1250, %v1251
    %v1253 = vand.u32 %v1252, 4294901760
    %1254 = vmatprep.subr.mxu0 %v1253
    %v1255 = vand.u32 %v894, 4294901760
    %v1256 = vsub.f32 %v894, %v1255
    %v1257 = vand.u32 %v1256, 4294901760
    %v1258 = vsub.f32 %v1256, %v1257
    %v1259 = vand.u32 %v1258, 4294901760
    %1260 = vmatpush1.msra.mxu0 %v1259
    %v1261 = vand.u32 %v893, 4294901760
    %v1262 = vsub.f32 %v893, %v1261
    %v1263 = vand.u32 %v1262, 4294901760
    %v1264 = vsub.f32 %v1262, %v1263
    %v1265 = vand.u32 %v1264, 4294901760
    %1266 = vmatprep.subr.mxu0 %v1265
    %v1267 = vand.u32 %v892, 4294901760
    %v1268 = vsub.f32 %v892, %v1267
    %v1269 = vand.u32 %v1268, 4294901760
    %v1270 = vsub.f32 %v1268, %v1269
    %v1271 = vand.u32 %v1270, 4294901760
    %1272 = vmatpush1.msra.mxu0 %v1271
    %v1273 = vand.u32 %v855, 4294901760
    %v1274 = vsub.f32 %v855, %v1273
    %v1275 = vand.u32 %v1274, 4294901760
    %v1276 = vsub.f32 %v1274, %v1275
    %v1277 = vand.u32 %v1276, 4294901760
    %1278 = vmatprep.subr.mxu0 %v1277
    %v1279 = vand.u32 %v854, 4294901760
    %v1280 = vsub.f32 %v854, %v1279
    %v1281 = vand.u32 %v1280, 4294901760
    %v1282 = vsub.f32 %v1280, %v1281
    %v1283 = vand.u32 %v1282, 4294901760
    %1284 = vmatpush1.msra.mxu0 %v1283
    %v1285 = vand.u32 %v853, 4294901760
    %v1286 = vsub.f32 %v853, %v1285
    %v1287 = vand.u32 %v1286, 4294901760
    %v1288 = vsub.f32 %v1286, %v1287
    %v1289 = vand.u32 %v1288, 4294901760
    %1290 = vmatprep.subr.mxu0 %v1289
    %v1291 = vand.u32 %v852, 4294901760
    %v1292 = vsub.f32 %v852, %v1291
    %v1293 = vand.u32 %v1292, 4294901760
    %v1294 = vsub.f32 %v1292, %v1293
    %v1295 = vand.u32 %v1294, 4294901760
    %1296 = vmatpush1.msra.mxu0 %v1295
    %v1297 = vand.u32 %v851, 4294901760
    %v1298 = vsub.f32 %v851, %v1297
    %v1299 = vand.u32 %v1298, 4294901760
    %v1300 = vsub.f32 %v1298, %v1299
    %v1301 = vand.u32 %v1300, 4294901760
    %1302 = vmatprep.subr.mxu0 %v1301
    %v1303 = vand.u32 %v850, 4294901760
    %v1304 = vsub.f32 %v850, %v1303
    %v1305 = vand.u32 %v1304, 4294901760
    %v1306 = vsub.f32 %v1304, %v1305
    %v1307 = vand.u32 %v1306, 4294901760
    %1308 = vmatpush1.msra.mxu0 %v1307
    %v1309 = vand.u32 %v849, 4294901760
    %v1310 = vsub.f32 %v849, %v1309
    %v1311 = vand.u32 %v1310, 4294901760
    %v1312 = vsub.f32 %v1310, %v1311
    %v1313 = vand.u32 %v1312, 4294901760
    %1314 = vmatprep.subr.mxu0 %v1313
    %v1315 = vand.u32 %v848, 4294901760
    %v1316 = vsub.f32 %v848, %v1315
    %v1317 = vand.u32 %v1316, 4294901760
    %v1318 = vsub.f32 %v1316, %v1317
    %v1319 = vand.u32 %v1318, 4294901760
    %1320 = vmatpush1.msra.mxu0 %v1319
    %v1321 = vand.u32 %v811, 4294901760
    %v1322 = vsub.f32 %v811, %v1321
    %v1323 = vand.u32 %v1322, 4294901760
    %v1324 = vsub.f32 %v1322, %v1323
    %v1325 = vand.u32 %v1324, 4294901760
    %1326 = vmatprep.subr.mxu0 %v1325
    %v1327 = vand.u32 %v810, 4294901760
    %v1328 = vsub.f32 %v810, %v1327
    %v1329 = vand.u32 %v1328, 4294901760
    %v1330 = vsub.f32 %v1328, %v1329
    %v1331 = vand.u32 %v1330, 4294901760
    %1332 = vmatpush1.msra.mxu0 %v1331
    %v1333 = vand.u32 %v809, 4294901760
    %v1334 = vsub.f32 %v809, %v1333
    %v1335 = vand.u32 %v1334, 4294901760
    %v1336 = vsub.f32 %v1334, %v1335
    %v1337 = vand.u32 %v1336, 4294901760
    %1338 = vmatprep.subr.mxu0 %v1337
    %v1339 = vand.u32 %v808, 4294901760
    %v1340 = vsub.f32 %v808, %v1339
    %v1341 = vand.u32 %v1340, 4294901760
    %v1342 = vsub.f32 %v1340, %v1341
    %v1343 = vand.u32 %v1342, 4294901760
    %1344 = vmatpush1.msra.mxu0 %v1343
    %v1345 = vand.u32 %v807, 4294901760
    %v1346 = vsub.f32 %v807, %v1345
    %v1347 = vand.u32 %v1346, 4294901760
    %v1348 = vsub.f32 %v1346, %v1347
    %v1349 = vand.u32 %v1348, 4294901760
    %1350 = vmatprep.subr.mxu0 %v1349
    %v1351 = vand.u32 %v806, 4294901760
    %v1352 = vsub.f32 %v806, %v1351
    %v1353 = vand.u32 %v1352, 4294901760
    %v1354 = vsub.f32 %v1352, %v1353
    %v1355 = vand.u32 %v1354, 4294901760
    %1356 = vmatpush1.msra.mxu0 %v1355
    %v1357 = vand.u32 %v805, 4294901760
    %v1358 = vsub.f32 %v805, %v1357
    %v1359 = vand.u32 %v1358, 4294901760
    %v1360 = vsub.f32 %v1358, %v1359
    %v1361 = vand.u32 %v1360, 4294901760
    %1362 = vmatprep.subr.mxu0 %v1361
    %v1363 = vand.u32 %v804, 4294901760
    %v1364 = vsub.f32 %v804, %v1363
    %v1365 = vand.u32 %v1364, 4294901760
    %v1366 = vsub.f32 %v1364, %v1365
    %v1367 = vand.u32 %v1366, 4294901760
    %1368 = vmatpush1.msra.mxu0 %v1367
    %v1369 = vand.u32 %v767, 4294901760
    %v1370 = vsub.f32 %v767, %v1369
    %v1371 = vand.u32 %v1370, 4294901760
    %v1372 = vsub.f32 %v1370, %v1371
    %v1373 = vand.u32 %v1372, 4294901760
    %1374 = vmatprep.subr.mxu0 %v1373
    %v1375 = vand.u32 %v766, 4294901760
    %v1376 = vsub.f32 %v766, %v1375
    %v1377 = vand.u32 %v1376, 4294901760
    %v1378 = vsub.f32 %v1376, %v1377
    %v1379 = vand.u32 %v1378, 4294901760
    %1380 = vmatpush1.msra.mxu0 %v1379
    %v1381 = vand.u32 %v765, 4294901760
    %v1382 = vsub.f32 %v765, %v1381
    %v1383 = vand.u32 %v1382, 4294901760
    %v1384 = vsub.f32 %v1382, %v1383
    %v1385 = vand.u32 %v1384, 4294901760
    %1386 = vmatprep.subr.mxu0 %v1385
    %v1387 = vand.u32 %v764, 4294901760
    %v1388 = vsub.f32 %v764, %v1387
    %v1389 = vand.u32 %v1388, 4294901760
    %v1390 = vsub.f32 %v1388, %v1389
    %v1391 = vand.u32 %v1390, 4294901760
    %1392 = vmatpush1.msra.mxu0 %v1391
    %v1393 = vand.u32 %v763, 4294901760
    %v1394 = vsub.f32 %v763, %v1393
    %v1395 = vand.u32 %v1394, 4294901760
    %v1396 = vsub.f32 %v1394, %v1395
    %v1397 = vand.u32 %v1396, 4294901760
    %1398 = vmatprep.subr.mxu0 %v1397
    %v1399 = vand.u32 %v762, 4294901760
    %v1400 = vsub.f32 %v762, %v1399
    %v1401 = vand.u32 %v1400, 4294901760
    %v1402 = vsub.f32 %v1400, %v1401
    %v1403 = vand.u32 %v1402, 4294901760
    %1404 = vmatpush1.msra.mxu0 %v1403
    %v1405 = vand.u32 %v761, 4294901760
    %v1406 = vsub.f32 %v761, %v1405
    %v1407 = vand.u32 %v1406, 4294901760
    %v1408 = vsub.f32 %v1406, %v1407
    %v1409 = vand.u32 %v1408, 4294901760
    %1410 = vmatprep.subr.mxu0 %v1409
    %v1411 = vand.u32 %v760, 4294901760
    %v1412 = vsub.f32 %v760, %v1411
    %v1413 = vand.u32 %v1412, 4294901760
    %v1414 = vsub.f32 %v1412, %v1413
    %v1415 = vand.u32 %v1414, 4294901760
    %1416 = vmatpush1.msra.mxu0 %v1415
    %v1417 = vand.u32 %v1031, 4294901760
    %v1418 = vsub.f32 %v1031, %v1417
    %v1419 = vand.u32 %v1418, 4294901760
    %v1420 = vsub.f32 %v1418, %v1419
    %v1421 = vand.u32 %v1420, 4294901760
    %1422 = vmatprep.subr.mxu0 %v1421
    %v1423 = vand.u32 %v1030, 4294901760
    %v1424 = vsub.f32 %v1030, %v1423
    %v1425 = vand.u32 %v1424, 4294901760
    %v1426 = vsub.f32 %v1424, %v1425
    %v1427 = vand.u32 %v1426, 4294901760
    %1428 = vmatpush2.msra.mxu0 %v1427
    %v1429 = vand.u32 %v1029, 4294901760
    %v1430 = vsub.f32 %v1029, %v1429
    %v1431 = vand.u32 %v1430, 4294901760
    %v1432 = vsub.f32 %v1430, %v1431
    %v1433 = vand.u32 %v1432, 4294901760
    %1434 = vmatprep.subr.mxu0 %v1433
    %v1435 = vand.u32 %v1028, 4294901760
    %v1436 = vsub.f32 %v1028, %v1435
    %v1437 = vand.u32 %v1436, 4294901760
    %v1438 = vsub.f32 %v1436, %v1437
    %v1439 = vand.u32 %v1438, 4294901760
    %1440 = vmatpush2.msra.mxu0 %v1439
    %v1441 = vand.u32 %v1027, 4294901760
    %v1442 = vsub.f32 %v1027, %v1441
    %v1443 = vand.u32 %v1442, 4294901760
    %v1444 = vsub.f32 %v1442, %v1443
    %v1445 = vand.u32 %v1444, 4294901760
    %1446 = vmatprep.subr.mxu0 %v1445
    %v1447 = vand.u32 %v1026, 4294901760
    %v1448 = vsub.f32 %v1026, %v1447
    %v1449 = vand.u32 %v1448, 4294901760
    %v1450 = vsub.f32 %v1448, %v1449
    %v1451 = vand.u32 %v1450, 4294901760
    %1452 = vmatpush2.msra.mxu0 %v1451
    %v1453 = vand.u32 %v1025, 4294901760
    %v1454 = vsub.f32 %v1025, %v1453
    %v1455 = vand.u32 %v1454, 4294901760
    %v1456 = vsub.f32 %v1454, %v1455
    %v1457 = vand.u32 %v1456, 4294901760
    %1458 = vmatprep.subr.mxu0 %v1457
    %v1459 = vand.u32 %v1024, 4294901760
    %v1460 = vsub.f32 %v1024, %v1459
    %v1461 = vand.u32 %v1460, 4294901760
    %v1462 = vsub.f32 %v1460, %v1461
    %v1463 = vand.u32 %v1462, 4294901760
    %1464 = vmatpush2.msra.mxu0 %v1463
    %v1465 = vand.u32 %v987, 4294901760
    %v1466 = vsub.f32 %v987, %v1465
    %v1467 = vand.u32 %v1466, 4294901760
    %v1468 = vsub.f32 %v1466, %v1467
    %v1469 = vand.u32 %v1468, 4294901760
    %1470 = vmatprep.subr.mxu0 %v1469
    %v1471 = vand.u32 %v986, 4294901760
    %v1472 = vsub.f32 %v986, %v1471
    %v1473 = vand.u32 %v1472, 4294901760
    %v1474 = vsub.f32 %v1472, %v1473
    %v1475 = vand.u32 %v1474, 4294901760
    %1476 = vmatpush2.msra.mxu0 %v1475
    %v1477 = vand.u32 %v985, 4294901760
    %v1478 = vsub.f32 %v985, %v1477
    %v1479 = vand.u32 %v1478, 4294901760
    %v1480 = vsub.f32 %v1478, %v1479
    %v1481 = vand.u32 %v1480, 4294901760
    %1482 = vmatprep.subr.mxu0 %v1481
    %v1483 = vand.u32 %v984, 4294901760
    %v1484 = vsub.f32 %v984, %v1483
    %v1485 = vand.u32 %v1484, 4294901760
    %v1486 = vsub.f32 %v1484, %v1485
    %v1487 = vand.u32 %v1486, 4294901760
    %1488 = vmatpush2.msra.mxu0 %v1487
    %v1489 = vand.u32 %v983, 4294901760
    %v1490 = vsub.f32 %v983, %v1489
    %v1491 = vand.u32 %v1490, 4294901760
    %v1492 = vsub.f32 %v1490, %v1491
    %v1493 = vand.u32 %v1492, 4294901760
    %1494 = vmatprep.subr.mxu0 %v1493
    %v1495 = vand.u32 %v982, 4294901760
    %v1496 = vsub.f32 %v982, %v1495
    %v1497 = vand.u32 %v1496, 4294901760
    %v1498 = vsub.f32 %v1496, %v1497
    %v1499 = vand.u32 %v1498, 4294901760
    %1500 = vmatpush2.msra.mxu0 %v1499
    %v1501 = vand.u32 %v981, 4294901760
    %v1502 = vsub.f32 %v981, %v1501
    %v1503 = vand.u32 %v1502, 4294901760
    %v1504 = vsub.f32 %v1502, %v1503
    %v1505 = vand.u32 %v1504, 4294901760
    %1506 = vmatprep.subr.mxu0 %v1505
    %v1507 = vand.u32 %v980, 4294901760
    %v1508 = vsub.f32 %v980, %v1507
    %v1509 = vand.u32 %v1508, 4294901760
    %v1510 = vsub.f32 %v1508, %v1509
    %v1511 = vand.u32 %v1510, 4294901760
    %1512 = vmatpush2.msra.mxu0 %v1511
    %v1513 = vand.u32 %v943, 4294901760
    %v1514 = vsub.f32 %v943, %v1513
    %v1515 = vand.u32 %v1514, 4294901760
    %v1516 = vsub.f32 %v1514, %v1515
    %v1517 = vand.u32 %v1516, 4294901760
    %1518 = vmatprep.subr.mxu0 %v1517
    %v1519 = vand.u32 %v942, 4294901760
    %v1520 = vsub.f32 %v942, %v1519
    %v1521 = vand.u32 %v1520, 4294901760
    %v1522 = vsub.f32 %v1520, %v1521
    %v1523 = vand.u32 %v1522, 4294901760
    %1524 = vmatpush2.msra.mxu0 %v1523
    %v1525 = vand.u32 %v941, 4294901760
    %v1526 = vsub.f32 %v941, %v1525
    %v1527 = vand.u32 %v1526, 4294901760
    %v1528 = vsub.f32 %v1526, %v1527
    %v1529 = vand.u32 %v1528, 4294901760
    %1530 = vmatprep.subr.mxu0 %v1529
    %v1531 = vand.u32 %v940, 4294901760
    %v1532 = vsub.f32 %v940, %v1531
    %v1533 = vand.u32 %v1532, 4294901760
    %v1534 = vsub.f32 %v1532, %v1533
    %v1535 = vand.u32 %v1534, 4294901760
    %1536 = vmatpush2.msra.mxu0 %v1535
    %v1537 = vand.u32 %v939, 4294901760
    %v1538 = vsub.f32 %v939, %v1537
    %v1539 = vand.u32 %v1538, 4294901760
    %v1540 = vsub.f32 %v1538, %v1539
    %v1541 = vand.u32 %v1540, 4294901760
    %1542 = vmatprep.subr.mxu0 %v1541
    %v1543 = vand.u32 %v938, 4294901760
    %v1544 = vsub.f32 %v938, %v1543
    %v1545 = vand.u32 %v1544, 4294901760
    %v1546 = vsub.f32 %v1544, %v1545
    %v1547 = vand.u32 %v1546, 4294901760
    %1548 = vmatpush2.msra.mxu0 %v1547
    %v1549 = vand.u32 %v937, 4294901760
    %v1550 = vsub.f32 %v937, %v1549
    %v1551 = vand.u32 %v1550, 4294901760
    %v1552 = vsub.f32 %v1550, %v1551
    %v1553 = vand.u32 %v1552, 4294901760
    %1554 = vmatprep.subr.mxu0 %v1553
    %v1555 = vand.u32 %v936, 4294901760
    %v1556 = vsub.f32 %v936, %v1555
    %v1557 = vand.u32 %v1556, 4294901760
    %v1558 = vsub.f32 %v1556, %v1557
    %v1559 = vand.u32 %v1558, 4294901760
    %1560 = vmatpush2.msra.mxu0 %v1559
    %v1561 = vand.u32 %v721, 4294901760
    %v1562 = vsub.f32 %v721, %v1561
    %v1563 = vand.u32 %v1562, 4294901760
    %v1564 = vsub.f32 %v1562, %v1563
    %v1565 = vand.u32 %v1564, 4294901760
    %1566 = vmatprep.subr.mxu0 %v1565
    %v1567 = vand.u32 %v720, 4294901760
    %v1568 = vsub.f32 %v720, %v1567
    %v1569 = vand.u32 %v1568, 4294901760
    %v1570 = vsub.f32 %v1568, %v1569
    %v1571 = vand.u32 %v1570, 4294901760
    %1572 = vmatpush2.msra.mxu0 %v1571
    %v1573 = vand.u32 %v719, 4294901760
    %v1574 = vsub.f32 %v719, %v1573
    %v1575 = vand.u32 %v1574, 4294901760
    %v1576 = vsub.f32 %v1574, %v1575
    %v1577 = vand.u32 %v1576, 4294901760
    %1578 = vmatprep.subr.mxu0 %v1577
    %v1579 = vand.u32 %v718, 4294901760
    %v1580 = vsub.f32 %v718, %v1579
    %v1581 = vand.u32 %v1580, 4294901760
    %v1582 = vsub.f32 %v1580, %v1581
    %v1583 = vand.u32 %v1582, 4294901760
    %1584 = vmatpush2.msra.mxu0 %v1583
    %v1585 = vand.u32 %v717, 4294901760
    %v1586 = vsub.f32 %v717, %v1585
    %v1587 = vand.u32 %v1586, 4294901760
    %v1588 = vsub.f32 %v1586, %v1587
    %v1589 = vand.u32 %v1588, 4294901760
    %1590 = vmatprep.subr.mxu0 %v1589
    %v1591 = vand.u32 %v716, 4294901760
    %v1592 = vsub.f32 %v716, %v1591
    %v1593 = vand.u32 %v1592, 4294901760
    %v1594 = vsub.f32 %v1592, %v1593
    %v1595 = vand.u32 %v1594, 4294901760
    %1596 = vmatpush2.msra.mxu0 %v1595
    %v1597 = vand.u32 %v715, 4294901760
    %v1598 = vsub.f32 %v715, %v1597
    %v1599 = vand.u32 %v1598, 4294901760
    %v1600 = vsub.f32 %v1598, %v1599
    %v1601 = vand.u32 %v1600, 4294901760
    %1602 = vmatprep.subr.mxu0 %v1601
    %v1603 = vand.u32 %v714, 4294901760
    %v1604 = vsub.f32 %v714, %v1603
    %v1605 = vand.u32 %v1604, 4294901760
    %v1606 = vsub.f32 %v1604, %v1605
    %v1607 = vand.u32 %v1606, 4294901760
    %1608 = vmatpush2.msra.mxu0 %v1607
    %v1609 = vand.u32 %v39, 4294901760
    %1610 = vmatprep.mubr.f32.mxu0 %v1609
    %v1611 = vand.u32 %v38, 4294901760
    %1612 = vmatmul.mubr.f32.gmra.mxu0 %v1611
    %v1613 = vpop.f32.mrf.mxu0
    %v1614 = vadd.f32 %v1221, %v1613
    %v1615 = vpop.f32.mrf.mxu0
    %v1616 = vadd.f32 %v1223, %v1615
    %1617 = vdwg.mxu0
    %v1618 = vand.u32 %v899, 4294901760
    %v1619 = vsub.f32 %v899, %v1618
    %1620 = vmatprep.subr.mxu0 %v1619
    %v1621 = vand.u32 %v898, 4294901760
    %v1622 = vsub.f32 %v898, %v1621
    %1623 = vmatpush1.msra.mxu0 %v1622
    %v1624 = vand.u32 %v897, 4294901760
    %v1625 = vsub.f32 %v897, %v1624
    %1626 = vmatprep.subr.mxu0 %v1625
    %v1627 = vand.u32 %v896, 4294901760
    %v1628 = vsub.f32 %v896, %v1627
    %1629 = vmatpush1.msra.mxu0 %v1628
    %v1630 = vand.u32 %v895, 4294901760
    %v1631 = vsub.f32 %v895, %v1630
    %1632 = vmatprep.subr.mxu0 %v1631
    %v1633 = vand.u32 %v894, 4294901760
    %v1634 = vsub.f32 %v894, %v1633
    %1635 = vmatpush1.msra.mxu0 %v1634
    %v1636 = vand.u32 %v893, 4294901760
    %v1637 = vsub.f32 %v893, %v1636
    %1638 = vmatprep.subr.mxu0 %v1637
    %v1639 = vand.u32 %v892, 4294901760
    %v1640 = vsub.f32 %v892, %v1639
    %1641 = vmatpush1.msra.mxu0 %v1640
    %v1642 = vand.u32 %v855, 4294901760
    %v1643 = vsub.f32 %v855, %v1642
    %1644 = vmatprep.subr.mxu0 %v1643
    %v1645 = vand.u32 %v854, 4294901760
    %v1646 = vsub.f32 %v854, %v1645
    %1647 = vmatpush1.msra.mxu0 %v1646
    %v1648 = vand.u32 %v853, 4294901760
    %v1649 = vsub.f32 %v853, %v1648
    %1650 = vmatprep.subr.mxu0 %v1649
    %v1651 = vand.u32 %v852, 4294901760
    %v1652 = vsub.f32 %v852, %v1651
    %1653 = vmatpush1.msra.mxu0 %v1652
    %v1654 = vand.u32 %v851, 4294901760
    %v1655 = vsub.f32 %v851, %v1654
    %1656 = vmatprep.subr.mxu0 %v1655
    %v1657 = vand.u32 %v850, 4294901760
    %v1658 = vsub.f32 %v850, %v1657
    %1659 = vmatpush1.msra.mxu0 %v1658
    %v1660 = vand.u32 %v849, 4294901760
    %v1661 = vsub.f32 %v849, %v1660
    %1662 = vmatprep.subr.mxu0 %v1661
    %v1663 = vand.u32 %v848, 4294901760
    %v1664 = vsub.f32 %v848, %v1663
    %1665 = vmatpush1.msra.mxu0 %v1664
    %v1666 = vand.u32 %v811, 4294901760
    %v1667 = vsub.f32 %v811, %v1666
    %1668 = vmatprep.subr.mxu0 %v1667
    %v1669 = vand.u32 %v810, 4294901760
    %v1670 = vsub.f32 %v810, %v1669
    %1671 = vmatpush1.msra.mxu0 %v1670
    %v1672 = vand.u32 %v809, 4294901760
    %v1673 = vsub.f32 %v809, %v1672
    %1674 = vmatprep.subr.mxu0 %v1673
    %v1675 = vand.u32 %v808, 4294901760
    %v1676 = vsub.f32 %v808, %v1675
    %1677 = vmatpush1.msra.mxu0 %v1676
    %v1678 = vand.u32 %v807, 4294901760
    %v1679 = vsub.f32 %v807, %v1678
    %1680 = vmatprep.subr.mxu0 %v1679
    %v1681 = vand.u32 %v806, 4294901760
    %v1682 = vsub.f32 %v806, %v1681
    %1683 = vmatpush1.msra.mxu0 %v1682
    %v1684 = vand.u32 %v805, 4294901760
    %v1685 = vsub.f32 %v805, %v1684
    %1686 = vmatprep.subr.mxu0 %v1685
    %v1687 = vand.u32 %v804, 4294901760
    %v1688 = vsub.f32 %v804, %v1687
    %1689 = vmatpush1.msra.mxu0 %v1688
    %v1690 = vand.u32 %v767, 4294901760
    %v1691 = vsub.f32 %v767, %v1690
    %1692 = vmatprep.subr.mxu0 %v1691
    %v1693 = vand.u32 %v766, 4294901760
    %v1694 = vsub.f32 %v766, %v1693
    %1695 = vmatpush1.msra.mxu0 %v1694
    %v1696 = vand.u32 %v765, 4294901760
    %v1697 = vsub.f32 %v765, %v1696
    %1698 = vmatprep.subr.mxu0 %v1697
    %v1699 = vand.u32 %v764, 4294901760
    %v1700 = vsub.f32 %v764, %v1699
    %1701 = vmatpush1.msra.mxu0 %v1700
    %v1702 = vand.u32 %v763, 4294901760
    %v1703 = vsub.f32 %v763, %v1702
    %1704 = vmatprep.subr.mxu0 %v1703
    %v1705 = vand.u32 %v762, 4294901760
    %v1706 = vsub.f32 %v762, %v1705
    %1707 = vmatpush1.msra.mxu0 %v1706
    %v1708 = vand.u32 %v761, 4294901760
    %v1709 = vsub.f32 %v761, %v1708
    %1710 = vmatprep.subr.mxu0 %v1709
    %v1711 = vand.u32 %v760, 4294901760
    %v1712 = vsub.f32 %v760, %v1711
    %1713 = vmatpush1.msra.mxu0 %v1712
    %v1714 = vand.u32 %v1031, 4294901760
    %v1715 = vsub.f32 %v1031, %v1714
    %1716 = vmatprep.subr.mxu0 %v1715
    %v1717 = vand.u32 %v1030, 4294901760
    %v1718 = vsub.f32 %v1030, %v1717
    %1719 = vmatpush2.msra.mxu0 %v1718
    %v1720 = vand.u32 %v1029, 4294901760
    %v1721 = vsub.f32 %v1029, %v1720
    %1722 = vmatprep.subr.mxu0 %v1721
    %v1723 = vand.u32 %v1028, 4294901760
    %v1724 = vsub.f32 %v1028, %v1723
    %1725 = vmatpush2.msra.mxu0 %v1724
    %v1726 = vand.u32 %v1027, 4294901760
    %v1727 = vsub.f32 %v1027, %v1726
    %1728 = vmatprep.subr.mxu0 %v1727
    %v1729 = vand.u32 %v1026, 4294901760
    %v1730 = vsub.f32 %v1026, %v1729
    %1731 = vmatpush2.msra.mxu0 %v1730
    %v1732 = vand.u32 %v1025, 4294901760
    %v1733 = vsub.f32 %v1025, %v1732
    %1734 = vmatprep.subr.mxu0 %v1733
    %v1735 = vand.u32 %v1024, 4294901760
    %v1736 = vsub.f32 %v1024, %v1735
    %1737 = vmatpush2.msra.mxu0 %v1736
    %v1738 = vand.u32 %v987, 4294901760
    %v1739 = vsub.f32 %v987, %v1738
    %1740 = vmatprep.subr.mxu0 %v1739
    %v1741 = vand.u32 %v986, 4294901760
    %v1742 = vsub.f32 %v986, %v1741
    %1743 = vmatpush2.msra.mxu0 %v1742
    %v1744 = vand.u32 %v985, 4294901760
    %v1745 = vsub.f32 %v985, %v1744
    %1746 = vmatprep.subr.mxu0 %v1745
    %v1747 = vand.u32 %v984, 4294901760
    %v1748 = vsub.f32 %v984, %v1747
    %1749 = vmatpush2.msra.mxu0 %v1748
    %v1750 = vand.u32 %v983, 4294901760
    %v1751 = vsub.f32 %v983, %v1750
    %1752 = vmatprep.subr.mxu0 %v1751
    %v1753 = vand.u32 %v982, 4294901760
    %v1754 = vsub.f32 %v982, %v1753
    %1755 = vmatpush2.msra.mxu0 %v1754
    %v1756 = vand.u32 %v981, 4294901760
    %v1757 = vsub.f32 %v981, %v1756
    %1758 = vmatprep.subr.mxu0 %v1757
    %v1759 = vand.u32 %v980, 4294901760
    %v1760 = vsub.f32 %v980, %v1759
    %1761 = vmatpush2.msra.mxu0 %v1760
    %v1762 = vand.u32 %v943, 4294901760
    %v1763 = vsub.f32 %v943, %v1762
    %1764 = vmatprep.subr.mxu0 %v1763
    %v1765 = vand.u32 %v942, 4294901760
    %v1766 = vsub.f32 %v942, %v1765
    %1767 = vmatpush2.msra.mxu0 %v1766
    %v1768 = vand.u32 %v941, 4294901760
    %v1769 = vsub.f32 %v941, %v1768
    %1770 = vmatprep.subr.mxu0 %v1769
    %v1771 = vand.u32 %v940, 4294901760
    %v1772 = vsub.f32 %v940, %v1771
    %1773 = vmatpush2.msra.mxu0 %v1772
    %v1774 = vand.u32 %v939, 4294901760
    %v1775 = vsub.f32 %v939, %v1774
    %1776 = vmatprep.subr.mxu0 %v1775
    %v1777 = vand.u32 %v938, 4294901760
    %v1778 = vsub.f32 %v938, %v1777
    %1779 = vmatpush2.msra.mxu0 %v1778
    %v1780 = vand.u32 %v937, 4294901760
    %v1781 = vsub.f32 %v937, %v1780
    %1782 = vmatprep.subr.mxu0 %v1781
    %v1783 = vand.u32 %v936, 4294901760
    %v1784 = vsub.f32 %v936, %v1783
    %1785 = vmatpush2.msra.mxu0 %v1784
    %v1786 = vand.u32 %v721, 4294901760
    %v1787 = vsub.f32 %v721, %v1786
    %1788 = vmatprep.subr.mxu0 %v1787
    %v1789 = vand.u32 %v720, 4294901760
    %v1790 = vsub.f32 %v720, %v1789
    %1791 = vmatpush2.msra.mxu0 %v1790
    %v1792 = vand.u32 %v719, 4294901760
    %v1793 = vsub.f32 %v719, %v1792
    %1794 = vmatprep.subr.mxu0 %v1793
    %v1795 = vand.u32 %v718, 4294901760
    %v1796 = vsub.f32 %v718, %v1795
    %1797 = vmatpush2.msra.mxu0 %v1796
    %v1798 = vand.u32 %v717, 4294901760
    %v1799 = vsub.f32 %v717, %v1798
    %1800 = vmatprep.subr.mxu0 %v1799
    %v1801 = vand.u32 %v716, 4294901760
    %v1802 = vsub.f32 %v716, %v1801
    %1803 = vmatpush2.msra.mxu0 %v1802
    %v1804 = vand.u32 %v715, 4294901760
    %v1805 = vsub.f32 %v715, %v1804
    %1806 = vmatprep.subr.mxu0 %v1805
    %v1807 = vand.u32 %v714, 4294901760
    %v1808 = vsub.f32 %v714, %v1807
    %1809 = vmatpush2.msra.mxu0 %v1808
    %v1810 = vand.u32 %v39, 4294901760
    %v1811 = vsub.f32 %v39, %v1810
    %1812 = vmatprep.mubr.f32.mxu0 %v1811
    %v1813 = vand.u32 %v38, 4294901760
    %v1814 = vsub.f32 %v38, %v1813
    %1815 = vmatmul.mubr.f32.gmra.mxu0 %v1814
    %v1816 = vpop.f32.mrf.mxu0
    %v1817 = vadd.f32 %v1614, %v1816
    %v1818 = vpop.f32.mrf.mxu0
    %v1819 = vadd.f32 %v1616, %v1818
    %1820 = vdwg.mxu0
    %v1821 = vand.u32 %v899, 4294901760
    %1822 = vmatprep.subr.mxu0 %v1821
    %v1823 = vand.u32 %v898, 4294901760
    %1824 = vmatpush1.msra.mxu0 %v1823
    %v1825 = vand.u32 %v897, 4294901760
    %1826 = vmatprep.subr.mxu0 %v1825
    %v1827 = vand.u32 %v896, 4294901760
    %1828 = vmatpush1.msra.mxu0 %v1827
    %v1829 = vand.u32 %v895, 4294901760
    %1830 = vmatprep.subr.mxu0 %v1829
    %v1831 = vand.u32 %v894, 4294901760
    %1832 = vmatpush1.msra.mxu0 %v1831
    %v1833 = vand.u32 %v893, 4294901760
    %1834 = vmatprep.subr.mxu0 %v1833
    %v1835 = vand.u32 %v892, 4294901760
    %1836 = vmatpush1.msra.mxu0 %v1835
    %v1837 = vand.u32 %v855, 4294901760
    %1838 = vmatprep.subr.mxu0 %v1837
    %v1839 = vand.u32 %v854, 4294901760
    %1840 = vmatpush1.msra.mxu0 %v1839
    %v1841 = vand.u32 %v853, 4294901760
    %1842 = vmatprep.subr.mxu0 %v1841
    %v1843 = vand.u32 %v852, 4294901760
    %1844 = vmatpush1.msra.mxu0 %v1843
    %v1845 = vand.u32 %v851, 4294901760
    %1846 = vmatprep.subr.mxu0 %v1845
    %v1847 = vand.u32 %v850, 4294901760
    %1848 = vmatpush1.msra.mxu0 %v1847
    %v1849 = vand.u32 %v849, 4294901760
    %1850 = vmatprep.subr.mxu0 %v1849
    %v1851 = vand.u32 %v848, 4294901760
    %1852 = vmatpush1.msra.mxu0 %v1851
    %v1853 = vand.u32 %v811, 4294901760
    %1854 = vmatprep.subr.mxu0 %v1853
    %v1855 = vand.u32 %v810, 4294901760
    %1856 = vmatpush1.msra.mxu0 %v1855
    %v1857 = vand.u32 %v809, 4294901760
    %1858 = vmatprep.subr.mxu0 %v1857
    %v1859 = vand.u32 %v808, 4294901760
    %1860 = vmatpush1.msra.mxu0 %v1859
    %v1861 = vand.u32 %v807, 4294901760
    %1862 = vmatprep.subr.mxu0 %v1861
    %v1863 = vand.u32 %v806, 4294901760
    %1864 = vmatpush1.msra.mxu0 %v1863
    %v1865 = vand.u32 %v805, 4294901760
    %1866 = vmatprep.subr.mxu0 %v1865
    %v1867 = vand.u32 %v804, 4294901760
    %1868 = vmatpush1.msra.mxu0 %v1867
    %v1869 = vand.u32 %v767, 4294901760
    %1870 = vmatprep.subr.mxu0 %v1869
    %v1871 = vand.u32 %v766, 4294901760
    %1872 = vmatpush1.msra.mxu0 %v1871
    %v1873 = vand.u32 %v765, 4294901760
    %1874 = vmatprep.subr.mxu0 %v1873
    %v1875 = vand.u32 %v764, 4294901760
    %1876 = vmatpush1.msra.mxu0 %v1875
    %v1877 = vand.u32 %v763, 4294901760
    %1878 = vmatprep.subr.mxu0 %v1877
    %v1879 = vand.u32 %v762, 4294901760
    %1880 = vmatpush1.msra.mxu0 %v1879
    %v1881 = vand.u32 %v761, 4294901760
    %1882 = vmatprep.subr.mxu0 %v1881
    %v1883 = vand.u32 %v760, 4294901760
    %1884 = vmatpush1.msra.mxu0 %v1883
    %v1885 = vand.u32 %v1031, 4294901760
    %1886 = vmatprep.subr.mxu0 %v1885
    %v1887 = vand.u32 %v1030, 4294901760
    %1888 = vmatpush2.msra.mxu0 %v1887
    %v1889 = vand.u32 %v1029, 4294901760
    %1890 = vmatprep.subr.mxu0 %v1889
    %v1891 = vand.u32 %v1028, 4294901760
    %1892 = vmatpush2.msra.mxu0 %v1891
    %v1893 = vand.u32 %v1027, 4294901760
    %1894 = vmatprep.subr.mxu0 %v1893
    %v1895 = vand.u32 %v1026, 4294901760
    %1896 = vmatpush2.msra.mxu0 %v1895
    %v1897 = vand.u32 %v1025, 4294901760
    %1898 = vmatprep.subr.mxu0 %v1897
    %v1899 = vand.u32 %v1024, 4294901760
    %1900 = vmatpush2.msra.mxu0 %v1899
    %v1901 = vand.u32 %v987, 4294901760
    %1902 = vmatprep.subr.mxu0 %v1901
    %v1903 = vand.u32 %v986, 4294901760
    %1904 = vmatpush2.msra.mxu0 %v1903
    %v1905 = vand.u32 %v985, 4294901760
    %1906 = vmatprep.subr.mxu0 %v1905
    %v1907 = vand.u32 %v984, 4294901760
    %1908 = vmatpush2.msra.mxu0 %v1907
    %v1909 = vand.u32 %v983, 4294901760
    %1910 = vmatprep.subr.mxu0 %v1909
    %v1911 = vand.u32 %v982, 4294901760
    %1912 = vmatpush2.msra.mxu0 %v1911
    %v1913 = vand.u32 %v981, 4294901760
    %1914 = vmatprep.subr.mxu0 %v1913
    %v1915 = vand.u32 %v980, 4294901760
    %1916 = vmatpush2.msra.mxu0 %v1915
    %v1917 = vand.u32 %v943, 4294901760
    %1918 = vmatprep.subr.mxu0 %v1917
    %v1919 = vand.u32 %v942, 4294901760
    %1920 = vmatpush2.msra.mxu0 %v1919
    %v1921 = vand.u32 %v941, 4294901760
    %1922 = vmatprep.subr.mxu0 %v1921
    %v1923 = vand.u32 %v940, 4294901760
    %1924 = vmatpush2.msra.mxu0 %v1923
    %v1925 = vand.u32 %v939, 4294901760
    %1926 = vmatprep.subr.mxu0 %v1925
    %v1927 = vand.u32 %v938, 4294901760
    %1928 = vmatpush2.msra.mxu0 %v1927
    %v1929 = vand.u32 %v937, 4294901760
    %1930 = vmatprep.subr.mxu0 %v1929
    %v1931 = vand.u32 %v936, 4294901760
    %1932 = vmatpush2.msra.mxu0 %v1931
    %v1933 = vand.u32 %v721, 4294901760
    %1934 = vmatprep.subr.mxu0 %v1933
    %v1935 = vand.u32 %v720, 4294901760
    %1936 = vmatpush2.msra.mxu0 %v1935
    %v1937 = vand.u32 %v719, 4294901760
    %1938 = vmatprep.subr.mxu0 %v1937
    %v1939 = vand.u32 %v718, 4294901760
    %1940 = vmatpush2.msra.mxu0 %v1939
    %v1941 = vand.u32 %v717, 4294901760
    %1942 = vmatprep.subr.mxu0 %v1941
    %v1943 = vand.u32 %v716, 4294901760
    %1944 = vmatpush2.msra.mxu0 %v1943
    %v1945 = vand.u32 %v715, 4294901760
    %1946 = vmatprep.subr.mxu0 %v1945
    %v1947 = vand.u32 %v714, 4294901760
    %1948 = vmatpush2.msra.mxu0 %v1947
    %v1949 = vand.u32 %v39, 4294901760
    %v1950 = vsub.f32 %v39, %v1949
    %v1951 = vand.u32 %v1950, 4294901760
    %1952 = vmatprep.mubr.f32.mxu0 %v1951
    %v1953 = vand.u32 %v38, 4294901760
    %v1954 = vsub.f32 %v38, %v1953
    %v1955 = vand.u32 %v1954, 4294901760
    %1956 = vmatmul.mubr.f32.gmra.mxu0 %v1955
    %v1957 = vpop.f32.mrf.mxu0
    %v1958 = vadd.f32 %v1817, %v1957
    %v1959 = vpop.f32.mrf.mxu0
    %v1960 = vadd.f32 %v1819, %v1959
    %1961 = vdwg.mxu0
    %v1962 = vand.u32 %v899, 4294901760
    %v1963 = vsub.f32 %v899, %v1962
    %v1964 = vand.u32 %v1963, 4294901760
    %1965 = vmatprep.subr.mxu0 %v1964
    %v1966 = vand.u32 %v898, 4294901760
    %v1967 = vsub.f32 %v898, %v1966
    %v1968 = vand.u32 %v1967, 4294901760
    %1969 = vmatpush1.msra.mxu0 %v1968
    %v1970 = vand.u32 %v897, 4294901760
    %v1971 = vsub.f32 %v897, %v1970
    %v1972 = vand.u32 %v1971, 4294901760
    %1973 = vmatprep.subr.mxu0 %v1972
    %v1974 = vand.u32 %v896, 4294901760
    %v1975 = vsub.f32 %v896, %v1974
    %v1976 = vand.u32 %v1975, 4294901760
    %1977 = vmatpush1.msra.mxu0 %v1976
    %v1978 = vand.u32 %v895, 4294901760
    %v1979 = vsub.f32 %v895, %v1978
    %v1980 = vand.u32 %v1979, 4294901760
    %1981 = vmatprep.subr.mxu0 %v1980
    %v1982 = vand.u32 %v894, 4294901760
    %v1983 = vsub.f32 %v894, %v1982
    %v1984 = vand.u32 %v1983, 4294901760
    %1985 = vmatpush1.msra.mxu0 %v1984
    %v1986 = vand.u32 %v893, 4294901760
    %v1987 = vsub.f32 %v893, %v1986
    %v1988 = vand.u32 %v1987, 4294901760
    %1989 = vmatprep.subr.mxu0 %v1988
    %v1990 = vand.u32 %v892, 4294901760
    %v1991 = vsub.f32 %v892, %v1990
    %v1992 = vand.u32 %v1991, 4294901760
    %1993 = vmatpush1.msra.mxu0 %v1992
    %v1994 = vand.u32 %v855, 4294901760
    %v1995 = vsub.f32 %v855, %v1994
    %v1996 = vand.u32 %v1995, 4294901760
    %1997 = vmatprep.subr.mxu0 %v1996
    %v1998 = vand.u32 %v854, 4294901760
    %v1999 = vsub.f32 %v854, %v1998
    %v2000 = vand.u32 %v1999, 4294901760
    %2001 = vmatpush1.msra.mxu0 %v2000
    %v2002 = vand.u32 %v853, 4294901760
    %v2003 = vsub.f32 %v853, %v2002
    %v2004 = vand.u32 %v2003, 4294901760
    %2005 = vmatprep.subr.mxu0 %v2004
    %v2006 = vand.u32 %v852, 4294901760
    %v2007 = vsub.f32 %v852, %v2006
    %v2008 = vand.u32 %v2007, 4294901760
    %2009 = vmatpush1.msra.mxu0 %v2008
    %v2010 = vand.u32 %v851, 4294901760
    %v2011 = vsub.f32 %v851, %v2010
    %v2012 = vand.u32 %v2011, 4294901760
    %2013 = vmatprep.subr.mxu0 %v2012
    %v2014 = vand.u32 %v850, 4294901760
    %v2015 = vsub.f32 %v850, %v2014
    %v2016 = vand.u32 %v2015, 4294901760
    %2017 = vmatpush1.msra.mxu0 %v2016
    %v2018 = vand.u32 %v849, 4294901760
    %v2019 = vsub.f32 %v849, %v2018
    %v2020 = vand.u32 %v2019, 4294901760
    %2021 = vmatprep.subr.mxu0 %v2020
    %v2022 = vand.u32 %v848, 4294901760
    %v2023 = vsub.f32 %v848, %v2022
    %v2024 = vand.u32 %v2023, 4294901760
    %2025 = vmatpush1.msra.mxu0 %v2024
    %v2026 = vand.u32 %v811, 4294901760
    %v2027 = vsub.f32 %v811, %v2026
    %v2028 = vand.u32 %v2027, 4294901760
    %2029 = vmatprep.subr.mxu0 %v2028
    %v2030 = vand.u32 %v810, 4294901760
    %v2031 = vsub.f32 %v810, %v2030
    %v2032 = vand.u32 %v2031, 4294901760
    %2033 = vmatpush1.msra.mxu0 %v2032
    %v2034 = vand.u32 %v809, 4294901760
    %v2035 = vsub.f32 %v809, %v2034
    %v2036 = vand.u32 %v2035, 4294901760
    %2037 = vmatprep.subr.mxu0 %v2036
    %v2038 = vand.u32 %v808, 4294901760
    %v2039 = vsub.f32 %v808, %v2038
    %v2040 = vand.u32 %v2039, 4294901760
    %2041 = vmatpush1.msra.mxu0 %v2040
    %v2042 = vand.u32 %v807, 4294901760
    %v2043 = vsub.f32 %v807, %v2042
    %v2044 = vand.u32 %v2043, 4294901760
    %2045 = vmatprep.subr.mxu0 %v2044
    %v2046 = vand.u32 %v806, 4294901760
    %v2047 = vsub.f32 %v806, %v2046
    %v2048 = vand.u32 %v2047, 4294901760
    %2049 = vmatpush1.msra.mxu0 %v2048
    %v2050 = vand.u32 %v805, 4294901760
    %v2051 = vsub.f32 %v805, %v2050
    %v2052 = vand.u32 %v2051, 4294901760
    %2053 = vmatprep.subr.mxu0 %v2052
    %v2054 = vand.u32 %v804, 4294901760
    %v2055 = vsub.f32 %v804, %v2054
    %v2056 = vand.u32 %v2055, 4294901760
    %2057 = vmatpush1.msra.mxu0 %v2056
    %v2058 = vand.u32 %v767, 4294901760
    %v2059 = vsub.f32 %v767, %v2058
    %v2060 = vand.u32 %v2059, 4294901760
    %2061 = vmatprep.subr.mxu0 %v2060
    %v2062 = vand.u32 %v766, 4294901760
    %v2063 = vsub.f32 %v766, %v2062
    %v2064 = vand.u32 %v2063, 4294901760
    %2065 = vmatpush1.msra.mxu0 %v2064
    %v2066 = vand.u32 %v765, 4294901760
    %v2067 = vsub.f32 %v765, %v2066
    %v2068 = vand.u32 %v2067, 4294901760
    %2069 = vmatprep.subr.mxu0 %v2068
    %v2070 = vand.u32 %v764, 4294901760
    %v2071 = vsub.f32 %v764, %v2070
    %v2072 = vand.u32 %v2071, 4294901760
    %2073 = vmatpush1.msra.mxu0 %v2072
    %v2074 = vand.u32 %v763, 4294901760
    %v2075 = vsub.f32 %v763, %v2074
    %v2076 = vand.u32 %v2075, 4294901760
    %2077 = vmatprep.subr.mxu0 %v2076
    %v2078 = vand.u32 %v762, 4294901760
    %v2079 = vsub.f32 %v762, %v2078
    %v2080 = vand.u32 %v2079, 4294901760
    %2081 = vmatpush1.msra.mxu0 %v2080
    %v2082 = vand.u32 %v761, 4294901760
    %v2083 = vsub.f32 %v761, %v2082
    %v2084 = vand.u32 %v2083, 4294901760
    %2085 = vmatprep.subr.mxu0 %v2084
    %v2086 = vand.u32 %v760, 4294901760
    %v2087 = vsub.f32 %v760, %v2086
    %v2088 = vand.u32 %v2087, 4294901760
    %2089 = vmatpush1.msra.mxu0 %v2088
    %v2090 = vand.u32 %v1031, 4294901760
    %v2091 = vsub.f32 %v1031, %v2090
    %v2092 = vand.u32 %v2091, 4294901760
    %2093 = vmatprep.subr.mxu0 %v2092
    %v2094 = vand.u32 %v1030, 4294901760
    %v2095 = vsub.f32 %v1030, %v2094
    %v2096 = vand.u32 %v2095, 4294901760
    %2097 = vmatpush2.msra.mxu0 %v2096
    %v2098 = vand.u32 %v1029, 4294901760
    %v2099 = vsub.f32 %v1029, %v2098
    %v2100 = vand.u32 %v2099, 4294901760
    %2101 = vmatprep.subr.mxu0 %v2100
    %v2102 = vand.u32 %v1028, 4294901760
    %v2103 = vsub.f32 %v1028, %v2102
    %v2104 = vand.u32 %v2103, 4294901760
    %2105 = vmatpush2.msra.mxu0 %v2104
    %v2106 = vand.u32 %v1027, 4294901760
    %v2107 = vsub.f32 %v1027, %v2106
    %v2108 = vand.u32 %v2107, 4294901760
    %2109 = vmatprep.subr.mxu0 %v2108
    %v2110 = vand.u32 %v1026, 4294901760
    %v2111 = vsub.f32 %v1026, %v2110
    %v2112 = vand.u32 %v2111, 4294901760
    %2113 = vmatpush2.msra.mxu0 %v2112
    %v2114 = vand.u32 %v1025, 4294901760
    %v2115 = vsub.f32 %v1025, %v2114
    %v2116 = vand.u32 %v2115, 4294901760
    %2117 = vmatprep.subr.mxu0 %v2116
    %v2118 = vand.u32 %v1024, 4294901760
    %v2119 = vsub.f32 %v1024, %v2118
    %v2120 = vand.u32 %v2119, 4294901760
    %2121 = vmatpush2.msra.mxu0 %v2120
    %v2122 = vand.u32 %v987, 4294901760
    %v2123 = vsub.f32 %v987, %v2122
    %v2124 = vand.u32 %v2123, 4294901760
    %2125 = vmatprep.subr.mxu0 %v2124
    %v2126 = vand.u32 %v986, 4294901760
    %v2127 = vsub.f32 %v986, %v2126
    %v2128 = vand.u32 %v2127, 4294901760
    %2129 = vmatpush2.msra.mxu0 %v2128
    %v2130 = vand.u32 %v985, 4294901760
    %v2131 = vsub.f32 %v985, %v2130
    %v2132 = vand.u32 %v2131, 4294901760
    %2133 = vmatprep.subr.mxu0 %v2132
    %v2134 = vand.u32 %v984, 4294901760
    %v2135 = vsub.f32 %v984, %v2134
    %v2136 = vand.u32 %v2135, 4294901760
    %2137 = vmatpush2.msra.mxu0 %v2136
    %v2138 = vand.u32 %v983, 4294901760
    %v2139 = vsub.f32 %v983, %v2138
    %v2140 = vand.u32 %v2139, 4294901760
    %2141 = vmatprep.subr.mxu0 %v2140
    %v2142 = vand.u32 %v982, 4294901760
    %v2143 = vsub.f32 %v982, %v2142
    %v2144 = vand.u32 %v2143, 4294901760
    %2145 = vmatpush2.msra.mxu0 %v2144
    %v2146 = vand.u32 %v981, 4294901760
    %v2147 = vsub.f32 %v981, %v2146
    %v2148 = vand.u32 %v2147, 4294901760
    %2149 = vmatprep.subr.mxu0 %v2148
    %v2150 = vand.u32 %v980, 4294901760
    %v2151 = vsub.f32 %v980, %v2150
    %v2152 = vand.u32 %v2151, 4294901760
    %2153 = vmatpush2.msra.mxu0 %v2152
    %v2154 = vand.u32 %v943, 4294901760
    %v2155 = vsub.f32 %v943, %v2154
    %v2156 = vand.u32 %v2155, 4294901760
    %2157 = vmatprep.subr.mxu0 %v2156
    %v2158 = vand.u32 %v942, 4294901760
    %v2159 = vsub.f32 %v942, %v2158
    %v2160 = vand.u32 %v2159, 4294901760
    %2161 = vmatpush2.msra.mxu0 %v2160
    %v2162 = vand.u32 %v941, 4294901760
    %v2163 = vsub.f32 %v941, %v2162
    %v2164 = vand.u32 %v2163, 4294901760
    %2165 = vmatprep.subr.mxu0 %v2164
    %v2166 = vand.u32 %v940, 4294901760
    %v2167 = vsub.f32 %v940, %v2166
    %v2168 = vand.u32 %v2167, 4294901760
    %2169 = vmatpush2.msra.mxu0 %v2168
    %v2170 = vand.u32 %v939, 4294901760
    %v2171 = vsub.f32 %v939, %v2170
    %v2172 = vand.u32 %v2171, 4294901760
    %2173 = vmatprep.subr.mxu0 %v2172
    %v2174 = vand.u32 %v938, 4294901760
    %v2175 = vsub.f32 %v938, %v2174
    %v2176 = vand.u32 %v2175, 4294901760
    %2177 = vmatpush2.msra.mxu0 %v2176
    %v2178 = vand.u32 %v937, 4294901760
    %v2179 = vsub.f32 %v937, %v2178
    %v2180 = vand.u32 %v2179, 4294901760
    %2181 = vmatprep.subr.mxu0 %v2180
    %v2182 = vand.u32 %v936, 4294901760
    %v2183 = vsub.f32 %v936, %v2182
    %v2184 = vand.u32 %v2183, 4294901760
    %2185 = vmatpush2.msra.mxu0 %v2184
    %v2186 = vand.u32 %v721, 4294901760
    %v2187 = vsub.f32 %v721, %v2186
    %v2188 = vand.u32 %v2187, 4294901760
    %2189 = vmatprep.subr.mxu0 %v2188
    %v2190 = vand.u32 %v720, 4294901760
    %v2191 = vsub.f32 %v720, %v2190
    %v2192 = vand.u32 %v2191, 4294901760
    %2193 = vmatpush2.msra.mxu0 %v2192
    %v2194 = vand.u32 %v719, 4294901760
    %v2195 = vsub.f32 %v719, %v2194
    %v2196 = vand.u32 %v2195, 4294901760
    %2197 = vmatprep.subr.mxu0 %v2196
    %v2198 = vand.u32 %v718, 4294901760
    %v2199 = vsub.f32 %v718, %v2198
    %v2200 = vand.u32 %v2199, 4294901760
    %2201 = vmatpush2.msra.mxu0 %v2200
    %v2202 = vand.u32 %v717, 4294901760
    %v2203 = vsub.f32 %v717, %v2202
    %v2204 = vand.u32 %v2203, 4294901760
    %2205 = vmatprep.subr.mxu0 %v2204
    %v2206 = vand.u32 %v716, 4294901760
    %v2207 = vsub.f32 %v716, %v2206
    %v2208 = vand.u32 %v2207, 4294901760
    %2209 = vmatpush2.msra.mxu0 %v2208
    %v2210 = vand.u32 %v715, 4294901760
    %v2211 = vsub.f32 %v715, %v2210
    %v2212 = vand.u32 %v2211, 4294901760
    %2213 = vmatprep.subr.mxu0 %v2212
    %v2214 = vand.u32 %v714, 4294901760
    %v2215 = vsub.f32 %v714, %v2214
    %v2216 = vand.u32 %v2215, 4294901760
    %2217 = vmatpush2.msra.mxu0 %v2216
    %v2218 = vand.u32 %v39, 4294901760
    %2219 = vmatprep.mubr.f32.mxu0 %v2218
    %v2220 = vand.u32 %v38, 4294901760
    %2221 = vmatmul.mubr.f32.gmra.mxu0 %v2220
    %v2222 = vpop.f32.mrf.mxu0
    %v2223 = vadd.f32 %v1958, %v2222
    %v2224 = vpop.f32.mrf.mxu0
    %v2225 = vadd.f32 %v1960, %v2224
    %2226 = vdwg.mxu0
    %v2227 = vand.u32 %v899, 4294901760
    %2228 = vmatprep.subr.mxu0 %v2227
    %v2229 = vand.u32 %v898, 4294901760
    %2230 = vmatpush1.msra.mxu0 %v2229
    %v2231 = vand.u32 %v897, 4294901760
    %2232 = vmatprep.subr.mxu0 %v2231
    %v2233 = vand.u32 %v896, 4294901760
    %2234 = vmatpush1.msra.mxu0 %v2233
    %v2235 = vand.u32 %v895, 4294901760
    %2236 = vmatprep.subr.mxu0 %v2235
    %v2237 = vand.u32 %v894, 4294901760
    %2238 = vmatpush1.msra.mxu0 %v2237
    %v2239 = vand.u32 %v893, 4294901760
    %2240 = vmatprep.subr.mxu0 %v2239
    %v2241 = vand.u32 %v892, 4294901760
    %2242 = vmatpush1.msra.mxu0 %v2241
    %v2243 = vand.u32 %v855, 4294901760
    %2244 = vmatprep.subr.mxu0 %v2243
    %v2245 = vand.u32 %v854, 4294901760
    %2246 = vmatpush1.msra.mxu0 %v2245
    %v2247 = vand.u32 %v853, 4294901760
    %2248 = vmatprep.subr.mxu0 %v2247
    %v2249 = vand.u32 %v852, 4294901760
    %2250 = vmatpush1.msra.mxu0 %v2249
    %v2251 = vand.u32 %v851, 4294901760
    %2252 = vmatprep.subr.mxu0 %v2251
    %v2253 = vand.u32 %v850, 4294901760
    %2254 = vmatpush1.msra.mxu0 %v2253
    %v2255 = vand.u32 %v849, 4294901760
    %2256 = vmatprep.subr.mxu0 %v2255
    %v2257 = vand.u32 %v848, 4294901760
    %2258 = vmatpush1.msra.mxu0 %v2257
    %v2259 = vand.u32 %v811, 4294901760
    %2260 = vmatprep.subr.mxu0 %v2259
    %v2261 = vand.u32 %v810, 4294901760
    %2262 = vmatpush1.msra.mxu0 %v2261
    %v2263 = vand.u32 %v809, 4294901760
    %2264 = vmatprep.subr.mxu0 %v2263
    %v2265 = vand.u32 %v808, 4294901760
    %2266 = vmatpush1.msra.mxu0 %v2265
    %v2267 = vand.u32 %v807, 4294901760
    %2268 = vmatprep.subr.mxu0 %v2267
    %v2269 = vand.u32 %v806, 4294901760
    %2270 = vmatpush1.msra.mxu0 %v2269
    %v2271 = vand.u32 %v805, 4294901760
    %2272 = vmatprep.subr.mxu0 %v2271
    %v2273 = vand.u32 %v804, 4294901760
    %2274 = vmatpush1.msra.mxu0 %v2273
    %v2275 = vand.u32 %v767, 4294901760
    %2276 = vmatprep.subr.mxu0 %v2275
    %v2277 = vand.u32 %v766, 4294901760
    %2278 = vmatpush1.msra.mxu0 %v2277
    %v2279 = vand.u32 %v765, 4294901760
    %2280 = vmatprep.subr.mxu0 %v2279
    %v2281 = vand.u32 %v764, 4294901760
    %2282 = vmatpush1.msra.mxu0 %v2281
    %v2283 = vand.u32 %v763, 4294901760
    %2284 = vmatprep.subr.mxu0 %v2283
    %v2285 = vand.u32 %v762, 4294901760
    %2286 = vmatpush1.msra.mxu0 %v2285
    %v2287 = vand.u32 %v761, 4294901760
    %2288 = vmatprep.subr.mxu0 %v2287
    %v2289 = vand.u32 %v760, 4294901760
    %2290 = vmatpush1.msra.mxu0 %v2289
    %v2291 = vand.u32 %v1031, 4294901760
    %2292 = vmatprep.subr.mxu0 %v2291
    %v2293 = vand.u32 %v1030, 4294901760
    %2294 = vmatpush2.msra.mxu0 %v2293
    %v2295 = vand.u32 %v1029, 4294901760
    %2296 = vmatprep.subr.mxu0 %v2295
    %v2297 = vand.u32 %v1028, 4294901760
    %2298 = vmatpush2.msra.mxu0 %v2297
    %v2299 = vand.u32 %v1027, 4294901760
    %2300 = vmatprep.subr.mxu0 %v2299
    %v2301 = vand.u32 %v1026, 4294901760
    %2302 = vmatpush2.msra.mxu0 %v2301
    %v2303 = vand.u32 %v1025, 4294901760
    %2304 = vmatprep.subr.mxu0 %v2303
    %v2305 = vand.u32 %v1024, 4294901760
    %2306 = vmatpush2.msra.mxu0 %v2305
    %v2307 = vand.u32 %v987, 4294901760
    %2308 = vmatprep.subr.mxu0 %v2307
    %v2309 = vand.u32 %v986, 4294901760
    %2310 = vmatpush2.msra.mxu0 %v2309
    %v2311 = vand.u32 %v985, 4294901760
    %2312 = vmatprep.subr.mxu0 %v2311
    %v2313 = vand.u32 %v984, 4294901760
    %2314 = vmatpush2.msra.mxu0 %v2313
    %v2315 = vand.u32 %v983, 4294901760
    %2316 = vmatprep.subr.mxu0 %v2315
    %v2317 = vand.u32 %v982, 4294901760
    %2318 = vmatpush2.msra.mxu0 %v2317
    %v2319 = vand.u32 %v981, 4294901760
    %2320 = vmatprep.subr.mxu0 %v2319
    %v2321 = vand.u32 %v980, 4294901760
    %2322 = vmatpush2.msra.mxu0 %v2321
    %v2323 = vand.u32 %v943, 4294901760
    %2324 = vmatprep.subr.mxu0 %v2323
    %v2325 = vand.u32 %v942, 4294901760
    %2326 = vmatpush2.msra.mxu0 %v2325
    %v2327 = vand.u32 %v941, 4294901760
    %2328 = vmatprep.subr.mxu0 %v2327
    %v2329 = vand.u32 %v940, 4294901760
    %2330 = vmatpush2.msra.mxu0 %v2329
    %v2331 = vand.u32 %v939, 4294901760
    %2332 = vmatprep.subr.mxu0 %v2331
    %v2333 = vand.u32 %v938, 4294901760
    %2334 = vmatpush2.msra.mxu0 %v2333
    %v2335 = vand.u32 %v937, 4294901760
    %2336 = vmatprep.subr.mxu0 %v2335
    %v2337 = vand.u32 %v936, 4294901760
    %2338 = vmatpush2.msra.mxu0 %v2337
    %v2339 = vand.u32 %v721, 4294901760
    %2340 = vmatprep.subr.mxu0 %v2339
    %v2341 = vand.u32 %v720, 4294901760
    %2342 = vmatpush2.msra.mxu0 %v2341
    %v2343 = vand.u32 %v719, 4294901760
    %2344 = vmatprep.subr.mxu0 %v2343
    %v2345 = vand.u32 %v718, 4294901760
    %2346 = vmatpush2.msra.mxu0 %v2345
    %v2347 = vand.u32 %v717, 4294901760
    %2348 = vmatprep.subr.mxu0 %v2347
    %v2349 = vand.u32 %v716, 4294901760
    %2350 = vmatpush2.msra.mxu0 %v2349
    %v2351 = vand.u32 %v715, 4294901760
    %2352 = vmatprep.subr.mxu0 %v2351
    %v2353 = vand.u32 %v714, 4294901760
    %2354 = vmatpush2.msra.mxu0 %v2353
    %v2355 = vand.u32 %v39, 4294901760
    %2356 = vmatprep.mubr.f32.mxu0 %v2355
    %v2357 = vand.u32 %v38, 4294901760
    %2358 = vmatmul.mubr.f32.gmra.mxu0 %v2357
    %v2359 = vpop.f32.mrf.mxu0
    %v2360 = vadd.f32 %v2223, %v2359
    %v2361 = vpop.f32.mrf.mxu0
    %v2362 = vadd.f32 %v2225, %v2361
    %2363 = vdwg.mxu0
    %2364 = vmatprep.subr.mxu0 0.0
    %2365 = vmatpush1.msra.mxu0 0.0
    %2366 = vmatprep.subr.mxu0 0.0
    %2367 = vmatpush1.msra.mxu0 0.0
    %2368 = vmatprep.subr.mxu0 0.0
    %2369 = vmatpush1.msra.mxu0 0.0
    %2370 = vmatprep.subr.mxu0 0.0
    %2371 = vmatpush1.msra.mxu0 0.0
    %2372 = vmatprep.subr.mxu0 0.0
    %2373 = vmatpush1.msra.mxu0 0.0
    %2374 = vmatprep.subr.mxu0 0.0
    %2375 = vmatpush1.msra.mxu0 0.0
    %2376 = vmatprep.subr.mxu0 0.0
    %2377 = vmatpush1.msra.mxu0 0.0
    %2378 = vmatprep.subr.mxu0 0.0
    %2379 = vmatpush1.msra.mxu0 0.0
    %2380 = vmatprep.subr.mxu0 0.0
    %2381 = vmatpush1.msra.mxu0 0.0
    %2382 = vmatprep.subr.mxu0 0.0
    %2383 = vmatpush1.msra.mxu0 0.0
    %2384 = vmatprep.subr.mxu0 0.0
    %2385 = vmatpush1.msra.mxu0 0.0
    %2386 = vmatprep.subr.mxu0 0.0
    %2387 = vmatpush1.msra.mxu0 0.0
    %v2388 = vand.u32 %v1075, 4294901760
    %2389 = vmatprep.subr.mxu0 %v2388
    %v2390 = vand.u32 %v1074, 4294901760
    %2391 = vmatpush1.msra.mxu0 %v2390
    %v2392 = vand.u32 %v1073, 4294901760
    %2393 = vmatprep.subr.mxu0 %v2392
    %v2394 = vand.u32 %v1072, 4294901760
    %2395 = vmatpush1.msra.mxu0 %v2394
    %v2396 = vand.u32 %v1071, 4294901760
    %2397 = vmatprep.subr.mxu0 %v2396
    %v2398 = vand.u32 %v1070, 4294901760
    %2399 = vmatpush1.msra.mxu0 %v2398
    %v2400 = vand.u32 %v1069, 4294901760
    %2401 = vmatprep.subr.mxu0 %v2400
    %v2402 = vand.u32 %v1068, 4294901760
    %2403 = vmatpush1.msra.mxu0 %v2402
    %2404 = vmatprep.subr.mxu0 0.0
    %2405 = vmatpush2.msra.mxu0 0.0
    %2406 = vmatprep.subr.mxu0 0.0
    %2407 = vmatpush2.msra.mxu0 0.0
    %2408 = vmatprep.subr.mxu0 0.0
    %2409 = vmatpush2.msra.mxu0 0.0
    %2410 = vmatprep.subr.mxu0 0.0
    %2411 = vmatpush2.msra.mxu0 0.0
    %2412 = vmatprep.subr.mxu0 0.0
    %2413 = vmatpush2.msra.mxu0 0.0
    %2414 = vmatprep.subr.mxu0 0.0
    %2415 = vmatpush2.msra.mxu0 0.0
    %2416 = vmatprep.subr.mxu0 0.0
    %2417 = vmatpush2.msra.mxu0 0.0
    %2418 = vmatprep.subr.mxu0 0.0
    %2419 = vmatpush2.msra.mxu0 0.0
    %2420 = vmatprep.subr.mxu0 0.0
    %2421 = vmatpush2.msra.mxu0 0.0
    %2422 = vmatprep.subr.mxu0 0.0
    %2423 = vmatpush2.msra.mxu0 0.0
    %2424 = vmatprep.subr.mxu0 0.0
    %2425 = vmatpush2.msra.mxu0 0.0
    %2426 = vmatprep.subr.mxu0 0.0
    %2427 = vmatpush2.msra.mxu0 0.0
    %2428 = vmatprep.subr.mxu0 0.0
    %2429 = vmatpush2.msra.mxu0 0.0
    %2430 = vmatprep.subr.mxu0 0.0
    %2431 = vmatpush2.msra.mxu0 0.0
    %2432 = vmatprep.subr.mxu0 0.0
    %2433 = vmatpush2.msra.mxu0 0.0
    %2434 = vmatprep.subr.mxu0 0.0
    %2435 = vmatpush2.msra.mxu0 0.0
    %2436 = vmatprep.mubr.f32.mxu0 0.0
    %v2437 = vand.u32 %v1078, 4294901760
    %v2438 = vsub.f32 %v1078, %v2437
    %v2439 = vand.u32 %v2438, 4294901760
    %v2440 = vsub.f32 %v2438, %v2439
    %v2441 = vand.u32 %v2440, 4294901760
    %2442 = vmatmul.mubr.f32.gmra.mxu0 %v2441
    %v2443 = vpop.f32.mrf.mxu0
    %v2444 = vadd.f32 %v2360, %v2443
    %v2445 = vpop.f32.mrf.mxu0
    %v2446 = vadd.f32 %v2362, %v2445
    %2447 = vdwg.mxu0
    %2448 = vmatprep.subr.mxu0 0.0
    %2449 = vmatpush1.msra.mxu0 0.0
    %2450 = vmatprep.subr.mxu0 0.0
    %2451 = vmatpush1.msra.mxu0 0.0
    %2452 = vmatprep.subr.mxu0 0.0
    %2453 = vmatpush1.msra.mxu0 0.0
    %2454 = vmatprep.subr.mxu0 0.0
    %2455 = vmatpush1.msra.mxu0 0.0
    %2456 = vmatprep.subr.mxu0 0.0
    %2457 = vmatpush1.msra.mxu0 0.0
    %2458 = vmatprep.subr.mxu0 0.0
    %2459 = vmatpush1.msra.mxu0 0.0
    %2460 = vmatprep.subr.mxu0 0.0
    %2461 = vmatpush1.msra.mxu0 0.0
    %2462 = vmatprep.subr.mxu0 0.0
    %2463 = vmatpush1.msra.mxu0 0.0
    %2464 = vmatprep.subr.mxu0 0.0
    %2465 = vmatpush1.msra.mxu0 0.0
    %2466 = vmatprep.subr.mxu0 0.0
    %2467 = vmatpush1.msra.mxu0 0.0
    %2468 = vmatprep.subr.mxu0 0.0
    %2469 = vmatpush1.msra.mxu0 0.0
    %2470 = vmatprep.subr.mxu0 0.0
    %2471 = vmatpush1.msra.mxu0 0.0
    %v2472 = vand.u32 %v1075, 4294901760
    %v2473 = vsub.f32 %v1075, %v2472
    %v2474 = vand.u32 %v2473, 4294901760
    %v2475 = vsub.f32 %v2473, %v2474
    %v2476 = vand.u32 %v2475, 4294901760
    %2477 = vmatprep.subr.mxu0 %v2476
    %v2478 = vand.u32 %v1074, 4294901760
    %v2479 = vsub.f32 %v1074, %v2478
    %v2480 = vand.u32 %v2479, 4294901760
    %v2481 = vsub.f32 %v2479, %v2480
    %v2482 = vand.u32 %v2481, 4294901760
    %2483 = vmatpush1.msra.mxu0 %v2482
    %v2484 = vand.u32 %v1073, 4294901760
    %v2485 = vsub.f32 %v1073, %v2484
    %v2486 = vand.u32 %v2485, 4294901760
    %v2487 = vsub.f32 %v2485, %v2486
    %v2488 = vand.u32 %v2487, 4294901760
    %2489 = vmatprep.subr.mxu0 %v2488
    %v2490 = vand.u32 %v1072, 4294901760
    %v2491 = vsub.f32 %v1072, %v2490
    %v2492 = vand.u32 %v2491, 4294901760
    %v2493 = vsub.f32 %v2491, %v2492
    %v2494 = vand.u32 %v2493, 4294901760
    %2495 = vmatpush1.msra.mxu0 %v2494
    %v2496 = vand.u32 %v1071, 4294901760
    %v2497 = vsub.f32 %v1071, %v2496
    %v2498 = vand.u32 %v2497, 4294901760
    %v2499 = vsub.f32 %v2497, %v2498
    %v2500 = vand.u32 %v2499, 4294901760
    %2501 = vmatprep.subr.mxu0 %v2500
    %v2502 = vand.u32 %v1070, 4294901760
    %v2503 = vsub.f32 %v1070, %v2502
    %v2504 = vand.u32 %v2503, 4294901760
    %v2505 = vsub.f32 %v2503, %v2504
    %v2506 = vand.u32 %v2505, 4294901760
    %2507 = vmatpush1.msra.mxu0 %v2506
    %v2508 = vand.u32 %v1069, 4294901760
    %v2509 = vsub.f32 %v1069, %v2508
    %v2510 = vand.u32 %v2509, 4294901760
    %v2511 = vsub.f32 %v2509, %v2510
    %v2512 = vand.u32 %v2511, 4294901760
    %2513 = vmatprep.subr.mxu0 %v2512
    %v2514 = vand.u32 %v1068, 4294901760
    %v2515 = vsub.f32 %v1068, %v2514
    %v2516 = vand.u32 %v2515, 4294901760
    %v2517 = vsub.f32 %v2515, %v2516
    %v2518 = vand.u32 %v2517, 4294901760
    %2519 = vmatpush1.msra.mxu0 %v2518
    %2520 = vmatprep.subr.mxu0 0.0
    %2521 = vmatpush2.msra.mxu0 0.0
    %2522 = vmatprep.subr.mxu0 0.0
    %2523 = vmatpush2.msra.mxu0 0.0
    %2524 = vmatprep.subr.mxu0 0.0
    %2525 = vmatpush2.msra.mxu0 0.0
    %2526 = vmatprep.subr.mxu0 0.0
    %2527 = vmatpush2.msra.mxu0 0.0
    %2528 = vmatprep.subr.mxu0 0.0
    %2529 = vmatpush2.msra.mxu0 0.0
    %2530 = vmatprep.subr.mxu0 0.0
    %2531 = vmatpush2.msra.mxu0 0.0
    %2532 = vmatprep.subr.mxu0 0.0
    %2533 = vmatpush2.msra.mxu0 0.0
    %2534 = vmatprep.subr.mxu0 0.0
    %2535 = vmatpush2.msra.mxu0 0.0
    %2536 = vmatprep.subr.mxu0 0.0
    %2537 = vmatpush2.msra.mxu0 0.0
    %2538 = vmatprep.subr.mxu0 0.0
    %2539 = vmatpush2.msra.mxu0 0.0
    %2540 = vmatprep.subr.mxu0 0.0
    %2541 = vmatpush2.msra.mxu0 0.0
    %2542 = vmatprep.subr.mxu0 0.0
    %2543 = vmatpush2.msra.mxu0 0.0
    %2544 = vmatprep.subr.mxu0 0.0
    %2545 = vmatpush2.msra.mxu0 0.0
    %2546 = vmatprep.subr.mxu0 0.0
    %2547 = vmatpush2.msra.mxu0 0.0
    %2548 = vmatprep.subr.mxu0 0.0
    %2549 = vmatpush2.msra.mxu0 0.0
    %2550 = vmatprep.subr.mxu0 0.0
    %2551 = vmatpush2.msra.mxu0 0.0
    %2552 = vmatprep.mubr.f32.mxu0 0.0
    %v2553 = vand.u32 %v1078, 4294901760
    %2554 = vmatmul.mubr.f32.gmra.mxu0 %v2553
    %v2555 = vpop.f32.mrf.mxu0
    %v2556 = vadd.f32 %v2444, %v2555
    %v2557 = vpop.f32.mrf.mxu0
    %v2558 = vadd.f32 %v2446, %v2557
    %2559 = vdwg.mxu0
    %2560 = vmatprep.subr.mxu0 0.0
    %2561 = vmatpush1.msra.mxu0 0.0
    %2562 = vmatprep.subr.mxu0 0.0
    %2563 = vmatpush1.msra.mxu0 0.0
    %2564 = vmatprep.subr.mxu0 0.0
    %2565 = vmatpush1.msra.mxu0 0.0
    %2566 = vmatprep.subr.mxu0 0.0
    %2567 = vmatpush1.msra.mxu0 0.0
    %2568 = vmatprep.subr.mxu0 0.0
    %2569 = vmatpush1.msra.mxu0 0.0
    %2570 = vmatprep.subr.mxu0 0.0
    %2571 = vmatpush1.msra.mxu0 0.0
    %2572 = vmatprep.subr.mxu0 0.0
    %2573 = vmatpush1.msra.mxu0 0.0
    %2574 = vmatprep.subr.mxu0 0.0
    %2575 = vmatpush1.msra.mxu0 0.0
    %2576 = vmatprep.subr.mxu0 0.0
    %2577 = vmatpush1.msra.mxu0 0.0
    %2578 = vmatprep.subr.mxu0 0.0
    %2579 = vmatpush1.msra.mxu0 0.0
    %2580 = vmatprep.subr.mxu0 0.0
    %2581 = vmatpush1.msra.mxu0 0.0
    %2582 = vmatprep.subr.mxu0 0.0
    %2583 = vmatpush1.msra.mxu0 0.0
    %v2584 = vand.u32 %v1075, 4294901760
    %v2585 = vsub.f32 %v1075, %v2584
    %2586 = vmatprep.subr.mxu0 %v2585
    %v2587 = vand.u32 %v1074, 4294901760
    %v2588 = vsub.f32 %v1074, %v2587
    %2589 = vmatpush1.msra.mxu0 %v2588
    %v2590 = vand.u32 %v1073, 4294901760
    %v2591 = vsub.f32 %v1073, %v2590
    %2592 = vmatprep.subr.mxu0 %v2591
    %v2593 = vand.u32 %v1072, 4294901760
    %v2594 = vsub.f32 %v1072, %v2593
    %2595 = vmatpush1.msra.mxu0 %v2594
    %v2596 = vand.u32 %v1071, 4294901760
    %v2597 = vsub.f32 %v1071, %v2596
    %2598 = vmatprep.subr.mxu0 %v2597
    %v2599 = vand.u32 %v1070, 4294901760
    %v2600 = vsub.f32 %v1070, %v2599
    %2601 = vmatpush1.msra.mxu0 %v2600
    %v2602 = vand.u32 %v1069, 4294901760
    %v2603 = vsub.f32 %v1069, %v2602
    %2604 = vmatprep.subr.mxu0 %v2603
    %v2605 = vand.u32 %v1068, 4294901760
    %v2606 = vsub.f32 %v1068, %v2605
    %2607 = vmatpush1.msra.mxu0 %v2606
    %2608 = vmatprep.subr.mxu0 0.0
    %2609 = vmatpush2.msra.mxu0 0.0
    %2610 = vmatprep.subr.mxu0 0.0
    %2611 = vmatpush2.msra.mxu0 0.0
    %2612 = vmatprep.subr.mxu0 0.0
    %2613 = vmatpush2.msra.mxu0 0.0
    %2614 = vmatprep.subr.mxu0 0.0
    %2615 = vmatpush2.msra.mxu0 0.0
    %2616 = vmatprep.subr.mxu0 0.0
    %2617 = vmatpush2.msra.mxu0 0.0
    %2618 = vmatprep.subr.mxu0 0.0
    %2619 = vmatpush2.msra.mxu0 0.0
    %2620 = vmatprep.subr.mxu0 0.0
    %2621 = vmatpush2.msra.mxu0 0.0
    %2622 = vmatprep.subr.mxu0 0.0
    %2623 = vmatpush2.msra.mxu0 0.0
    %2624 = vmatprep.subr.mxu0 0.0
    %2625 = vmatpush2.msra.mxu0 0.0
    %2626 = vmatprep.subr.mxu0 0.0
    %2627 = vmatpush2.msra.mxu0 0.0
    %2628 = vmatprep.subr.mxu0 0.0
    %2629 = vmatpush2.msra.mxu0 0.0
    %2630 = vmatprep.subr.mxu0 0.0
    %2631 = vmatpush2.msra.mxu0 0.0
    %2632 = vmatprep.subr.mxu0 0.0
    %2633 = vmatpush2.msra.mxu0 0.0
    %2634 = vmatprep.subr.mxu0 0.0
    %2635 = vmatpush2.msra.mxu0 0.0
    %2636 = vmatprep.subr.mxu0 0.0
    %2637 = vmatpush2.msra.mxu0 0.0
    %2638 = vmatprep.subr.mxu0 0.0
    %2639 = vmatpush2.msra.mxu0 0.0
    %2640 = vmatprep.mubr.f32.mxu0 0.0
    %v2641 = vand.u32 %v1078, 4294901760
    %v2642 = vsub.f32 %v1078, %v2641
    %2643 = vmatmul.mubr.f32.gmra.mxu0 %v2642
    %v2644 = vpop.f32.mrf.mxu0
    %v2645 = vadd.f32 %v2556, %v2644
    %v2646 = vpop.f32.mrf.mxu0
    %v2647 = vadd.f32 %v2558, %v2646
    %2648 = vdwg.mxu0
    %2649 = vmatprep.subr.mxu0 0.0
    %2650 = vmatpush1.msra.mxu0 0.0
    %2651 = vmatprep.subr.mxu0 0.0
    %2652 = vmatpush1.msra.mxu0 0.0
    %2653 = vmatprep.subr.mxu0 0.0
    %2654 = vmatpush1.msra.mxu0 0.0
    %2655 = vmatprep.subr.mxu0 0.0
    %2656 = vmatpush1.msra.mxu0 0.0
    %2657 = vmatprep.subr.mxu0 0.0
    %2658 = vmatpush1.msra.mxu0 0.0
    %2659 = vmatprep.subr.mxu0 0.0
    %2660 = vmatpush1.msra.mxu0 0.0
    %2661 = vmatprep.subr.mxu0 0.0
    %2662 = vmatpush1.msra.mxu0 0.0
    %2663 = vmatprep.subr.mxu0 0.0
    %2664 = vmatpush1.msra.mxu0 0.0
    %2665 = vmatprep.subr.mxu0 0.0
    %2666 = vmatpush1.msra.mxu0 0.0
    %2667 = vmatprep.subr.mxu0 0.0
    %2668 = vmatpush1.msra.mxu0 0.0
    %2669 = vmatprep.subr.mxu0 0.0
    %2670 = vmatpush1.msra.mxu0 0.0
    %2671 = vmatprep.subr.mxu0 0.0
    %2672 = vmatpush1.msra.mxu0 0.0
    %v2673 = vand.u32 %v1075, 4294901760
    %2674 = vmatprep.subr.mxu0 %v2673
    %v2675 = vand.u32 %v1074, 4294901760
    %2676 = vmatpush1.msra.mxu0 %v2675
    %v2677 = vand.u32 %v1073, 4294901760
    %2678 = vmatprep.subr.mxu0 %v2677
    %v2679 = vand.u32 %v1072, 4294901760
    %2680 = vmatpush1.msra.mxu0 %v2679
    %v2681 = vand.u32 %v1071, 4294901760
    %2682 = vmatprep.subr.mxu0 %v2681
    %v2683 = vand.u32 %v1070, 4294901760
    %2684 = vmatpush1.msra.mxu0 %v2683
    %v2685 = vand.u32 %v1069, 4294901760
    %2686 = vmatprep.subr.mxu0 %v2685
    %v2687 = vand.u32 %v1068, 4294901760
    %2688 = vmatpush1.msra.mxu0 %v2687
    %2689 = vmatprep.subr.mxu0 0.0
    %2690 = vmatpush2.msra.mxu0 0.0
    %2691 = vmatprep.subr.mxu0 0.0
    %2692 = vmatpush2.msra.mxu0 0.0
    %2693 = vmatprep.subr.mxu0 0.0
    %2694 = vmatpush2.msra.mxu0 0.0
    %2695 = vmatprep.subr.mxu0 0.0
    %2696 = vmatpush2.msra.mxu0 0.0
    %2697 = vmatprep.subr.mxu0 0.0
    %2698 = vmatpush2.msra.mxu0 0.0
    %2699 = vmatprep.subr.mxu0 0.0
    %2700 = vmatpush2.msra.mxu0 0.0
    %2701 = vmatprep.subr.mxu0 0.0
    %2702 = vmatpush2.msra.mxu0 0.0
    %2703 = vmatprep.subr.mxu0 0.0
    %2704 = vmatpush2.msra.mxu0 0.0
    %2705 = vmatprep.subr.mxu0 0.0
    %2706 = vmatpush2.msra.mxu0 0.0
    %2707 = vmatprep.subr.mxu0 0.0
    %2708 = vmatpush2.msra.mxu0 0.0
    %2709 = vmatprep.subr.mxu0 0.0
    %2710 = vmatpush2.msra.mxu0 0.0
    %2711 = vmatprep.subr.mxu0 0.0
    %2712 = vmatpush2.msra.mxu0 0.0
    %2713 = vmatprep.subr.mxu0 0.0
    %2714 = vmatpush2.msra.mxu0 0.0
    %2715 = vmatprep.subr.mxu0 0.0
    %2716 = vmatpush2.msra.mxu0 0.0
    %2717 = vmatprep.subr.mxu0 0.0
    %2718 = vmatpush2.msra.mxu0 0.0
    %2719 = vmatprep.subr.mxu0 0.0
    %2720 = vmatpush2.msra.mxu0 0.0
    %2721 = vmatprep.mubr.f32.mxu0 0.0
    %v2722 = vand.u32 %v1078, 4294901760
    %v2723 = vsub.f32 %v1078, %v2722
    %v2724 = vand.u32 %v2723, 4294901760
    %2725 = vmatmul.mubr.f32.gmra.mxu0 %v2724
    %v2726 = vpop.f32.mrf.mxu0
    %v2727 = vadd.f32 %v2645, %v2726
    %v2728 = vpop.f32.mrf.mxu0
    %v2729 = vadd.f32 %v2647, %v2728
    %2730 = vdwg.mxu0
    %2731 = vmatprep.subr.mxu0 0.0
    %2732 = vmatpush1.msra.mxu0 0.0
    %2733 = vmatprep.subr.mxu0 0.0
    %2734 = vmatpush1.msra.mxu0 0.0
    %2735 = vmatprep.subr.mxu0 0.0
    %2736 = vmatpush1.msra.mxu0 0.0
    %2737 = vmatprep.subr.mxu0 0.0
    %2738 = vmatpush1.msra.mxu0 0.0
    %2739 = vmatprep.subr.mxu0 0.0
    %2740 = vmatpush1.msra.mxu0 0.0
    %2741 = vmatprep.subr.mxu0 0.0
    %2742 = vmatpush1.msra.mxu0 0.0
    %2743 = vmatprep.subr.mxu0 0.0
    %2744 = vmatpush1.msra.mxu0 0.0
    %2745 = vmatprep.subr.mxu0 0.0
    %2746 = vmatpush1.msra.mxu0 0.0
    %2747 = vmatprep.subr.mxu0 0.0
    %2748 = vmatpush1.msra.mxu0 0.0
    %2749 = vmatprep.subr.mxu0 0.0
    %2750 = vmatpush1.msra.mxu0 0.0
    %2751 = vmatprep.subr.mxu0 0.0
    %2752 = vmatpush1.msra.mxu0 0.0
    %2753 = vmatprep.subr.mxu0 0.0
    %2754 = vmatpush1.msra.mxu0 0.0
    %v2755 = vand.u32 %v1075, 4294901760
    %v2756 = vsub.f32 %v1075, %v2755
    %v2757 = vand.u32 %v2756, 4294901760
    %2758 = vmatprep.subr.mxu0 %v2757
    %v2759 = vand.u32 %v1074, 4294901760
    %v2760 = vsub.f32 %v1074, %v2759
    %v2761 = vand.u32 %v2760, 4294901760
    %2762 = vmatpush1.msra.mxu0 %v2761
    %v2763 = vand.u32 %v1073, 4294901760
    %v2764 = vsub.f32 %v1073, %v2763
    %v2765 = vand.u32 %v2764, 4294901760
    %2766 = vmatprep.subr.mxu0 %v2765
    %v2767 = vand.u32 %v1072, 4294901760
    %v2768 = vsub.f32 %v1072, %v2767
    %v2769 = vand.u32 %v2768, 4294901760
    %2770 = vmatpush1.msra.mxu0 %v2769
    %v2771 = vand.u32 %v1071, 4294901760
    %v2772 = vsub.f32 %v1071, %v2771
    %v2773 = vand.u32 %v2772, 4294901760
    %2774 = vmatprep.subr.mxu0 %v2773
    %v2775 = vand.u32 %v1070, 4294901760
    %v2776 = vsub.f32 %v1070, %v2775
    %v2777 = vand.u32 %v2776, 4294901760
    %2778 = vmatpush1.msra.mxu0 %v2777
    %v2779 = vand.u32 %v1069, 4294901760
    %v2780 = vsub.f32 %v1069, %v2779
    %v2781 = vand.u32 %v2780, 4294901760
    %2782 = vmatprep.subr.mxu0 %v2781
    %v2783 = vand.u32 %v1068, 4294901760
    %v2784 = vsub.f32 %v1068, %v2783
    %v2785 = vand.u32 %v2784, 4294901760
    %2786 = vmatpush1.msra.mxu0 %v2785
    %2787 = vmatprep.subr.mxu0 0.0
    %2788 = vmatpush2.msra.mxu0 0.0
    %2789 = vmatprep.subr.mxu0 0.0
    %2790 = vmatpush2.msra.mxu0 0.0
    %2791 = vmatprep.subr.mxu0 0.0
    %2792 = vmatpush2.msra.mxu0 0.0
    %2793 = vmatprep.subr.mxu0 0.0
    %2794 = vmatpush2.msra.mxu0 0.0
    %2795 = vmatprep.subr.mxu0 0.0
    %2796 = vmatpush2.msra.mxu0 0.0
    %2797 = vmatprep.subr.mxu0 0.0
    %2798 = vmatpush2.msra.mxu0 0.0
    %2799 = vmatprep.subr.mxu0 0.0
    %2800 = vmatpush2.msra.mxu0 0.0
    %2801 = vmatprep.subr.mxu0 0.0
    %2802 = vmatpush2.msra.mxu0 0.0
    %2803 = vmatprep.subr.mxu0 0.0
    %2804 = vmatpush2.msra.mxu0 0.0
    %2805 = vmatprep.subr.mxu0 0.0
    %2806 = vmatpush2.msra.mxu0 0.0
    %2807 = vmatprep.subr.mxu0 0.0
    %2808 = vmatpush2.msra.mxu0 0.0
    %2809 = vmatprep.subr.mxu0 0.0
    %2810 = vmatpush2.msra.mxu0 0.0
    %2811 = vmatprep.subr.mxu0 0.0
    %2812 = vmatpush2.msra.mxu0 0.0
    %2813 = vmatprep.subr.mxu0 0.0
    %2814 = vmatpush2.msra.mxu0 0.0
    %2815 = vmatprep.subr.mxu0 0.0
    %2816 = vmatpush2.msra.mxu0 0.0
    %2817 = vmatprep.subr.mxu0 0.0
    %2818 = vmatpush2.msra.mxu0 0.0
    %2819 = vmatprep.mubr.f32.mxu0 0.0
    %v2820 = vand.u32 %v1078, 4294901760
    %2821 = vmatmul.mubr.f32.gmra.mxu0 %v2820
    %v2822 = vpop.f32.mrf.mxu0
    %v2823 = vadd.f32 %v2727, %v2822
    %v2824 = vpop.f32.mrf.mxu0
    %v2825 = vadd.f32 %v2729, %v2824
    %2826 = vdwg.mxu0
    %2827 = vmatprep.subr.mxu0 0.0
    %2828 = vmatpush1.msra.mxu0 0.0
    %2829 = vmatprep.subr.mxu0 0.0
    %2830 = vmatpush1.msra.mxu0 0.0
    %2831 = vmatprep.subr.mxu0 0.0
    %2832 = vmatpush1.msra.mxu0 0.0
    %2833 = vmatprep.subr.mxu0 0.0
    %2834 = vmatpush1.msra.mxu0 0.0
    %2835 = vmatprep.subr.mxu0 0.0
    %2836 = vmatpush1.msra.mxu0 0.0
    %2837 = vmatprep.subr.mxu0 0.0
    %2838 = vmatpush1.msra.mxu0 0.0
    %2839 = vmatprep.subr.mxu0 0.0
    %2840 = vmatpush1.msra.mxu0 0.0
    %2841 = vmatprep.subr.mxu0 0.0
    %2842 = vmatpush1.msra.mxu0 0.0
    %2843 = vmatprep.subr.mxu0 0.0
    %2844 = vmatpush1.msra.mxu0 0.0
    %2845 = vmatprep.subr.mxu0 0.0
    %2846 = vmatpush1.msra.mxu0 0.0
    %2847 = vmatprep.subr.mxu0 0.0
    %2848 = vmatpush1.msra.mxu0 0.0
    %2849 = vmatprep.subr.mxu0 0.0
    %2850 = vmatpush1.msra.mxu0 0.0
    %v2851 = vand.u32 %v1075, 4294901760
    %2852 = vmatprep.subr.mxu0 %v2851
    %v2853 = vand.u32 %v1074, 4294901760
    %2854 = vmatpush1.msra.mxu0 %v2853
    %v2855 = vand.u32 %v1073, 4294901760
    %2856 = vmatprep.subr.mxu0 %v2855
    %v2857 = vand.u32 %v1072, 4294901760
    %2858 = vmatpush1.msra.mxu0 %v2857
    %v2859 = vand.u32 %v1071, 4294901760
    %2860 = vmatprep.subr.mxu0 %v2859
    %v2861 = vand.u32 %v1070, 4294901760
    %2862 = vmatpush1.msra.mxu0 %v2861
    %v2863 = vand.u32 %v1069, 4294901760
    %2864 = vmatprep.subr.mxu0 %v2863
    %v2865 = vand.u32 %v1068, 4294901760
    %2866 = vmatpush1.msra.mxu0 %v2865
    %2867 = vmatprep.subr.mxu0 0.0
    %2868 = vmatpush2.msra.mxu0 0.0
    %2869 = vmatprep.subr.mxu0 0.0
    %2870 = vmatpush2.msra.mxu0 0.0
    %2871 = vmatprep.subr.mxu0 0.0
    %2872 = vmatpush2.msra.mxu0 0.0
    %2873 = vmatprep.subr.mxu0 0.0
    %2874 = vmatpush2.msra.mxu0 0.0
    %2875 = vmatprep.subr.mxu0 0.0
    %2876 = vmatpush2.msra.mxu0 0.0
    %2877 = vmatprep.subr.mxu0 0.0
    %2878 = vmatpush2.msra.mxu0 0.0
    %2879 = vmatprep.subr.mxu0 0.0
    %2880 = vmatpush2.msra.mxu0 0.0
    %2881 = vmatprep.subr.mxu0 0.0
    %2882 = vmatpush2.msra.mxu0 0.0
    %2883 = vmatprep.subr.mxu0 0.0
    %2884 = vmatpush2.msra.mxu0 0.0
    %2885 = vmatprep.subr.mxu0 0.0
    %2886 = vmatpush2.msra.mxu0 0.0
    %2887 = vmatprep.subr.mxu0 0.0
    %2888 = vmatpush2.msra.mxu0 0.0
    %2889 = vmatprep.subr.mxu0 0.0
    %2890 = vmatpush2.msra.mxu0 0.0
    %2891 = vmatprep.subr.mxu0 0.0
    %2892 = vmatpush2.msra.mxu0 0.0
    %2893 = vmatprep.subr.mxu0 0.0
    %2894 = vmatpush2.msra.mxu0 0.0
    %2895 = vmatprep.subr.mxu0 0.0
    %2896 = vmatpush2.msra.mxu0 0.0
    %2897 = vmatprep.subr.mxu0 0.0
    %2898 = vmatpush2.msra.mxu0 0.0
    %2899 = vmatprep.mubr.f32.mxu0 0.0
    %v2900 = vand.u32 %v1078, 4294901760
    %2901 = vmatmul.mubr.f32.gmra.mxu0 %v2900
    %v2902 = vpop.f32.mrf.mxu0
    %v2903 = vadd.f32 %v2823, %v2902
    %v2904 = vpop.f32.mrf.mxu0
    %v2905 = vadd.f32 %v2825, %v2904
    %2906 = vdwg.mxu0
    %2907 = vst [vmem:[#allocation5] sm:$0xff] %v56
    %2908 = vst [vmem:[#allocation5 + $0x8] sm:$0xff] %v57
    %2909 = vst [vmem:[#allocation5 + $0x10] sm:$0xff] %v2903
    %2910 = vst [vmem:[#allocation5 + $0x18] sm:$0xff] %v2905
    %s2911 = scalar_lea.vmem %s0, 16
    %v2912 = vld [vmem:[%s2911] sm:$0xff]
    %v2913 = vld [vmem:[%s2911 + $0x8] sm:$0xff]
    %v2914 = vmul.f32 %v2912, %v61
    %v2915 = vmul.f32 %v2913, %v61
    %v2916 = vadd.f32 %v2914, %v67
    %v2917 = vadd.f32 %v2915, %v67
    %v2918 = vmax.f32 %v2916, 0.0
    %v2919 = vmax.f32 %v2917, 0.0
    %2920 = vmatprep.subr.mxu0 0.0
    %2921 = vmatpush1.msra.mxu0 0.0
    %2922 = vmatprep.subr.mxu0 0.0
    %2923 = vmatpush1.msra.mxu0 0.0
    %2924 = vmatprep.subr.mxu0 0.0
    %2925 = vmatpush1.msra.mxu0 0.0
    %2926 = vmatprep.subr.mxu0 0.0
    %2927 = vmatpush1.msra.mxu0 0.0
    %2928 = vmatprep.subr.mxu0 0.0
    %2929 = vmatpush1.msra.mxu0 0.0
    %2930 = vmatprep.subr.mxu0 0.0
    %2931 = vmatpush1.msra.mxu0 0.0
    %2932 = vmatprep.subr.mxu0 0.0
    %2933 = vmatpush1.msra.mxu0 0.0
    %2934 = vmatprep.subr.mxu0 0.0
    %2935 = vmatpush1.msra.mxu0 0.0
    %2936 = vmatprep.subr.mxu0 0.0
    %2937 = vmatpush1.msra.mxu0 0.0
    %2938 = vmatprep.subr.mxu0 0.0
    %2939 = vmatpush1.msra.mxu0 0.0
    %2940 = vmatprep.subr.mxu0 0.0
    %2941 = vmatpush1.msra.mxu0 0.0
    %2942 = vmatprep.subr.mxu0 0.0
    %2943 = vmatpush1.msra.mxu0 0.0
    %2944 = vmatprep.subr.mxu0 0.0
    %2945 = vmatpush1.msra.mxu0 0.0
    %2946 = vmatprep.subr.mxu0 0.0
    %2947 = vmatpush1.msra.mxu0 0.0
    %2948 = vmatprep.subr.mxu0 0.0
    %2949 = vmatpush1.msra.mxu0 0.0
    %v2950 = vand.u32 %v2919, 4294901760
    %2951 = vmatprep.subr.mxu0 %v2950
    %v2952 = vand.u32 %v2918, 4294901760
    %2953 = vmatpush1.msra.mxu0 %v2952
    %2954 = vmatprep.subr.mxu0 0.0
    %2955 = vmatpush2.msra.mxu0 0.0
    %2956 = vmatprep.subr.mxu0 0.0
    %2957 = vmatpush2.msra.mxu0 0.0
    %2958 = vmatprep.subr.mxu0 0.0
    %2959 = vmatpush2.msra.mxu0 0.0
    %2960 = vmatprep.subr.mxu0 0.0
    %2961 = vmatpush2.msra.mxu0 0.0
    %2962 = vmatprep.subr.mxu0 0.0
    %2963 = vmatpush2.msra.mxu0 0.0
    %2964 = vmatprep.subr.mxu0 0.0
    %2965 = vmatpush2.msra.mxu0 0.0
    %2966 = vmatprep.subr.mxu0 0.0
    %2967 = vmatpush2.msra.mxu0 0.0
    %2968 = vmatprep.subr.mxu0 0.0
    %2969 = vmatpush2.msra.mxu0 0.0
    %2970 = vmatprep.subr.mxu0 0.0
    %2971 = vmatpush2.msra.mxu0 0.0
    %2972 = vmatprep.subr.mxu0 0.0
    %2973 = vmatpush2.msra.mxu0 0.0
    %2974 = vmatprep.subr.mxu0 0.0
    %2975 = vmatpush2.msra.mxu0 0.0
    %2976 = vmatprep.subr.mxu0 0.0
    %2977 = vmatpush2.msra.mxu0 0.0
    %2978 = vmatprep.subr.mxu0 0.0
    %2979 = vmatpush2.msra.mxu0 0.0
    %2980 = vmatprep.subr.mxu0 0.0
    %2981 = vmatpush2.msra.mxu0 0.0
    %2982 = vmatprep.subr.mxu0 0.0
    %2983 = vmatpush2.msra.mxu0 0.0
    %2984 = vmatprep.subr.mxu0 0.0
    %2985 = vmatpush2.msra.mxu0 0.0
    %2986 = vmatprep.mubr.f32.mxu0 0.0
    %v2987 = vand.u32 %v94, 4294901760
    %v2988 = vsub.f32 %v94, %v2987
    %v2989 = vand.u32 %v2988, 4294901760
    %v2990 = vsub.f32 %v2988, %v2989
    %v2991 = vand.u32 %v2990, 4294901760
    %2992 = vmatmul.mubr.f32.gmra.mxu0 %v2991
    %v2993 = vpop.f32.mrf.mxu0
    %v2994 = vadd.f32 %v76, %v2993
    %v2995 = vpop.f32.mrf.mxu0
    %v2996 = vadd.f32 %v76, %v2995
    %2997 = vmatprep.mubr.f32.mxu0 0.0
    %v2998 = vand.u32 %v96, 4294901760
    %v2999 = vsub.f32 %v96, %v2998
    %v3000 = vand.u32 %v2999, 4294901760
    %v3001 = vsub.f32 %v2999, %v3000
    %v3002 = vand.u32 %v3001, 4294901760
    %3003 = vmatmul.mubr.f32.gmra.mxu0 %v3002
    %v3004 = vpop.f32.mrf.mxu0
    %v3005 = vadd.f32 %v81, %v3004
    %v3006 = vpop.f32.mrf.mxu0
    %v3007 = vadd.f32 %v81, %v3006
    %3008 = vmatprep.mubr.f32.mxu0 0.0
    %v3009 = vand.u32 %v98, 4294901760
    %v3010 = vsub.f32 %v98, %v3009
    %v3011 = vand.u32 %v3010, 4294901760
    %v3012 = vsub.f32 %v3010, %v3011
    %v3013 = vand.u32 %v3012, 4294901760
    %3014 = vmatmul.mubr.f32.gmra.mxu0 %v3013
    %v3015 = vpop.f32.mrf.mxu0
    %v3016 = vadd.f32 %v86, %v3015
    %v3017 = vpop.f32.mrf.mxu0
    %v3018 = vadd.f32 %v86, %v3017
    %3019 = vmatprep.mubr.f32.mxu0 0.0
    %v3020 = vand.u32 %v100, 4294901760
    %v3021 = vsub.f32 %v100, %v3020
    %v3022 = vand.u32 %v3021, 4294901760
    %v3023 = vsub.f32 %v3021, %v3022
    %v3024 = vand.u32 %v3023, 4294901760
    %3025 = vmatmul.mubr.f32.gmra.mxu0 %v3024
    %v3026 = vpop.f32.mrf.mxu0
    %v3027 = vadd.f32 %v91, %v3026
    %v3028 = vpop.f32.mrf.mxu0
    %v3029 = vadd.f32 %v91, %v3028
    %3030 = vdwg.mxu0
    %3031 = vmatprep.subr.mxu0 0.0
    %3032 = vmatpush1.msra.mxu0 0.0
    %3033 = vmatprep.subr.mxu0 0.0
    %3034 = vmatpush1.msra.mxu0 0.0
    %3035 = vmatprep.subr.mxu0 0.0
    %3036 = vmatpush1.msra.mxu0 0.0
    %3037 = vmatprep.subr.mxu0 0.0
    %3038 = vmatpush1.msra.mxu0 0.0
    %3039 = vmatprep.subr.mxu0 0.0
    %3040 = vmatpush1.msra.mxu0 0.0
    %3041 = vmatprep.subr.mxu0 0.0
    %3042 = vmatpush1.msra.mxu0 0.0
    %3043 = vmatprep.subr.mxu0 0.0
    %3044 = vmatpush1.msra.mxu0 0.0
    %3045 = vmatprep.subr.mxu0 0.0
    %3046 = vmatpush1.msra.mxu0 0.0
    %3047 = vmatprep.subr.mxu0 0.0
    %3048 = vmatpush1.msra.mxu0 0.0
    %3049 = vmatprep.subr.mxu0 0.0
    %3050 = vmatpush1.msra.mxu0 0.0
    %3051 = vmatprep.subr.mxu0 0.0
    %3052 = vmatpush1.msra.mxu0 0.0
    %3053 = vmatprep.subr.mxu0 0.0
    %3054 = vmatpush1.msra.mxu0 0.0
    %3055 = vmatprep.subr.mxu0 0.0
    %3056 = vmatpush1.msra.mxu0 0.0
    %3057 = vmatprep.subr.mxu0 0.0
    %3058 = vmatpush1.msra.mxu0 0.0
    %3059 = vmatprep.subr.mxu0 0.0
    %3060 = vmatpush1.msra.mxu0 0.0
    %v3061 = vand.u32 %v2919, 4294901760
    %v3062 = vsub.f32 %v2919, %v3061
    %v3063 = vand.u32 %v3062, 4294901760
    %v3064 = vsub.f32 %v3062, %v3063
    %v3065 = vand.u32 %v3064, 4294901760
    %3066 = vmatprep.subr.mxu0 %v3065
    %v3067 = vand.u32 %v2918, 4294901760
    %v3068 = vsub.f32 %v2918, %v3067
    %v3069 = vand.u32 %v3068, 4294901760
    %v3070 = vsub.f32 %v3068, %v3069
    %v3071 = vand.u32 %v3070, 4294901760
    %3072 = vmatpush1.msra.mxu0 %v3071
    %3073 = vmatprep.subr.mxu0 0.0
    %3074 = vmatpush2.msra.mxu0 0.0
    %3075 = vmatprep.subr.mxu0 0.0
    %3076 = vmatpush2.msra.mxu0 0.0
    %3077 = vmatprep.subr.mxu0 0.0
    %3078 = vmatpush2.msra.mxu0 0.0
    %3079 = vmatprep.subr.mxu0 0.0
    %3080 = vmatpush2.msra.mxu0 0.0
    %3081 = vmatprep.subr.mxu0 0.0
    %3082 = vmatpush2.msra.mxu0 0.0
    %3083 = vmatprep.subr.mxu0 0.0
    %3084 = vmatpush2.msra.mxu0 0.0
    %3085 = vmatprep.subr.mxu0 0.0
    %3086 = vmatpush2.msra.mxu0 0.0
    %3087 = vmatprep.subr.mxu0 0.0
    %3088 = vmatpush2.msra.mxu0 0.0
    %3089 = vmatprep.subr.mxu0 0.0
    %3090 = vmatpush2.msra.mxu0 0.0
    %3091 = vmatprep.subr.mxu0 0.0
    %3092 = vmatpush2.msra.mxu0 0.0
    %3093 = vmatprep.subr.mxu0 0.0
    %3094 = vmatpush2.msra.mxu0 0.0
    %3095 = vmatprep.subr.mxu0 0.0
    %3096 = vmatpush2.msra.mxu0 0.0
    %3097 = vmatprep.subr.mxu0 0.0
    %3098 = vmatpush2.msra.mxu0 0.0
    %3099 = vmatprep.subr.mxu0 0.0
    %3100 = vmatpush2.msra.mxu0 0.0
    %3101 = vmatprep.subr.mxu0 0.0
    %3102 = vmatpush2.msra.mxu0 0.0
    %3103 = vmatprep.subr.mxu0 0.0
    %3104 = vmatpush2.msra.mxu0 0.0
    %3105 = vmatprep.mubr.f32.mxu0 0.0
    %v3106 = vand.u32 %v94, 4294901760
    %3107 = vmatmul.mubr.f32.gmra.mxu0 %v3106
    %v3108 = vpop.f32.mrf.mxu0
    %v3109 = vadd.f32 %v2994, %v3108
    %v3110 = vpop.f32.mrf.mxu0
    %v3111 = vadd.f32 %v2996, %v3110
    %3112 = vmatprep.mubr.f32.mxu0 0.0
    %v3113 = vand.u32 %v96, 4294901760
    %3114 = vmatmul.mubr.f32.gmra.mxu0 %v3113
    %v3115 = vpop.f32.mrf.mxu0
    %v3116 = vadd.f32 %v3005, %v3115
    %v3117 = vpop.f32.mrf.mxu0
    %v3118 = vadd.f32 %v3007, %v3117
    %3119 = vmatprep.mubr.f32.mxu0 0.0
    %v3120 = vand.u32 %v98, 4294901760
    %3121 = vmatmul.mubr.f32.gmra.mxu0 %v3120
    %v3122 = vpop.f32.mrf.mxu0
    %v3123 = vadd.f32 %v3016, %v3122
    %v3124 = vpop.f32.mrf.mxu0
    %v3125 = vadd.f32 %v3018, %v3124
    %3126 = vmatprep.mubr.f32.mxu0 0.0
    %v3127 = vand.u32 %v100, 4294901760
    %3128 = vmatmul.mubr.f32.gmra.mxu0 %v3127
    %v3129 = vpop.f32.mrf.mxu0
    %v3130 = vadd.f32 %v3027, %v3129
    %v3131 = vpop.f32.mrf.mxu0
    %v3132 = vadd.f32 %v3029, %v3131
    %3133 = vdwg.mxu0
    %3134 = vmatprep.subr.mxu0 0.0
    %3135 = vmatpush1.msra.mxu0 0.0
    %3136 = vmatprep.subr.mxu0 0.0
    %3137 = vmatpush1.msra.mxu0 0.0
    %3138 = vmatprep.subr.mxu0 0.0
    %3139 = vmatpush1.msra.mxu0 0.0
    %3140 = vmatprep.subr.mxu0 0.0
    %3141 = vmatpush1.msra.mxu0 0.0
    %3142 = vmatprep.subr.mxu0 0.0
    %3143 = vmatpush1.msra.mxu0 0.0
    %3144 = vmatprep.subr.mxu0 0.0
    %3145 = vmatpush1.msra.mxu0 0.0
    %3146 = vmatprep.subr.mxu0 0.0
    %3147 = vmatpush1.msra.mxu0 0.0
    %3148 = vmatprep.subr.mxu0 0.0
    %3149 = vmatpush1.msra.mxu0 0.0
    %3150 = vmatprep.subr.mxu0 0.0
    %3151 = vmatpush1.msra.mxu0 0.0
    %3152 = vmatprep.subr.mxu0 0.0
    %3153 = vmatpush1.msra.mxu0 0.0
    %3154 = vmatprep.subr.mxu0 0.0
    %3155 = vmatpush1.msra.mxu0 0.0
    %3156 = vmatprep.subr.mxu0 0.0
    %3157 = vmatpush1.msra.mxu0 0.0
    %3158 = vmatprep.subr.mxu0 0.0
    %3159 = vmatpush1.msra.mxu0 0.0
    %3160 = vmatprep.subr.mxu0 0.0
    %3161 = vmatpush1.msra.mxu0 0.0
    %3162 = vmatprep.subr.mxu0 0.0
    %3163 = vmatpush1.msra.mxu0 0.0
    %v3164 = vand.u32 %v2919, 4294901760
    %v3165 = vsub.f32 %v2919, %v3164
    %3166 = vmatprep.subr.mxu0 %v3165
    %v3167 = vand.u32 %v2918, 4294901760
    %v3168 = vsub.f32 %v2918, %v3167
    %3169 = vmatpush1.msra.mxu0 %v3168
    %3170 = vmatprep.subr.mxu0 0.0
    %3171 = vmatpush2.msra.mxu0 0.0
    %3172 = vmatprep.subr.mxu0 0.0
    %3173 = vmatpush2.msra.mxu0 0.0
    %3174 = vmatprep.subr.mxu0 0.0
    %3175 = vmatpush2.msra.mxu0 0.0
    %3176 = vmatprep.subr.mxu0 0.0
    %3177 = vmatpush2.msra.mxu0 0.0
    %3178 = vmatprep.subr.mxu0 0.0
    %3179 = vmatpush2.msra.mxu0 0.0
    %3180 = vmatprep.subr.mxu0 0.0
    %3181 = vmatpush2.msra.mxu0 0.0
    %3182 = vmatprep.subr.mxu0 0.0
    %3183 = vmatpush2.msra.mxu0 0.0
    %3184 = vmatprep.subr.mxu0 0.0
    %3185 = vmatpush2.msra.mxu0 0.0
    %3186 = vmatprep.subr.mxu0 0.0
    %3187 = vmatpush2.msra.mxu0 0.0
    %3188 = vmatprep.subr.mxu0 0.0
    %3189 = vmatpush2.msra.mxu0 0.0
    %3190 = vmatprep.subr.mxu0 0.0
    %3191 = vmatpush2.msra.mxu0 0.0
    %3192 = vmatprep.subr.mxu0 0.0
    %3193 = vmatpush2.msra.mxu0 0.0
    %3194 = vmatprep.subr.mxu0 0.0
    %3195 = vmatpush2.msra.mxu0 0.0
    %3196 = vmatprep.subr.mxu0 0.0
    %3197 = vmatpush2.msra.mxu0 0.0
    %3198 = vmatprep.subr.mxu0 0.0
    %3199 = vmatpush2.msra.mxu0 0.0
    %3200 = vmatprep.subr.mxu0 0.0
    %3201 = vmatpush2.msra.mxu0 0.0
    %3202 = vmatprep.mubr.f32.mxu0 0.0
    %v3203 = vand.u32 %v94, 4294901760
    %v3204 = vsub.f32 %v94, %v3203
    %3205 = vmatmul.mubr.f32.gmra.mxu0 %v3204
    %v3206 = vpop.f32.mrf.mxu0
    %v3207 = vadd.f32 %v3109, %v3206
    %v3208 = vpop.f32.mrf.mxu0
    %v3209 = vadd.f32 %v3111, %v3208
    %3210 = vmatprep.mubr.f32.mxu0 0.0
    %v3211 = vand.u32 %v96, 4294901760
    %v3212 = vsub.f32 %v96, %v3211
    %3213 = vmatmul.mubr.f32.gmra.mxu0 %v3212
    %v3214 = vpop.f32.mrf.mxu0
    %v3215 = vadd.f32 %v3116, %v3214
    %v3216 = vpop.f32.mrf.mxu0
    %v3217 = vadd.f32 %v3118, %v3216
    %3218 = vmatprep.mubr.f32.mxu0 0.0
    %v3219 = vand.u32 %v98, 4294901760
    %v3220 = vsub.f32 %v98, %v3219
    %3221 = vmatmul.mubr.f32.gmra.mxu0 %v3220
    %v3222 = vpop.f32.mrf.mxu0
    %v3223 = vadd.f32 %v3123, %v3222
    %v3224 = vpop.f32.mrf.mxu0
    %v3225 = vadd.f32 %v3125, %v3224
    %3226 = vmatprep.mubr.f32.mxu0 0.0
    %v3227 = vand.u32 %v100, 4294901760
    %v3228 = vsub.f32 %v100, %v3227
    %3229 = vmatmul.mubr.f32.gmra.mxu0 %v3228
    %v3230 = vpop.f32.mrf.mxu0
    %v3231 = vadd.f32 %v3130, %v3230
    %v3232 = vpop.f32.mrf.mxu0
    %v3233 = vadd.f32 %v3132, %v3232
    %3234 = vdwg.mxu0
    %3235 = vmatprep.subr.mxu0 0.0
    %3236 = vmatpush1.msra.mxu0 0.0
    %3237 = vmatprep.subr.mxu0 0.0
    %3238 = vmatpush1.msra.mxu0 0.0
    %3239 = vmatprep.subr.mxu0 0.0
    %3240 = vmatpush1.msra.mxu0 0.0
    %3241 = vmatprep.subr.mxu0 0.0
    %3242 = vmatpush1.msra.mxu0 0.0
    %3243 = vmatprep.subr.mxu0 0.0
    %3244 = vmatpush1.msra.mxu0 0.0
    %3245 = vmatprep.subr.mxu0 0.0
    %3246 = vmatpush1.msra.mxu0 0.0
    %3247 = vmatprep.subr.mxu0 0.0
    %3248 = vmatpush1.msra.mxu0 0.0
    %3249 = vmatprep.subr.mxu0 0.0
    %3250 = vmatpush1.msra.mxu0 0.0
    %3251 = vmatprep.subr.mxu0 0.0
    %3252 = vmatpush1.msra.mxu0 0.0
    %3253 = vmatprep.subr.mxu0 0.0
    %3254 = vmatpush1.msra.mxu0 0.0
    %3255 = vmatprep.subr.mxu0 0.0
    %3256 = vmatpush1.msra.mxu0 0.0
    %3257 = vmatprep.subr.mxu0 0.0
    %3258 = vmatpush1.msra.mxu0 0.0
    %3259 = vmatprep.subr.mxu0 0.0
    %3260 = vmatpush1.msra.mxu0 0.0
    %3261 = vmatprep.subr.mxu0 0.0
    %3262 = vmatpush1.msra.mxu0 0.0
    %3263 = vmatprep.subr.mxu0 0.0
    %3264 = vmatpush1.msra.mxu0 0.0
    %v3265 = vand.u32 %v2919, 4294901760
    %3266 = vmatprep.subr.mxu0 %v3265
    %v3267 = vand.u32 %v2918, 4294901760
    %3268 = vmatpush1.msra.mxu0 %v3267
    %3269 = vmatprep.subr.mxu0 0.0
    %3270 = vmatpush2.msra.mxu0 0.0
    %3271 = vmatprep.subr.mxu0 0.0
    %3272 = vmatpush2.msra.mxu0 0.0
    %3273 = vmatprep.subr.mxu0 0.0
    %3274 = vmatpush2.msra.mxu0 0.0
    %3275 = vmatprep.subr.mxu0 0.0
    %3276 = vmatpush2.msra.mxu0 0.0
    %3277 = vmatprep.subr.mxu0 0.0
    %3278 = vmatpush2.msra.mxu0 0.0
    %3279 = vmatprep.subr.mxu0 0.0
    %3280 = vmatpush2.msra.mxu0 0.0
    %3281 = vmatprep.subr.mxu0 0.0
    %3282 = vmatpush2.msra.mxu0 0.0
    %3283 = vmatprep.subr.mxu0 0.0
    %3284 = vmatpush2.msra.mxu0 0.0
    %3285 = vmatprep.subr.mxu0 0.0
    %3286 = vmatpush2.msra.mxu0 0.0
    %3287 = vmatprep.subr.mxu0 0.0
    %3288 = vmatpush2.msra.mxu0 0.0
    %3289 = vmatprep.subr.mxu0 0.0
    %3290 = vmatpush2.msra.mxu0 0.0
    %3291 = vmatprep.subr.mxu0 0.0
    %3292 = vmatpush2.msra.mxu0 0.0
    %3293 = vmatprep.subr.mxu0 0.0
    %3294 = vmatpush2.msra.mxu0 0.0
    %3295 = vmatprep.subr.mxu0 0.0
    %3296 = vmatpush2.msra.mxu0 0.0
    %3297 = vmatprep.subr.mxu0 0.0
    %3298 = vmatpush2.msra.mxu0 0.0
    %3299 = vmatprep.subr.mxu0 0.0
    %3300 = vmatpush2.msra.mxu0 0.0
    %3301 = vmatprep.mubr.f32.mxu0 0.0
    %v3302 = vand.u32 %v94, 4294901760
    %v3303 = vsub.f32 %v94, %v3302
    %v3304 = vand.u32 %v3303, 4294901760
    %3305 = vmatmul.mubr.f32.gmra.mxu0 %v3304
    %v3306 = vpop.f32.mrf.mxu0
    %v3307 = vadd.f32 %v3207, %v3306
    %v3308 = vpop.f32.mrf.mxu0
    %v3309 = vadd.f32 %v3209, %v3308
    %3310 = vmatprep.mubr.f32.mxu0 0.0
    %v3311 = vand.u32 %v96, 4294901760
    %v3312 = vsub.f32 %v96, %v3311
    %v3313 = vand.u32 %v3312, 4294901760
    %3314 = vmatmul.mubr.f32.gmra.mxu0 %v3313
    %v3315 = vpop.f32.mrf.mxu0
    %v3316 = vadd.f32 %v3215, %v3315
    %v3317 = vpop.f32.mrf.mxu0
    %v3318 = vadd.f32 %v3217, %v3317
    %3319 = vmatprep.mubr.f32.mxu0 0.0
    %v3320 = vand.u32 %v98, 4294901760
    %v3321 = vsub.f32 %v98, %v3320
    %v3322 = vand.u32 %v3321, 4294901760
    %3323 = vmatmul.mubr.f32.gmra.mxu0 %v3322
    %v3324 = vpop.f32.mrf.mxu0
    %v3325 = vadd.f32 %v3223, %v3324
    %v3326 = vpop.f32.mrf.mxu0
    %v3327 = vadd.f32 %v3225, %v3326
    %3328 = vmatprep.mubr.f32.mxu0 0.0
    %v3329 = vand.u32 %v100, 4294901760
    %v3330 = vsub.f32 %v100, %v3329
    %v3331 = vand.u32 %v3330, 4294901760
    %3332 = vmatmul.mubr.f32.gmra.mxu0 %v3331
    %v3333 = vpop.f32.mrf.mxu0
    %v3334 = vadd.f32 %v3231, %v3333
    %v3335 = vpop.f32.mrf.mxu0
    %v3336 = vadd.f32 %v3233, %v3335
    %3337 = vdwg.mxu0
    %3338 = vmatprep.subr.mxu0 0.0
    %3339 = vmatpush1.msra.mxu0 0.0
    %3340 = vmatprep.subr.mxu0 0.0
    %3341 = vmatpush1.msra.mxu0 0.0
    %3342 = vmatprep.subr.mxu0 0.0
    %3343 = vmatpush1.msra.mxu0 0.0
    %3344 = vmatprep.subr.mxu0 0.0
    %3345 = vmatpush1.msra.mxu0 0.0
    %3346 = vmatprep.subr.mxu0 0.0
    %3347 = vmatpush1.msra.mxu0 0.0
    %3348 = vmatprep.subr.mxu0 0.0
    %3349 = vmatpush1.msra.mxu0 0.0
    %3350 = vmatprep.subr.mxu0 0.0
    %3351 = vmatpush1.msra.mxu0 0.0
    %3352 = vmatprep.subr.mxu0 0.0
    %3353 = vmatpush1.msra.mxu0 0.0
    %3354 = vmatprep.subr.mxu0 0.0
    %3355 = vmatpush1.msra.mxu0 0.0
    %3356 = vmatprep.subr.mxu0 0.0
    %3357 = vmatpush1.msra.mxu0 0.0
    %3358 = vmatprep.subr.mxu0 0.0
    %3359 = vmatpush1.msra.mxu0 0.0
    %3360 = vmatprep.subr.mxu0 0.0
    %3361 = vmatpush1.msra.mxu0 0.0
    %3362 = vmatprep.subr.mxu0 0.0
    %3363 = vmatpush1.msra.mxu0 0.0
    %3364 = vmatprep.subr.mxu0 0.0
    %3365 = vmatpush1.msra.mxu0 0.0
    %3366 = vmatprep.subr.mxu0 0.0
    %3367 = vmatpush1.msra.mxu0 0.0
    %v3368 = vand.u32 %v2919, 4294901760
    %v3369 = vsub.f32 %v2919, %v3368
    %v3370 = vand.u32 %v3369, 4294901760
    %3371 = vmatprep.subr.mxu0 %v3370
    %v3372 = vand.u32 %v2918, 4294901760
    %v3373 = vsub.f32 %v2918, %v3372
    %v3374 = vand.u32 %v3373, 4294901760
    %3375 = vmatpush1.msra.mxu0 %v3374
    %3376 = vmatprep.subr.mxu0 0.0
    %3377 = vmatpush2.msra.mxu0 0.0
    %3378 = vmatprep.subr.mxu0 0.0
    %3379 = vmatpush2.msra.mxu0 0.0
    %3380 = vmatprep.subr.mxu0 0.0
    %3381 = vmatpush2.msra.mxu0 0.0
    %3382 = vmatprep.subr.mxu0 0.0
    %3383 = vmatpush2.msra.mxu0 0.0
    %3384 = vmatprep.subr.mxu0 0.0
    %3385 = vmatpush2.msra.mxu0 0.0
    %3386 = vmatprep.subr.mxu0 0.0
    %3387 = vmatpush2.msra.mxu0 0.0
    %3388 = vmatprep.subr.mxu0 0.0
    %3389 = vmatpush2.msra.mxu0 0.0
    %3390 = vmatprep.subr.mxu0 0.0
    %3391 = vmatpush2.msra.mxu0 0.0
    %3392 = vmatprep.subr.mxu0 0.0
    %3393 = vmatpush2.msra.mxu0 0.0
    %3394 = vmatprep.subr.mxu0 0.0
    %3395 = vmatpush2.msra.mxu0 0.0
    %3396 = vmatprep.subr.mxu0 0.0
    %3397 = vmatpush2.msra.mxu0 0.0
    %3398 = vmatprep.subr.mxu0 0.0
    %3399 = vmatpush2.msra.mxu0 0.0
    %3400 = vmatprep.subr.mxu0 0.0
    %3401 = vmatpush2.msra.mxu0 0.0
    %3402 = vmatprep.subr.mxu0 0.0
    %3403 = vmatpush2.msra.mxu0 0.0
    %3404 = vmatprep.subr.mxu0 0.0
    %3405 = vmatpush2.msra.mxu0 0.0
    %3406 = vmatprep.subr.mxu0 0.0
    %3407 = vmatpush2.msra.mxu0 0.0
    %3408 = vmatprep.mubr.f32.mxu0 0.0
    %v3409 = vand.u32 %v94, 4294901760
    %3410 = vmatmul.mubr.f32.gmra.mxu0 %v3409
    %v3411 = vpop.f32.mrf.mxu0
    %v3412 = vadd.f32 %v3307, %v3411
    %v3413 = vpop.f32.mrf.mxu0
    %v3414 = vadd.f32 %v3309, %v3413
    %3415 = vmatprep.mubr.f32.mxu0 0.0
    %v3416 = vand.u32 %v96, 4294901760
    %3417 = vmatmul.mubr.f32.gmra.mxu0 %v3416
    %v3418 = vpop.f32.mrf.mxu0
    %v3419 = vadd.f32 %v3316, %v3418
    %v3420 = vpop.f32.mrf.mxu0
    %v3421 = vadd.f32 %v3318, %v3420
    %3422 = vmatprep.mubr.f32.mxu0 0.0
    %v3423 = vand.u32 %v98, 4294901760
    %3424 = vmatmul.mubr.f32.gmra.mxu0 %v3423
    %v3425 = vpop.f32.mrf.mxu0
    %v3426 = vadd.f32 %v3325, %v3425
    %v3427 = vpop.f32.mrf.mxu0
    %v3428 = vadd.f32 %v3327, %v3427
    %3429 = vmatprep.mubr.f32.mxu0 0.0
    %v3430 = vand.u32 %v100, 4294901760
    %3431 = vmatmul.mubr.f32.gmra.mxu0 %v3430
    %v3432 = vpop.f32.mrf.mxu0
    %v3433 = vadd.f32 %v3334, %v3432
    %v3434 = vpop.f32.mrf.mxu0
    %v3435 = vadd.f32 %v3336, %v3434
    %3436 = vdwg.mxu0
    %3437 = vmatprep.subr.mxu0 0.0
    %3438 = vmatpush1.msra.mxu0 0.0
    %3439 = vmatprep.subr.mxu0 0.0
    %3440 = vmatpush1.msra.mxu0 0.0
    %3441 = vmatprep.subr.mxu0 0.0
    %3442 = vmatpush1.msra.mxu0 0.0
    %3443 = vmatprep.subr.mxu0 0.0
    %3444 = vmatpush1.msra.mxu0 0.0
    %3445 = vmatprep.subr.mxu0 0.0
    %3446 = vmatpush1.msra.mxu0 0.0
    %3447 = vmatprep.subr.mxu0 0.0
    %3448 = vmatpush1.msra.mxu0 0.0
    %3449 = vmatprep.subr.mxu0 0.0
    %3450 = vmatpush1.msra.mxu0 0.0
    %3451 = vmatprep.subr.mxu0 0.0
    %3452 = vmatpush1.msra.mxu0 0.0
    %3453 = vmatprep.subr.mxu0 0.0
    %3454 = vmatpush1.msra.mxu0 0.0
    %3455 = vmatprep.subr.mxu0 0.0
    %3456 = vmatpush1.msra.mxu0 0.0
    %3457 = vmatprep.subr.mxu0 0.0
    %3458 = vmatpush1.msra.mxu0 0.0
    %3459 = vmatprep.subr.mxu0 0.0
    %3460 = vmatpush1.msra.mxu0 0.0
    %3461 = vmatprep.subr.mxu0 0.0
    %3462 = vmatpush1.msra.mxu0 0.0
    %3463 = vmatprep.subr.mxu0 0.0
    %3464 = vmatpush1.msra.mxu0 0.0
    %3465 = vmatprep.subr.mxu0 0.0
    %3466 = vmatpush1.msra.mxu0 0.0
    %v3467 = vand.u32 %v2919, 4294901760
    %3468 = vmatprep.subr.mxu0 %v3467
    %v3469 = vand.u32 %v2918, 4294901760
    %3470 = vmatpush1.msra.mxu0 %v3469
    %3471 = vmatprep.subr.mxu0 0.0
    %3472 = vmatpush2.msra.mxu0 0.0
    %3473 = vmatprep.subr.mxu0 0.0
    %3474 = vmatpush2.msra.mxu0 0.0
    %3475 = vmatprep.subr.mxu0 0.0
    %3476 = vmatpush2.msra.mxu0 0.0
    %3477 = vmatprep.subr.mxu0 0.0
    %3478 = vmatpush2.msra.mxu0 0.0
    %3479 = vmatprep.subr.mxu0 0.0
    %3480 = vmatpush2.msra.mxu0 0.0
    %3481 = vmatprep.subr.mxu0 0.0
    %3482 = vmatpush2.msra.mxu0 0.0
    %3483 = vmatprep.subr.mxu0 0.0
    %3484 = vmatpush2.msra.mxu0 0.0
    %3485 = vmatprep.subr.mxu0 0.0
    %3486 = vmatpush2.msra.mxu0 0.0
    %3487 = vmatprep.subr.mxu0 0.0
    %3488 = vmatpush2.msra.mxu0 0.0
    %3489 = vmatprep.subr.mxu0 0.0
    %3490 = vmatpush2.msra.mxu0 0.0
    %3491 = vmatprep.subr.mxu0 0.0
    %3492 = vmatpush2.msra.mxu0 0.0
    %3493 = vmatprep.subr.mxu0 0.0
    %3494 = vmatpush2.msra.mxu0 0.0
    %3495 = vmatprep.subr.mxu0 0.0
    %3496 = vmatpush2.msra.mxu0 0.0
    %3497 = vmatprep.subr.mxu0 0.0
    %3498 = vmatpush2.msra.mxu0 0.0
    %3499 = vmatprep.subr.mxu0 0.0
    %3500 = vmatpush2.msra.mxu0 0.0
    %3501 = vmatprep.subr.mxu0 0.0
    %3502 = vmatpush2.msra.mxu0 0.0
    %3503 = vmatprep.mubr.f32.mxu0 0.0
    %v3504 = vand.u32 %v94, 4294901760
    %3505 = vmatmul.mubr.f32.gmra.mxu0 %v3504
    %v3506 = vpop.f32.mrf.mxu0
    %v3507 = vadd.f32 %v3412, %v3506
    %v3508 = vpop.f32.mrf.mxu0
    %v3509 = vadd.f32 %v3414, %v3508
    %3510 = vmatprep.mubr.f32.mxu0 0.0
    %v3511 = vand.u32 %v96, 4294901760
    %3512 = vmatmul.mubr.f32.gmra.mxu0 %v3511
    %v3513 = vpop.f32.mrf.mxu0
    %v3514 = vadd.f32 %v3419, %v3513
    %v3515 = vpop.f32.mrf.mxu0
    %v3516 = vadd.f32 %v3421, %v3515
    %3517 = vmatprep.mubr.f32.mxu0 0.0
    %v3518 = vand.u32 %v98, 4294901760
    %3519 = vmatmul.mubr.f32.gmra.mxu0 %v3518
    %v3520 = vpop.f32.mrf.mxu0
    %v3521 = vadd.f32 %v3426, %v3520
    %v3522 = vpop.f32.mrf.mxu0
    %v3523 = vadd.f32 %v3428, %v3522
    %3524 = vmatprep.mubr.f32.mxu0 0.0
    %v3525 = vand.u32 %v100, 4294901760
    %3526 = vmatmul.mubr.f32.gmra.mxu0 %v3525
    %v3527 = vpop.f32.mrf.mxu0
    %v3528 = vadd.f32 %v3433, %v3527
    %v3529 = vpop.f32.mrf.mxu0
    %v3530 = vadd.f32 %v3435, %v3529
    %3531 = vdwg.mxu0
    %v3532 = vmax.f32 %v3507, 0.0
    %v3533 = vmax.f32 %v3509, 0.0
    %v3534 = vmax.f32 %v3514, 0.0
    %v3535 = vmax.f32 %v3516, 0.0
    %v3536 = vmax.f32 %v3521, 0.0
    %v3537 = vmax.f32 %v3523, 0.0
    %v3538 = vmax.f32 %v3528, 0.0
    %v3539 = vmax.f32 %v3530, 0.0
    %3540 = vrot.lane.b32.xlu0 %v3532, 17
    %v3541 = vpop.permute.xlu0 %3540
    %3542 = vrot.lane.b32.xlu0 %v3534, 17
    %v3543 = vpop.permute.xlu0 %3542
    %3544 = vrot.lane.b32.xlu0 %v3536, 17
    %v3545 = vpop.permute.xlu0 %3544
    %3546 = vrot.lane.b32.xlu0 %v3538, 17
    %v3547 = vpop.permute.xlu0 %3546
    %3548 = vrot.lane.b32.xlu0 %v3533, 17
    %v3549 = vpop.permute.xlu0 %3548
    %3550 = vrot.lane.b32.xlu0 %v3535, 17
    %v3551 = vpop.permute.xlu0 %3550
    %3552 = vrot.lane.b32.xlu0 %v3537, 17
    %v3553 = vpop.permute.xlu0 %3552
    %3554 = vrot.lane.b32.xlu0 %v3539, 17
    %v3555 = vpop.permute.xlu0 %3554
    %v3556 = vsel %vm740, %v3541, %v3549
    %v3557 = vsel %vm740, %v3543, %v3551
    %v3558 = vsel %vm740, %v3545, %v3553
    %v3559 = vsel %vm740, %v3547, %v3555
    %v3560 = vsel %vm740, %v3549, %v3541
    %v3561 = vsel %vm740, %v3551, %v3543
    %v3562 = vsel %vm740, %v3553, %v3545
    %v3563 = vsel %vm740, %v3555, %v3547
    %v3564 = vmul.f32 %v3560, %v753
    %v3565 = vmul.f32 %v3556, %v757
    %v3566 = vmul.f32 %v3561, %v753
    %v3567 = vmul.f32 %v3557, %v757
    %v3568 = vmul.f32 %v3562, %v753
    %v3569 = vmul.f32 %v3558, %v757
    %v3570 = vmul.f32 %v3563, %v753
    %v3571 = vmul.f32 %v3559, %v757
    %3572 = vrot.lane.b32.xlu0 %v3532, 16
    %v3573 = vpop.permute.xlu0 %3572
    %3574 = vrot.lane.b32.xlu0 %v3534, 16
    %v3575 = vpop.permute.xlu0 %3574
    %3576 = vrot.lane.b32.xlu0 %v3536, 16
    %v3577 = vpop.permute.xlu0 %3576
    %3578 = vrot.lane.b32.xlu0 %v3538, 16
    %v3579 = vpop.permute.xlu0 %3578
    %3580 = vrot.lane.b32.xlu0 %v3533, 16
    %v3581 = vpop.permute.xlu0 %3580
    %3582 = vrot.lane.b32.xlu0 %v3535, 16
    %v3583 = vpop.permute.xlu0 %3582
    %3584 = vrot.lane.b32.xlu0 %v3537, 16
    %v3585 = vpop.permute.xlu0 %3584
    %3586 = vrot.lane.b32.xlu0 %v3539, 16
    %v3587 = vpop.permute.xlu0 %3586
    %v3588 = vsel %vm784, %v3573, %v3581
    %v3589 = vsel %vm784, %v3575, %v3583
    %v3590 = vsel %vm784, %v3577, %v3585
    %v3591 = vsel %vm784, %v3579, %v3587
    %v3592 = vsel %vm784, %v3581, %v3573
    %v3593 = vsel %vm784, %v3583, %v3575
    %v3594 = vsel %vm784, %v3585, %v3577
    %v3595 = vsel %vm784, %v3587, %v3579
    %v3596 = vmul.f32 %v3592, %v797
    %v3597 = vmul.f32 %v3588, %v801
    %v3598 = vmul.f32 %v3593, %v797
    %v3599 = vmul.f32 %v3589, %v801
    %v3600 = vmul.f32 %v3594, %v797
    %v3601 = vmul.f32 %v3590, %v801
    %v3602 = vmul.f32 %v3595, %v797
    %v3603 = vmul.f32 %v3591, %v801
    %3604 = vrot.lane.b32.xlu0 %v3532, 15
    %v3605 = vpop.permute.xlu0 %3604
    %3606 = vrot.lane.b32.xlu0 %v3534, 15
    %v3607 = vpop.permute.xlu0 %3606
    %3608 = vrot.lane.b32.xlu0 %v3536, 15
    %v3609 = vpop.permute.xlu0 %3608
    %3610 = vrot.lane.b32.xlu0 %v3538, 15
    %v3611 = vpop.permute.xlu0 %3610
    %3612 = vrot.lane.b32.xlu0 %v3533, 15
    %v3613 = vpop.permute.xlu0 %3612
    %3614 = vrot.lane.b32.xlu0 %v3535, 15
    %v3615 = vpop.permute.xlu0 %3614
    %3616 = vrot.lane.b32.xlu0 %v3537, 15
    %v3617 = vpop.permute.xlu0 %3616
    %3618 = vrot.lane.b32.xlu0 %v3539, 15
    %v3619 = vpop.permute.xlu0 %3618
    %v3620 = vsel %vm828, %v3605, %v3613
    %v3621 = vsel %vm828, %v3607, %v3615
    %v3622 = vsel %vm828, %v3609, %v3617
    %v3623 = vsel %vm828, %v3611, %v3619
    %v3624 = vsel %vm828, %v3613, %v3605
    %v3625 = vsel %vm828, %v3615, %v3607
    %v3626 = vsel %vm828, %v3617, %v3609
    %v3627 = vsel %vm828, %v3619, %v3611
    %v3628 = vmul.f32 %v3624, %v841
    %v3629 = vmul.f32 %v3620, %v845
    %v3630 = vmul.f32 %v3625, %v841
    %v3631 = vmul.f32 %v3621, %v845
    %v3632 = vmul.f32 %v3626, %v841
    %v3633 = vmul.f32 %v3622, %v845
    %v3634 = vmul.f32 %v3627, %v841
    %v3635 = vmul.f32 %v3623, %v845
    %3636 = vrot.lane.b32.xlu0 %v3532, 1
    %v3637 = vpop.permute.xlu0 %3636
    %3638 = vrot.lane.b32.xlu0 %v3534, 1
    %v3639 = vpop.permute.xlu0 %3638
    %3640 = vrot.lane.b32.xlu0 %v3536, 1
    %v3641 = vpop.permute.xlu0 %3640
    %3642 = vrot.lane.b32.xlu0 %v3538, 1
    %v3643 = vpop.permute.xlu0 %3642
    %3644 = vrot.lane.b32.xlu0 %v3533, 1
    %v3645 = vpop.permute.xlu0 %3644
    %3646 = vrot.lane.b32.xlu0 %v3535, 1
    %v3647 = vpop.permute.xlu0 %3646
    %3648 = vrot.lane.b32.xlu0 %v3537, 1
    %v3649 = vpop.permute.xlu0 %3648
    %3650 = vrot.lane.b32.xlu0 %v3539, 1
    %v3651 = vpop.permute.xlu0 %3650
    %v3652 = vsel %vm872, %v3637, %v3645
    %v3653 = vsel %vm872, %v3639, %v3647
    %v3654 = vsel %vm872, %v3641, %v3649
    %v3655 = vsel %vm872, %v3643, %v3651
    %v3656 = vsel %vm872, %v3645, %v3637
    %v3657 = vsel %vm872, %v3647, %v3639
    %v3658 = vsel %vm872, %v3649, %v3641
    %v3659 = vsel %vm872, %v3651, %v3643
    %v3660 = vmul.f32 %v3656, %v885
    %v3661 = vmul.f32 %v3652, %v889
    %v3662 = vmul.f32 %v3657, %v885
    %v3663 = vmul.f32 %v3653, %v889
    %v3664 = vmul.f32 %v3658, %v885
    %v3665 = vmul.f32 %v3654, %v889
    %v3666 = vmul.f32 %v3659, %v885
    %v3667 = vmul.f32 %v3655, %v889
    %3668 = vrot.lane.b32.xlu0 %v3532, 127
    %v3669 = vpop.permute.xlu0 %3668
    %3670 = vrot.lane.b32.xlu0 %v3534, 127
    %v3671 = vpop.permute.xlu0 %3670
    %3672 = vrot.lane.b32.xlu0 %v3536, 127
    %v3673 = vpop.permute.xlu0 %3672
    %3674 = vrot.lane.b32.xlu0 %v3538, 127
    %v3675 = vpop.permute.xlu0 %3674
    %3676 = vrot.lane.b32.xlu0 %v3533, 127
    %v3677 = vpop.permute.xlu0 %3676
    %3678 = vrot.lane.b32.xlu0 %v3535, 127
    %v3679 = vpop.permute.xlu0 %3678
    %3680 = vrot.lane.b32.xlu0 %v3537, 127
    %v3681 = vpop.permute.xlu0 %3680
    %3682 = vrot.lane.b32.xlu0 %v3539, 127
    %v3683 = vpop.permute.xlu0 %3682
    %v3684 = vsel %vm916, %v3669, %v3677
    %v3685 = vsel %vm916, %v3671, %v3679
    %v3686 = vsel %vm916, %v3673, %v3681
    %v3687 = vsel %vm916, %v3675, %v3683
    %v3688 = vsel %vm916, %v3677, %v3669
    %v3689 = vsel %vm916, %v3679, %v3671
    %v3690 = vsel %vm916, %v3681, %v3673
    %v3691 = vsel %vm916, %v3683, %v3675
    %v3692 = vmul.f32 %v3684, %v929
    %v3693 = vmul.f32 %v3688, %v933
    %v3694 = vmul.f32 %v3685, %v929
    %v3695 = vmul.f32 %v3689, %v933
    %v3696 = vmul.f32 %v3686, %v929
    %v3697 = vmul.f32 %v3690, %v933
    %v3698 = vmul.f32 %v3687, %v929
    %v3699 = vmul.f32 %v3691, %v933
    %3700 = vrot.lane.b32.xlu0 %v3532, 113
    %v3701 = vpop.permute.xlu0 %3700
    %3702 = vrot.lane.b32.xlu0 %v3534, 113
    %v3703 = vpop.permute.xlu0 %3702
    %3704 = vrot.lane.b32.xlu0 %v3536, 113
    %v3705 = vpop.permute.xlu0 %3704
    %3706 = vrot.lane.b32.xlu0 %v3538, 113
    %v3707 = vpop.permute.xlu0 %3706
    %3708 = vrot.lane.b32.xlu0 %v3533, 113
    %v3709 = vpop.permute.xlu0 %3708
    %3710 = vrot.lane.b32.xlu0 %v3535, 113
    %v3711 = vpop.permute.xlu0 %3710
    %3712 = vrot.lane.b32.xlu0 %v3537, 113
    %v3713 = vpop.permute.xlu0 %3712
    %3714 = vrot.lane.b32.xlu0 %v3539, 113
    %v3715 = vpop.permute.xlu0 %3714
    %v3716 = vsel %vm960, %v3701, %v3709
    %v3717 = vsel %vm960, %v3703, %v3711
    %v3718 = vsel %vm960, %v3705, %v3713
    %v3719 = vsel %vm960, %v3707, %v3715
    %v3720 = vsel %vm960, %v3709, %v3701
    %v3721 = vsel %vm960, %v3711, %v3703
    %v3722 = vsel %vm960, %v3713, %v3705
    %v3723 = vsel %vm960, %v3715, %v3707
    %v3724 = vmul.f32 %v3716, %v973
    %v3725 = vmul.f32 %v3720, %v977
    %v3726 = vmul.f32 %v3717, %v973
    %v3727 = vmul.f32 %v3721, %v977
    %v3728 = vmul.f32 %v3718, %v973
    %v3729 = vmul.f32 %v3722, %v977
    %v3730 = vmul.f32 %v3719, %v973
    %v3731 = vmul.f32 %v3723, %v977
    %3732 = vrot.lane.b32.xlu0 %v3532, 112
    %v3733 = vpop.permute.xlu0 %3732
    %3734 = vrot.lane.b32.xlu0 %v3534, 112
    %v3735 = vpop.permute.xlu0 %3734
    %3736 = vrot.lane.b32.xlu0 %v3536, 112
    %v3737 = vpop.permute.xlu0 %3736
    %3738 = vrot.lane.b32.xlu0 %v3538, 112
    %v3739 = vpop.permute.xlu0 %3738
    %3740 = vrot.lane.b32.xlu0 %v3533, 112
    %v3741 = vpop.permute.xlu0 %3740
    %3742 = vrot.lane.b32.xlu0 %v3535, 112
    %v3743 = vpop.permute.xlu0 %3742
    %3744 = vrot.lane.b32.xlu0 %v3537, 112
    %v3745 = vpop.permute.xlu0 %3744
    %3746 = vrot.lane.b32.xlu0 %v3539, 112
    %v3747 = vpop.permute.xlu0 %3746
    %v3748 = vsel %vm1004, %v3733, %v3741
    %v3749 = vsel %vm1004, %v3735, %v3743
    %v3750 = vsel %vm1004, %v3737, %v3745
    %v3751 = vsel %vm1004, %v3739, %v3747
    %v3752 = vsel %vm1004, %v3741, %v3733
    %v3753 = vsel %vm1004, %v3743, %v3735
    %v3754 = vsel %vm1004, %v3745, %v3737
    %v3755 = vsel %vm1004, %v3747, %v3739
    %v3756 = vmul.f32 %v3748, %v1017
    %v3757 = vmul.f32 %v3752, %v1021
    %v3758 = vmul.f32 %v3749, %v1017
    %v3759 = vmul.f32 %v3753, %v1021
    %v3760 = vmul.f32 %v3750, %v1017
    %v3761 = vmul.f32 %v3754, %v1021
    %v3762 = vmul.f32 %v3751, %v1017
    %v3763 = vmul.f32 %v3755, %v1021
    %3764 = vrot.lane.b32.xlu0 %v3532, 111
    %v3765 = vpop.permute.xlu0 %3764
    %3766 = vrot.lane.b32.xlu0 %v3534, 111
    %v3767 = vpop.permute.xlu0 %3766
    %3768 = vrot.lane.b32.xlu0 %v3536, 111
    %v3769 = vpop.permute.xlu0 %3768
    %3770 = vrot.lane.b32.xlu0 %v3538, 111
    %v3771 = vpop.permute.xlu0 %3770
    %3772 = vrot.lane.b32.xlu0 %v3533, 111
    %v3773 = vpop.permute.xlu0 %3772
    %3774 = vrot.lane.b32.xlu0 %v3535, 111
    %v3775 = vpop.permute.xlu0 %3774
    %3776 = vrot.lane.b32.xlu0 %v3537, 111
    %v3777 = vpop.permute.xlu0 %3776
    %3778 = vrot.lane.b32.xlu0 %v3539, 111
    %v3779 = vpop.permute.xlu0 %3778
    %v3780 = vsel %vm1048, %v3765, %v3773
    %v3781 = vsel %vm1048, %v3767, %v3775
    %v3782 = vsel %vm1048, %v3769, %v3777
    %v3783 = vsel %vm1048, %v3771, %v3779
    %v3784 = vsel %vm1048, %v3773, %v3765
    %v3785 = vsel %vm1048, %v3775, %v3767
    %v3786 = vsel %vm1048, %v3777, %v3769
    %v3787 = vsel %vm1048, %v3779, %v3771
    %v3788 = vmul.f32 %v3780, %v1061
    %v3789 = vmul.f32 %v3784, %v1065
    %v3790 = vmul.f32 %v3781, %v1061
    %v3791 = vmul.f32 %v3785, %v1065
    %v3792 = vmul.f32 %v3782, %v1061
    %v3793 = vmul.f32 %v3786, %v1065
    %v3794 = vmul.f32 %v3783, %v1061
    %v3795 = vmul.f32 %v3787, %v1065
    %v3796 = vand.u32 %v3667, 4294901760
    %3797 = vmatprep.subr.mxu0 %v3796
    %v3798 = vand.u32 %v3666, 4294901760
    %3799 = vmatpush1.msra.mxu0 %v3798
    %v3800 = vand.u32 %v3665, 4294901760
    %3801 = vmatprep.subr.mxu0 %v3800
    %v3802 = vand.u32 %v3664, 4294901760
    %3803 = vmatpush1.msra.mxu0 %v3802
    %v3804 = vand.u32 %v3663, 4294901760
    %3805 = vmatprep.subr.mxu0 %v3804
    %v3806 = vand.u32 %v3662, 4294901760
    %3807 = vmatpush1.msra.mxu0 %v3806
    %v3808 = vand.u32 %v3661, 4294901760
    %3809 = vmatprep.subr.mxu0 %v3808
    %v3810 = vand.u32 %v3660, 4294901760
    %3811 = vmatpush1.msra.mxu0 %v3810
    %v3812 = vand.u32 %v3635, 4294901760
    %3813 = vmatprep.subr.mxu0 %v3812
    %v3814 = vand.u32 %v3634, 4294901760
    %3815 = vmatpush1.msra.mxu0 %v3814
    %v3816 = vand.u32 %v3633, 4294901760
    %3817 = vmatprep.subr.mxu0 %v3816
    %v3818 = vand.u32 %v3632, 4294901760
    %3819 = vmatpush1.msra.mxu0 %v3818
    %v3820 = vand.u32 %v3631, 4294901760
    %3821 = vmatprep.subr.mxu0 %v3820
    %v3822 = vand.u32 %v3630, 4294901760
    %3823 = vmatpush1.msra.mxu0 %v3822
    %v3824 = vand.u32 %v3629, 4294901760
    %3825 = vmatprep.subr.mxu0 %v3824
    %v3826 = vand.u32 %v3628, 4294901760
    %3827 = vmatpush1.msra.mxu0 %v3826
    %v3828 = vand.u32 %v3603, 4294901760
    %3829 = vmatprep.subr.mxu0 %v3828
    %v3830 = vand.u32 %v3602, 4294901760
    %3831 = vmatpush1.msra.mxu0 %v3830
    %v3832 = vand.u32 %v3601, 4294901760
    %3833 = vmatprep.subr.mxu0 %v3832
    %v3834 = vand.u32 %v3600, 4294901760
    %3835 = vmatpush1.msra.mxu0 %v3834
    %v3836 = vand.u32 %v3599, 4294901760
    %3837 = vmatprep.subr.mxu0 %v3836
    %v3838 = vand.u32 %v3598, 4294901760
    %3839 = vmatpush1.msra.mxu0 %v3838
    %v3840 = vand.u32 %v3597, 4294901760
    %3841 = vmatprep.subr.mxu0 %v3840
    %v3842 = vand.u32 %v3596, 4294901760
    %3843 = vmatpush1.msra.mxu0 %v3842
    %v3844 = vand.u32 %v3571, 4294901760
    %3845 = vmatprep.subr.mxu0 %v3844
    %v3846 = vand.u32 %v3570, 4294901760
    %3847 = vmatpush1.msra.mxu0 %v3846
    %v3848 = vand.u32 %v3569, 4294901760
    %3849 = vmatprep.subr.mxu0 %v3848
    %v3850 = vand.u32 %v3568, 4294901760
    %3851 = vmatpush1.msra.mxu0 %v3850
    %v3852 = vand.u32 %v3567, 4294901760
    %3853 = vmatprep.subr.mxu0 %v3852
    %v3854 = vand.u32 %v3566, 4294901760
    %3855 = vmatpush1.msra.mxu0 %v3854
    %v3856 = vand.u32 %v3565, 4294901760
    %3857 = vmatprep.subr.mxu0 %v3856
    %v3858 = vand.u32 %v3564, 4294901760
    %3859 = vmatpush1.msra.mxu0 %v3858
    %v3860 = vand.u32 %v3763, 4294901760
    %3861 = vmatprep.subr.mxu0 %v3860
    %v3862 = vand.u32 %v3762, 4294901760
    %3863 = vmatpush2.msra.mxu0 %v3862
    %v3864 = vand.u32 %v3761, 4294901760
    %3865 = vmatprep.subr.mxu0 %v3864
    %v3866 = vand.u32 %v3760, 4294901760
    %3867 = vmatpush2.msra.mxu0 %v3866
    %v3868 = vand.u32 %v3759, 4294901760
    %3869 = vmatprep.subr.mxu0 %v3868
    %v3870 = vand.u32 %v3758, 4294901760
    %3871 = vmatpush2.msra.mxu0 %v3870
    %v3872 = vand.u32 %v3757, 4294901760
    %3873 = vmatprep.subr.mxu0 %v3872
    %v3874 = vand.u32 %v3756, 4294901760
    %3875 = vmatpush2.msra.mxu0 %v3874
    %v3876 = vand.u32 %v3731, 4294901760
    %3877 = vmatprep.subr.mxu0 %v3876
    %v3878 = vand.u32 %v3730, 4294901760
    %3879 = vmatpush2.msra.mxu0 %v3878
    %v3880 = vand.u32 %v3729, 4294901760
    %3881 = vmatprep.subr.mxu0 %v3880
    %v3882 = vand.u32 %v3728, 4294901760
    %3883 = vmatpush2.msra.mxu0 %v3882
    %v3884 = vand.u32 %v3727, 4294901760
    %3885 = vmatprep.subr.mxu0 %v3884
    %v3886 = vand.u32 %v3726, 4294901760
    %3887 = vmatpush2.msra.mxu0 %v3886
    %v3888 = vand.u32 %v3725, 4294901760
    %3889 = vmatprep.subr.mxu0 %v3888
    %v3890 = vand.u32 %v3724, 4294901760
    %3891 = vmatpush2.msra.mxu0 %v3890
    %v3892 = vand.u32 %v3699, 4294901760
    %3893 = vmatprep.subr.mxu0 %v3892
    %v3894 = vand.u32 %v3698, 4294901760
    %3895 = vmatpush2.msra.mxu0 %v3894
    %v3896 = vand.u32 %v3697, 4294901760
    %3897 = vmatprep.subr.mxu0 %v3896
    %v3898 = vand.u32 %v3696, 4294901760
    %3899 = vmatpush2.msra.mxu0 %v3898
    %v3900 = vand.u32 %v3695, 4294901760
    %3901 = vmatprep.subr.mxu0 %v3900
    %v3902 = vand.u32 %v3694, 4294901760
    %3903 = vmatpush2.msra.mxu0 %v3902
    %v3904 = vand.u32 %v3693, 4294901760
    %3905 = vmatprep.subr.mxu0 %v3904
    %v3906 = vand.u32 %v3692, 4294901760
    %3907 = vmatpush2.msra.mxu0 %v3906
    %v3908 = vand.u32 %v3539, 4294901760
    %3909 = vmatprep.subr.mxu0 %v3908
    %v3910 = vand.u32 %v3538, 4294901760
    %3911 = vmatpush2.msra.mxu0 %v3910
    %v3912 = vand.u32 %v3537, 4294901760
    %3913 = vmatprep.subr.mxu0 %v3912
    %v3914 = vand.u32 %v3536, 4294901760
    %3915 = vmatpush2.msra.mxu0 %v3914
    %v3916 = vand.u32 %v3535, 4294901760
    %3917 = vmatprep.subr.mxu0 %v3916
    %v3918 = vand.u32 %v3534, 4294901760
    %3919 = vmatpush2.msra.mxu0 %v3918
    %v3920 = vand.u32 %v3533, 4294901760
    %3921 = vmatprep.subr.mxu0 %v3920
    %v3922 = vand.u32 %v3532, 4294901760
    %3923 = vmatpush2.msra.mxu0 %v3922
    %v3924 = vand.u32 %v39, 4294901760
    %v3925 = vsub.f32 %v39, %v3924
    %v3926 = vand.u32 %v3925, 4294901760
    %v3927 = vsub.f32 %v3925, %v3926
    %v3928 = vand.u32 %v3927, 4294901760
    %3929 = vmatprep.mubr.f32.mxu0 %v3928
    %v3930 = vand.u32 %v38, 4294901760
    %v3931 = vsub.f32 %v38, %v3930
    %v3932 = vand.u32 %v3931, 4294901760
    %v3933 = vsub.f32 %v3931, %v3932
    %v3934 = vand.u32 %v3933, 4294901760
    %3935 = vmatmul.mubr.f32.gmra.mxu0 %v3934
    %v3936 = vpop.f32.mrf.mxu0
    %v3937 = vadd.f32 0.0, %v3936
    %v3938 = vpop.f32.mrf.mxu0
    %v3939 = vadd.f32 0.0, %v3938
    %3940 = vdwg.mxu0
    %v3941 = vand.u32 %v3667, 4294901760
    %v3942 = vsub.f32 %v3667, %v3941
    %v3943 = vand.u32 %v3942, 4294901760
    %v3944 = vsub.f32 %v3942, %v3943
    %v3945 = vand.u32 %v3944, 4294901760
    %3946 = vmatprep.subr.mxu0 %v3945
    %v3947 = vand.u32 %v3666, 4294901760
    %v3948 = vsub.f32 %v3666, %v3947
    %v3949 = vand.u32 %v3948, 4294901760
    %v3950 = vsub.f32 %v3948, %v3949
    %v3951 = vand.u32 %v3950, 4294901760
    %3952 = vmatpush1.msra.mxu0 %v3951
    %v3953 = vand.u32 %v3665, 4294901760
    %v3954 = vsub.f32 %v3665, %v3953
    %v3955 = vand.u32 %v3954, 4294901760
    %v3956 = vsub.f32 %v3954, %v3955
    %v3957 = vand.u32 %v3956, 4294901760
    %3958 = vmatprep.subr.mxu0 %v3957
    %v3959 = vand.u32 %v3664, 4294901760
    %v3960 = vsub.f32 %v3664, %v3959
    %v3961 = vand.u32 %v3960, 4294901760
    %v3962 = vsub.f32 %v3960, %v3961
    %v3963 = vand.u32 %v3962, 4294901760
    %3964 = vmatpush1.msra.mxu0 %v3963
    %v3965 = vand.u32 %v3663, 4294901760
    %v3966 = vsub.f32 %v3663, %v3965
    %v3967 = vand.u32 %v3966, 4294901760
    %v3968 = vsub.f32 %v3966, %v3967
    %v3969 = vand.u32 %v3968, 4294901760
    %3970 = vmatprep.subr.mxu0 %v3969
    %v3971 = vand.u32 %v3662, 4294901760
    %v3972 = vsub.f32 %v3662, %v3971
    %v3973 = vand.u32 %v3972, 4294901760
    %v3974 = vsub.f32 %v3972, %v3973
    %v3975 = vand.u32 %v3974, 4294901760
    %3976 = vmatpush1.msra.mxu0 %v3975
    %v3977 = vand.u32 %v3661, 4294901760
    %v3978 = vsub.f32 %v3661, %v3977
    %v3979 = vand.u32 %v3978, 4294901760
    %v3980 = vsub.f32 %v3978, %v3979
    %v3981 = vand.u32 %v3980, 4294901760
    %3982 = vmatprep.subr.mxu0 %v3981
    %v3983 = vand.u32 %v3660, 4294901760
    %v3984 = vsub.f32 %v3660, %v3983
    %v3985 = vand.u32 %v3984, 4294901760
    %v3986 = vsub.f32 %v3984, %v3985
    %v3987 = vand.u32 %v3986, 4294901760
    %3988 = vmatpush1.msra.mxu0 %v3987
    %v3989 = vand.u32 %v3635, 4294901760
    %v3990 = vsub.f32 %v3635, %v3989
    %v3991 = vand.u32 %v3990, 4294901760
    %v3992 = vsub.f32 %v3990, %v3991
    %v3993 = vand.u32 %v3992, 4294901760
    %3994 = vmatprep.subr.mxu0 %v3993
    %v3995 = vand.u32 %v3634, 4294901760
    %v3996 = vsub.f32 %v3634, %v3995
    %v3997 = vand.u32 %v3996, 4294901760
    %v3998 = vsub.f32 %v3996, %v3997
    %v3999 = vand.u32 %v3998, 4294901760
    %4000 = vmatpush1.msra.mxu0 %v3999
    %v4001 = vand.u32 %v3633, 4294901760
    %v4002 = vsub.f32 %v3633, %v4001
    %v4003 = vand.u32 %v4002, 4294901760
    %v4004 = vsub.f32 %v4002, %v4003
    %v4005 = vand.u32 %v4004, 4294901760
    %4006 = vmatprep.subr.mxu0 %v4005
    %v4007 = vand.u32 %v3632, 4294901760
    %v4008 = vsub.f32 %v3632, %v4007
    %v4009 = vand.u32 %v4008, 4294901760
    %v4010 = vsub.f32 %v4008, %v4009
    %v4011 = vand.u32 %v4010, 4294901760
    %4012 = vmatpush1.msra.mxu0 %v4011
    %v4013 = vand.u32 %v3631, 4294901760
    %v4014 = vsub.f32 %v3631, %v4013
    %v4015 = vand.u32 %v4014, 4294901760
    %v4016 = vsub.f32 %v4014, %v4015
    %v4017 = vand.u32 %v4016, 4294901760
    %4018 = vmatprep.subr.mxu0 %v4017
    %v4019 = vand.u32 %v3630, 4294901760
    %v4020 = vsub.f32 %v3630, %v4019
    %v4021 = vand.u32 %v4020, 4294901760
    %v4022 = vsub.f32 %v4020, %v4021
    %v4023 = vand.u32 %v4022, 4294901760
    %4024 = vmatpush1.msra.mxu0 %v4023
    %v4025 = vand.u32 %v3629, 4294901760
    %v4026 = vsub.f32 %v3629, %v4025
    %v4027 = vand.u32 %v4026, 4294901760
    %v4028 = vsub.f32 %v4026, %v4027
    %v4029 = vand.u32 %v4028, 4294901760
    %4030 = vmatprep.subr.mxu0 %v4029
    %v4031 = vand.u32 %v3628, 4294901760
    %v4032 = vsub.f32 %v3628, %v4031
    %v4033 = vand.u32 %v4032, 4294901760
    %v4034 = vsub.f32 %v4032, %v4033
    %v4035 = vand.u32 %v4034, 4294901760
    %4036 = vmatpush1.msra.mxu0 %v4035
    %v4037 = vand.u32 %v3603, 4294901760
    %v4038 = vsub.f32 %v3603, %v4037
    %v4039 = vand.u32 %v4038, 4294901760
    %v4040 = vsub.f32 %v4038, %v4039
    %v4041 = vand.u32 %v4040, 4294901760
    %4042 = vmatprep.subr.mxu0 %v4041
    %v4043 = vand.u32 %v3602, 4294901760
    %v4044 = vsub.f32 %v3602, %v4043
    %v4045 = vand.u32 %v4044, 4294901760
    %v4046 = vsub.f32 %v4044, %v4045
    %v4047 = vand.u32 %v4046, 4294901760
    %4048 = vmatpush1.msra.mxu0 %v4047
    %v4049 = vand.u32 %v3601, 4294901760
    %v4050 = vsub.f32 %v3601, %v4049
    %v4051 = vand.u32 %v4050, 4294901760
    %v4052 = vsub.f32 %v4050, %v4051
    %v4053 = vand.u32 %v4052, 4294901760
    %4054 = vmatprep.subr.mxu0 %v4053
    %v4055 = vand.u32 %v3600, 4294901760
    %v4056 = vsub.f32 %v3600, %v4055
    %v4057 = vand.u32 %v4056, 4294901760
    %v4058 = vsub.f32 %v4056, %v4057
    %v4059 = vand.u32 %v4058, 4294901760
    %4060 = vmatpush1.msra.mxu0 %v4059
    %v4061 = vand.u32 %v3599, 4294901760
    %v4062 = vsub.f32 %v3599, %v4061
    %v4063 = vand.u32 %v4062, 4294901760
    %v4064 = vsub.f32 %v4062, %v4063
    %v4065 = vand.u32 %v4064, 4294901760
    %4066 = vmatprep.subr.mxu0 %v4065
    %v4067 = vand.u32 %v3598, 4294901760
    %v4068 = vsub.f32 %v3598, %v4067
    %v4069 = vand.u32 %v4068, 4294901760
    %v4070 = vsub.f32 %v4068, %v4069
    %v4071 = vand.u32 %v4070, 4294901760
    %4072 = vmatpush1.msra.mxu0 %v4071
    %v4073 = vand.u32 %v3597, 4294901760
    %v4074 = vsub.f32 %v3597, %v4073
    %v4075 = vand.u32 %v4074, 4294901760
    %v4076 = vsub.f32 %v4074, %v4075
    %v4077 = vand.u32 %v4076, 4294901760
    %4078 = vmatprep.subr.mxu0 %v4077
    %v4079 = vand.u32 %v3596, 4294901760
    %v4080 = vsub.f32 %v3596, %v4079
    %v4081 = vand.u32 %v4080, 4294901760
    %v4082 = vsub.f32 %v4080, %v4081
    %v4083 = vand.u32 %v4082, 4294901760
    %4084 = vmatpush1.msra.mxu0 %v4083
    %v4085 = vand.u32 %v3571, 4294901760
    %v4086 = vsub.f32 %v3571, %v4085
    %v4087 = vand.u32 %v4086, 4294901760
    %v4088 = vsub.f32 %v4086, %v4087
    %v4089 = vand.u32 %v4088, 4294901760
    %4090 = vmatprep.subr.mxu0 %v4089
    %v4091 = vand.u32 %v3570, 4294901760
    %v4092 = vsub.f32 %v3570, %v4091
    %v4093 = vand.u32 %v4092, 4294901760
    %v4094 = vsub.f32 %v4092, %v4093
    %v4095 = vand.u32 %v4094, 4294901760
    %4096 = vmatpush1.msra.mxu0 %v4095
    %v4097 = vand.u32 %v3569, 4294901760
    %v4098 = vsub.f32 %v3569, %v4097
    %v4099 = vand.u32 %v4098, 4294901760
    %v4100 = vsub.f32 %v4098, %v4099
    %v4101 = vand.u32 %v4100, 4294901760
    %4102 = vmatprep.subr.mxu0 %v4101
    %v4103 = vand.u32 %v3568, 4294901760
    %v4104 = vsub.f32 %v3568, %v4103
    %v4105 = vand.u32 %v4104, 4294901760
    %v4106 = vsub.f32 %v4104, %v4105
    %v4107 = vand.u32 %v4106, 4294901760
    %4108 = vmatpush1.msra.mxu0 %v4107
    %v4109 = vand.u32 %v3567, 4294901760
    %v4110 = vsub.f32 %v3567, %v4109
    %v4111 = vand.u32 %v4110, 4294901760
    %v4112 = vsub.f32 %v4110, %v4111
    %v4113 = vand.u32 %v4112, 4294901760
    %4114 = vmatprep.subr.mxu0 %v4113
    %v4115 = vand.u32 %v3566, 4294901760
    %v4116 = vsub.f32 %v3566, %v4115
    %v4117 = vand.u32 %v4116, 4294901760
    %v4118 = vsub.f32 %v4116, %v4117
    %v4119 = vand.u32 %v4118, 4294901760
    %4120 = vmatpush1.msra.mxu0 %v4119
    %v4121 = vand.u32 %v3565, 4294901760
    %v4122 = vsub.f32 %v3565, %v4121
    %v4123 = vand.u32 %v4122, 4294901760
    %v4124 = vsub.f32 %v4122, %v4123
    %v4125 = vand.u32 %v4124, 4294901760
    %4126 = vmatprep.subr.mxu0 %v4125
    %v4127 = vand.u32 %v3564, 4294901760
    %v4128 = vsub.f32 %v3564, %v4127
    %v4129 = vand.u32 %v4128, 4294901760
    %v4130 = vsub.f32 %v4128, %v4129
    %v4131 = vand.u32 %v4130, 4294901760
    %4132 = vmatpush1.msra.mxu0 %v4131
    %v4133 = vand.u32 %v3763, 4294901760
    %v4134 = vsub.f32 %v3763, %v4133
    %v4135 = vand.u32 %v4134, 4294901760
    %v4136 = vsub.f32 %v4134, %v4135
    %v4137 = vand.u32 %v4136, 4294901760
    %4138 = vmatprep.subr.mxu0 %v4137
    %v4139 = vand.u32 %v3762, 4294901760
    %v4140 = vsub.f32 %v3762, %v4139
    %v4141 = vand.u32 %v4140, 4294901760
    %v4142 = vsub.f32 %v4140, %v4141
    %v4143 = vand.u32 %v4142, 4294901760
    %4144 = vmatpush2.msra.mxu0 %v4143
    %v4145 = vand.u32 %v3761, 4294901760
    %v4146 = vsub.f32 %v3761, %v4145
    %v4147 = vand.u32 %v4146, 4294901760
    %v4148 = vsub.f32 %v4146, %v4147
    %v4149 = vand.u32 %v4148, 4294901760
    %4150 = vmatprep.subr.mxu0 %v4149
    %v4151 = vand.u32 %v3760, 4294901760
    %v4152 = vsub.f32 %v3760, %v4151
    %v4153 = vand.u32 %v4152, 4294901760
    %v4154 = vsub.f32 %v4152, %v4153
    %v4155 = vand.u32 %v4154, 4294901760
    %4156 = vmatpush2.msra.mxu0 %v4155
    %v4157 = vand.u32 %v3759, 4294901760
    %v4158 = vsub.f32 %v3759, %v4157
    %v4159 = vand.u32 %v4158, 4294901760
    %v4160 = vsub.f32 %v4158, %v4159
    %v4161 = vand.u32 %v4160, 4294901760
    %4162 = vmatprep.subr.mxu0 %v4161
    %v4163 = vand.u32 %v3758, 4294901760
    %v4164 = vsub.f32 %v3758, %v4163
    %v4165 = vand.u32 %v4164, 4294901760
    %v4166 = vsub.f32 %v4164, %v4165
    %v4167 = vand.u32 %v4166, 4294901760
    %4168 = vmatpush2.msra.mxu0 %v4167
    %v4169 = vand.u32 %v3757, 4294901760
    %v4170 = vsub.f32 %v3757, %v4169
    %v4171 = vand.u32 %v4170, 4294901760
    %v4172 = vsub.f32 %v4170, %v4171
    %v4173 = vand.u32 %v4172, 4294901760
    %4174 = vmatprep.subr.mxu0 %v4173
    %v4175 = vand.u32 %v3756, 4294901760
    %v4176 = vsub.f32 %v3756, %v4175
    %v4177 = vand.u32 %v4176, 4294901760
    %v4178 = vsub.f32 %v4176, %v4177
    %v4179 = vand.u32 %v4178, 4294901760
    %4180 = vmatpush2.msra.mxu0 %v4179
    %v4181 = vand.u32 %v3731, 4294901760
    %v4182 = vsub.f32 %v3731, %v4181
    %v4183 = vand.u32 %v4182, 4294901760
    %v4184 = vsub.f32 %v4182, %v4183
    %v4185 = vand.u32 %v4184, 4294901760
    %4186 = vmatprep.subr.mxu0 %v4185
    %v4187 = vand.u32 %v3730, 4294901760
    %v4188 = vsub.f32 %v3730, %v4187
    %v4189 = vand.u32 %v4188, 4294901760
    %v4190 = vsub.f32 %v4188, %v4189
    %v4191 = vand.u32 %v4190, 4294901760
    %4192 = vmatpush2.msra.mxu0 %v4191
    %v4193 = vand.u32 %v3729, 4294901760
    %v4194 = vsub.f32 %v3729, %v4193
    %v4195 = vand.u32 %v4194, 4294901760
    %v4196 = vsub.f32 %v4194, %v4195
    %v4197 = vand.u32 %v4196, 4294901760
    %4198 = vmatprep.subr.mxu0 %v4197
    %v4199 = vand.u32 %v3728, 4294901760
    %v4200 = vsub.f32 %v3728, %v4199
    %v4201 = vand.u32 %v4200, 4294901760
    %v4202 = vsub.f32 %v4200, %v4201
    %v4203 = vand.u32 %v4202, 4294901760
    %4204 = vmatpush2.msra.mxu0 %v4203
    %v4205 = vand.u32 %v3727, 4294901760
    %v4206 = vsub.f32 %v3727, %v4205
    %v4207 = vand.u32 %v4206, 4294901760
    %v4208 = vsub.f32 %v4206, %v4207
    %v4209 = vand.u32 %v4208, 4294901760
    %4210 = vmatprep.subr.mxu0 %v4209
    %v4211 = vand.u32 %v3726, 4294901760
    %v4212 = vsub.f32 %v3726, %v4211
    %v4213 = vand.u32 %v4212, 4294901760
    %v4214 = vsub.f32 %v4212, %v4213
    %v4215 = vand.u32 %v4214, 4294901760
    %4216 = vmatpush2.msra.mxu0 %v4215
    %v4217 = vand.u32 %v3725, 4294901760
    %v4218 = vsub.f32 %v3725, %v4217
    %v4219 = vand.u32 %v4218, 4294901760
    %v4220 = vsub.f32 %v4218, %v4219
    %v4221 = vand.u32 %v4220, 4294901760
    %4222 = vmatprep.subr.mxu0 %v4221
    %v4223 = vand.u32 %v3724, 4294901760
    %v4224 = vsub.f32 %v3724, %v4223
    %v4225 = vand.u32 %v4224, 4294901760
    %v4226 = vsub.f32 %v4224, %v4225
    %v4227 = vand.u32 %v4226, 4294901760
    %4228 = vmatpush2.msra.mxu0 %v4227
    %v4229 = vand.u32 %v3699, 4294901760
    %v4230 = vsub.f32 %v3699, %v4229
    %v4231 = vand.u32 %v4230, 4294901760
    %v4232 = vsub.f32 %v4230, %v4231
    %v4233 = vand.u32 %v4232, 4294901760
    %4234 = vmatprep.subr.mxu0 %v4233
    %v4235 = vand.u32 %v3698, 4294901760
    %v4236 = vsub.f32 %v3698, %v4235
    %v4237 = vand.u32 %v4236, 4294901760
    %v4238 = vsub.f32 %v4236, %v4237
    %v4239 = vand.u32 %v4238, 4294901760
    %4240 = vmatpush2.msra.mxu0 %v4239
    %v4241 = vand.u32 %v3697, 4294901760
    %v4242 = vsub.f32 %v3697, %v4241
    %v4243 = vand.u32 %v4242, 4294901760
    %v4244 = vsub.f32 %v4242, %v4243
    %v4245 = vand.u32 %v4244, 4294901760
    %4246 = vmatprep.subr.mxu0 %v4245
    %v4247 = vand.u32 %v3696, 4294901760
    %v4248 = vsub.f32 %v3696, %v4247
    %v4249 = vand.u32 %v4248, 4294901760
    %v4250 = vsub.f32 %v4248, %v4249
    %v4251 = vand.u32 %v4250, 4294901760
    %4252 = vmatpush2.msra.mxu0 %v4251
    %v4253 = vand.u32 %v3695, 4294901760
    %v4254 = vsub.f32 %v3695, %v4253
    %v4255 = vand.u32 %v4254, 4294901760
    %v4256 = vsub.f32 %v4254, %v4255
    %v4257 = vand.u32 %v4256, 4294901760
    %4258 = vmatprep.subr.mxu0 %v4257
    %v4259 = vand.u32 %v3694, 4294901760
    %v4260 = vsub.f32 %v3694, %v4259
    %v4261 = vand.u32 %v4260, 4294901760
    %v4262 = vsub.f32 %v4260, %v4261
    %v4263 = vand.u32 %v4262, 4294901760
    %4264 = vmatpush2.msra.mxu0 %v4263
    %v4265 = vand.u32 %v3693, 4294901760
    %v4266 = vsub.f32 %v3693, %v4265
    %v4267 = vand.u32 %v4266, 4294901760
    %v4268 = vsub.f32 %v4266, %v4267
    %v4269 = vand.u32 %v4268, 4294901760
    %4270 = vmatprep.subr.mxu0 %v4269
    %v4271 = vand.u32 %v3692, 4294901760
    %v4272 = vsub.f32 %v3692, %v4271
    %v4273 = vand.u32 %v4272, 4294901760
    %v4274 = vsub.f32 %v4272, %v4273
    %v4275 = vand.u32 %v4274, 4294901760
    %4276 = vmatpush2.msra.mxu0 %v4275
    %v4277 = vand.u32 %v3539, 4294901760
    %v4278 = vsub.f32 %v3539, %v4277
    %v4279 = vand.u32 %v4278, 4294901760
    %v4280 = vsub.f32 %v4278, %v4279
    %v4281 = vand.u32 %v4280, 4294901760
    %4282 = vmatprep.subr.mxu0 %v4281
    %v4283 = vand.u32 %v3538, 4294901760
    %v4284 = vsub.f32 %v3538, %v4283
    %v4285 = vand.u32 %v4284, 4294901760
    %v4286 = vsub.f32 %v4284, %v4285
    %v4287 = vand.u32 %v4286, 4294901760
    %4288 = vmatpush2.msra.mxu0 %v4287
    %v4289 = vand.u32 %v3537, 4294901760
    %v4290 = vsub.f32 %v3537, %v4289
    %v4291 = vand.u32 %v4290, 4294901760
    %v4292 = vsub.f32 %v4290, %v4291
    %v4293 = vand.u32 %v4292, 4294901760
    %4294 = vmatprep.subr.mxu0 %v4293
    %v4295 = vand.u32 %v3536, 4294901760
    %v4296 = vsub.f32 %v3536, %v4295
    %v4297 = vand.u32 %v4296, 4294901760
    %v4298 = vsub.f32 %v4296, %v4297
    %v4299 = vand.u32 %v4298, 4294901760
    %4300 = vmatpush2.msra.mxu0 %v4299
    %v4301 = vand.u32 %v3535, 4294901760
    %v4302 = vsub.f32 %v3535, %v4301
    %v4303 = vand.u32 %v4302, 4294901760
    %v4304 = vsub.f32 %v4302, %v4303
    %v4305 = vand.u32 %v4304, 4294901760
    %4306 = vmatprep.subr.mxu0 %v4305
    %v4307 = vand.u32 %v3534, 4294901760
    %v4308 = vsub.f32 %v3534, %v4307
    %v4309 = vand.u32 %v4308, 4294901760
    %v4310 = vsub.f32 %v4308, %v4309
    %v4311 = vand.u32 %v4310, 4294901760
    %4312 = vmatpush2.msra.mxu0 %v4311
    %v4313 = vand.u32 %v3533, 4294901760
    %v4314 = vsub.f32 %v3533, %v4313
    %v4315 = vand.u32 %v4314, 4294901760
    %v4316 = vsub.f32 %v4314, %v4315
    %v4317 = vand.u32 %v4316, 4294901760
    %4318 = vmatprep.subr.mxu0 %v4317
    %v4319 = vand.u32 %v3532, 4294901760
    %v4320 = vsub.f32 %v3532, %v4319
    %v4321 = vand.u32 %v4320, 4294901760
    %v4322 = vsub.f32 %v4320, %v4321
    %v4323 = vand.u32 %v4322, 4294901760
    %4324 = vmatpush2.msra.mxu0 %v4323
    %v4325 = vand.u32 %v39, 4294901760
    %4326 = vmatprep.mubr.f32.mxu0 %v4325
    %v4327 = vand.u32 %v38, 4294901760
    %4328 = vmatmul.mubr.f32.gmra.mxu0 %v4327
    %v4329 = vpop.f32.mrf.mxu0
    %v4330 = vadd.f32 %v3937, %v4329
    %v4331 = vpop.f32.mrf.mxu0
    %v4332 = vadd.f32 %v3939, %v4331
    %4333 = vdwg.mxu0
    %v4334 = vand.u32 %v3667, 4294901760
    %v4335 = vsub.f32 %v3667, %v4334
    %4336 = vmatprep.subr.mxu0 %v4335
    %v4337 = vand.u32 %v3666, 4294901760
    %v4338 = vsub.f32 %v3666, %v4337
    %4339 = vmatpush1.msra.mxu0 %v4338
    %v4340 = vand.u32 %v3665, 4294901760
    %v4341 = vsub.f32 %v3665, %v4340
    %4342 = vmatprep.subr.mxu0 %v4341
    %v4343 = vand.u32 %v3664, 4294901760
    %v4344 = vsub.f32 %v3664, %v4343
    %4345 = vmatpush1.msra.mxu0 %v4344
    %v4346 = vand.u32 %v3663, 4294901760
    %v4347 = vsub.f32 %v3663, %v4346
    %4348 = vmatprep.subr.mxu0 %v4347
    %v4349 = vand.u32 %v3662, 4294901760
    %v4350 = vsub.f32 %v3662, %v4349
    %4351 = vmatpush1.msra.mxu0 %v4350
    %v4352 = vand.u32 %v3661, 4294901760
    %v4353 = vsub.f32 %v3661, %v4352
    %4354 = vmatprep.subr.mxu0 %v4353
    %v4355 = vand.u32 %v3660, 4294901760
    %v4356 = vsub.f32 %v3660, %v4355
    %4357 = vmatpush1.msra.mxu0 %v4356
    %v4358 = vand.u32 %v3635, 4294901760
    %v4359 = vsub.f32 %v3635, %v4358
    %4360 = vmatprep.subr.mxu0 %v4359
    %v4361 = vand.u32 %v3634, 4294901760
    %v4362 = vsub.f32 %v3634, %v4361
    %4363 = vmatpush1.msra.mxu0 %v4362
    %v4364 = vand.u32 %v3633, 4294901760
    %v4365 = vsub.f32 %v3633, %v4364
    %4366 = vmatprep.subr.mxu0 %v4365
    %v4367 = vand.u32 %v3632, 4294901760
    %v4368 = vsub.f32 %v3632, %v4367
    %4369 = vmatpush1.msra.mxu0 %v4368
    %v4370 = vand.u32 %v3631, 4294901760
    %v4371 = vsub.f32 %v3631, %v4370
    %4372 = vmatprep.subr.mxu0 %v4371
    %v4373 = vand.u32 %v3630, 4294901760
    %v4374 = vsub.f32 %v3630, %v4373
    %4375 = vmatpush1.msra.mxu0 %v4374
    %v4376 = vand.u32 %v3629, 4294901760
    %v4377 = vsub.f32 %v3629, %v4376
    %4378 = vmatprep.subr.mxu0 %v4377
    %v4379 = vand.u32 %v3628, 4294901760
    %v4380 = vsub.f32 %v3628, %v4379
    %4381 = vmatpush1.msra.mxu0 %v4380
    %v4382 = vand.u32 %v3603, 4294901760
    %v4383 = vsub.f32 %v3603, %v4382
    %4384 = vmatprep.subr.mxu0 %v4383
    %v4385 = vand.u32 %v3602, 4294901760
    %v4386 = vsub.f32 %v3602, %v4385
    %4387 = vmatpush1.msra.mxu0 %v4386
    %v4388 = vand.u32 %v3601, 4294901760
    %v4389 = vsub.f32 %v3601, %v4388
    %4390 = vmatprep.subr.mxu0 %v4389
    %v4391 = vand.u32 %v3600, 4294901760
    %v4392 = vsub.f32 %v3600, %v4391
    %4393 = vmatpush1.msra.mxu0 %v4392
    %v4394 = vand.u32 %v3599, 4294901760
    %v4395 = vsub.f32 %v3599, %v4394
    %4396 = vmatprep.subr.mxu0 %v4395
    %v4397 = vand.u32 %v3598, 4294901760
    %v4398 = vsub.f32 %v3598, %v4397
    %4399 = vmatpush1.msra.mxu0 %v4398
    %v4400 = vand.u32 %v3597, 4294901760
    %v4401 = vsub.f32 %v3597, %v4400
    %4402 = vmatprep.subr.mxu0 %v4401
    %v4403 = vand.u32 %v3596, 4294901760
    %v4404 = vsub.f32 %v3596, %v4403
    %4405 = vmatpush1.msra.mxu0 %v4404
    %v4406 = vand.u32 %v3571, 4294901760
    %v4407 = vsub.f32 %v3571, %v4406
    %4408 = vmatprep.subr.mxu0 %v4407
    %v4409 = vand.u32 %v3570, 4294901760
    %v4410 = vsub.f32 %v3570, %v4409
    %4411 = vmatpush1.msra.mxu0 %v4410
    %v4412 = vand.u32 %v3569, 4294901760
    %v4413 = vsub.f32 %v3569, %v4412
    %4414 = vmatprep.subr.mxu0 %v4413
    %v4415 = vand.u32 %v3568, 4294901760
    %v4416 = vsub.f32 %v3568, %v4415
    %4417 = vmatpush1.msra.mxu0 %v4416
    %v4418 = vand.u32 %v3567, 4294901760
    %v4419 = vsub.f32 %v3567, %v4418
    %4420 = vmatprep.subr.mxu0 %v4419
    %v4421 = vand.u32 %v3566, 4294901760
    %v4422 = vsub.f32 %v3566, %v4421
    %4423 = vmatpush1.msra.mxu0 %v4422
    %v4424 = vand.u32 %v3565, 4294901760
    %v4425 = vsub.f32 %v3565, %v4424
    %4426 = vmatprep.subr.mxu0 %v4425
    %v4427 = vand.u32 %v3564, 4294901760
    %v4428 = vsub.f32 %v3564, %v4427
    %4429 = vmatpush1.msra.mxu0 %v4428
    %v4430 = vand.u32 %v3763, 4294901760
    %v4431 = vsub.f32 %v3763, %v4430
    %4432 = vmatprep.subr.mxu0 %v4431
    %v4433 = vand.u32 %v3762, 4294901760
    %v4434 = vsub.f32 %v3762, %v4433
    %4435 = vmatpush2.msra.mxu0 %v4434
    %v4436 = vand.u32 %v3761, 4294901760
    %v4437 = vsub.f32 %v3761, %v4436
    %4438 = vmatprep.subr.mxu0 %v4437
    %v4439 = vand.u32 %v3760, 4294901760
    %v4440 = vsub.f32 %v3760, %v4439
    %4441 = vmatpush2.msra.mxu0 %v4440
    %v4442 = vand.u32 %v3759, 4294901760
    %v4443 = vsub.f32 %v3759, %v4442
    %4444 = vmatprep.subr.mxu0 %v4443
    %v4445 = vand.u32 %v3758, 4294901760
    %v4446 = vsub.f32 %v3758, %v4445
    %4447 = vmatpush2.msra.mxu0 %v4446
    %v4448 = vand.u32 %v3757, 4294901760
    %v4449 = vsub.f32 %v3757, %v4448
    %4450 = vmatprep.subr.mxu0 %v4449
    %v4451 = vand.u32 %v3756, 4294901760
    %v4452 = vsub.f32 %v3756, %v4451
    %4453 = vmatpush2.msra.mxu0 %v4452
    %v4454 = vand.u32 %v3731, 4294901760
    %v4455 = vsub.f32 %v3731, %v4454
    %4456 = vmatprep.subr.mxu0 %v4455
    %v4457 = vand.u32 %v3730, 4294901760
    %v4458 = vsub.f32 %v3730, %v4457
    %4459 = vmatpush2.msra.mxu0 %v4458
    %v4460 = vand.u32 %v3729, 4294901760
    %v4461 = vsub.f32 %v3729, %v4460
    %4462 = vmatprep.subr.mxu0 %v4461
    %v4463 = vand.u32 %v3728, 4294901760
    %v4464 = vsub.f32 %v3728, %v4463
    %4465 = vmatpush2.msra.mxu0 %v4464
    %v4466 = vand.u32 %v3727, 4294901760
    %v4467 = vsub.f32 %v3727, %v4466
    %4468 = vmatprep.subr.mxu0 %v4467
    %v4469 = vand.u32 %v3726, 4294901760
    %v4470 = vsub.f32 %v3726, %v4469
    %4471 = vmatpush2.msra.mxu0 %v4470
    %v4472 = vand.u32 %v3725, 4294901760
    %v4473 = vsub.f32 %v3725, %v4472
    %4474 = vmatprep.subr.mxu0 %v4473
    %v4475 = vand.u32 %v3724, 4294901760
    %v4476 = vsub.f32 %v3724, %v4475
    %4477 = vmatpush2.msra.mxu0 %v4476
    %v4478 = vand.u32 %v3699, 4294901760
    %v4479 = vsub.f32 %v3699, %v4478
    %4480 = vmatprep.subr.mxu0 %v4479
    %v4481 = vand.u32 %v3698, 4294901760
    %v4482 = vsub.f32 %v3698, %v4481
    %4483 = vmatpush2.msra.mxu0 %v4482
    %v4484 = vand.u32 %v3697, 4294901760
    %v4485 = vsub.f32 %v3697, %v4484
    %4486 = vmatprep.subr.mxu0 %v4485
    %v4487 = vand.u32 %v3696, 4294901760
    %v4488 = vsub.f32 %v3696, %v4487
    %4489 = vmatpush2.msra.mxu0 %v4488
    %v4490 = vand.u32 %v3695, 4294901760
    %v4491 = vsub.f32 %v3695, %v4490
    %4492 = vmatprep.subr.mxu0 %v4491
    %v4493 = vand.u32 %v3694, 4294901760
    %v4494 = vsub.f32 %v3694, %v4493
    %4495 = vmatpush2.msra.mxu0 %v4494
    %v4496 = vand.u32 %v3693, 4294901760
    %v4497 = vsub.f32 %v3693, %v4496
    %4498 = vmatprep.subr.mxu0 %v4497
    %v4499 = vand.u32 %v3692, 4294901760
    %v4500 = vsub.f32 %v3692, %v4499
    %4501 = vmatpush2.msra.mxu0 %v4500
    %v4502 = vand.u32 %v3539, 4294901760
    %v4503 = vsub.f32 %v3539, %v4502
    %4504 = vmatprep.subr.mxu0 %v4503
    %v4505 = vand.u32 %v3538, 4294901760
    %v4506 = vsub.f32 %v3538, %v4505
    %4507 = vmatpush2.msra.mxu0 %v4506
    %v4508 = vand.u32 %v3537, 4294901760
    %v4509 = vsub.f32 %v3537, %v4508
    %4510 = vmatprep.subr.mxu0 %v4509
    %v4511 = vand.u32 %v3536, 4294901760
    %v4512 = vsub.f32 %v3536, %v4511
    %4513 = vmatpush2.msra.mxu0 %v4512
    %v4514 = vand.u32 %v3535, 4294901760
    %v4515 = vsub.f32 %v3535, %v4514
    %4516 = vmatprep.subr.mxu0 %v4515
    %v4517 = vand.u32 %v3534, 4294901760
    %v4518 = vsub.f32 %v3534, %v4517
    %4519 = vmatpush2.msra.mxu0 %v4518
    %v4520 = vand.u32 %v3533, 4294901760
    %v4521 = vsub.f32 %v3533, %v4520
    %4522 = vmatprep.subr.mxu0 %v4521
    %v4523 = vand.u32 %v3532, 4294901760
    %v4524 = vsub.f32 %v3532, %v4523
    %4525 = vmatpush2.msra.mxu0 %v4524
    %v4526 = vand.u32 %v39, 4294901760
    %v4527 = vsub.f32 %v39, %v4526
    %4528 = vmatprep.mubr.f32.mxu0 %v4527
    %v4529 = vand.u32 %v38, 4294901760
    %v4530 = vsub.f32 %v38, %v4529
    %4531 = vmatmul.mubr.f32.gmra.mxu0 %v4530
    %v4532 = vpop.f32.mrf.mxu0
    %v4533 = vadd.f32 %v4330, %v4532
    %v4534 = vpop.f32.mrf.mxu0
    %v4535 = vadd.f32 %v4332, %v4534
    %4536 = vdwg.mxu0
    %v4537 = vand.u32 %v3667, 4294901760
    %4538 = vmatprep.subr.mxu0 %v4537
    %v4539 = vand.u32 %v3666, 4294901760
    %4540 = vmatpush1.msra.mxu0 %v4539
    %v4541 = vand.u32 %v3665, 4294901760
    %4542 = vmatprep.subr.mxu0 %v4541
    %v4543 = vand.u32 %v3664, 4294901760
    %4544 = vmatpush1.msra.mxu0 %v4543
    %v4545 = vand.u32 %v3663, 4294901760
    %4546 = vmatprep.subr.mxu0 %v4545
    %v4547 = vand.u32 %v3662, 4294901760
    %4548 = vmatpush1.msra.mxu0 %v4547
    %v4549 = vand.u32 %v3661, 4294901760
    %4550 = vmatprep.subr.mxu0 %v4549
    %v4551 = vand.u32 %v3660, 4294901760
    %4552 = vmatpush1.msra.mxu0 %v4551
    %v4553 = vand.u32 %v3635, 4294901760
    %4554 = vmatprep.subr.mxu0 %v4553
    %v4555 = vand.u32 %v3634, 4294901760
    %4556 = vmatpush1.msra.mxu0 %v4555
    %v4557 = vand.u32 %v3633, 4294901760
    %4558 = vmatprep.subr.mxu0 %v4557
    %v4559 = vand.u32 %v3632, 4294901760
    %4560 = vmatpush1.msra.mxu0 %v4559
    %v4561 = vand.u32 %v3631, 4294901760
    %4562 = vmatprep.subr.mxu0 %v4561
    %v4563 = vand.u32 %v3630, 4294901760
    %4564 = vmatpush1.msra.mxu0 %v4563
    %v4565 = vand.u32 %v3629, 4294901760
    %4566 = vmatprep.subr.mxu0 %v4565
    %v4567 = vand.u32 %v3628, 4294901760
    %4568 = vmatpush1.msra.mxu0 %v4567
    %v4569 = vand.u32 %v3603, 4294901760
    %4570 = vmatprep.subr.mxu0 %v4569
    %v4571 = vand.u32 %v3602, 4294901760
    %4572 = vmatpush1.msra.mxu0 %v4571
    %v4573 = vand.u32 %v3601, 4294901760
    %4574 = vmatprep.subr.mxu0 %v4573
    %v4575 = vand.u32 %v3600, 4294901760
    %4576 = vmatpush1.msra.mxu0 %v4575
    %v4577 = vand.u32 %v3599, 4294901760
    %4578 = vmatprep.subr.mxu0 %v4577
    %v4579 = vand.u32 %v3598, 4294901760
    %4580 = vmatpush1.msra.mxu0 %v4579
    %v4581 = vand.u32 %v3597, 4294901760
    %4582 = vmatprep.subr.mxu0 %v4581
    %v4583 = vand.u32 %v3596, 4294901760
    %4584 = vmatpush1.msra.mxu0 %v4583
    %v4585 = vand.u32 %v3571, 4294901760
    %4586 = vmatprep.subr.mxu0 %v4585
    %v4587 = vand.u32 %v3570, 4294901760
    %4588 = vmatpush1.msra.mxu0 %v4587
    %v4589 = vand.u32 %v3569, 4294901760
    %4590 = vmatprep.subr.mxu0 %v4589
    %v4591 = vand.u32 %v3568, 4294901760
    %4592 = vmatpush1.msra.mxu0 %v4591
    %v4593 = vand.u32 %v3567, 4294901760
    %4594 = vmatprep.subr.mxu0 %v4593
    %v4595 = vand.u32 %v3566, 4294901760
    %4596 = vmatpush1.msra.mxu0 %v4595
    %v4597 = vand.u32 %v3565, 4294901760
    %4598 = vmatprep.subr.mxu0 %v4597
    %v4599 = vand.u32 %v3564, 4294901760
    %4600 = vmatpush1.msra.mxu0 %v4599
    %v4601 = vand.u32 %v3763, 4294901760
    %4602 = vmatprep.subr.mxu0 %v4601
    %v4603 = vand.u32 %v3762, 4294901760
    %4604 = vmatpush2.msra.mxu0 %v4603
    %v4605 = vand.u32 %v3761, 4294901760
    %4606 = vmatprep.subr.mxu0 %v4605
    %v4607 = vand.u32 %v3760, 4294901760
    %4608 = vmatpush2.msra.mxu0 %v4607
    %v4609 = vand.u32 %v3759, 4294901760
    %4610 = vmatprep.subr.mxu0 %v4609
    %v4611 = vand.u32 %v3758, 4294901760
    %4612 = vmatpush2.msra.mxu0 %v4611
    %v4613 = vand.u32 %v3757, 4294901760
    %4614 = vmatprep.subr.mxu0 %v4613
    %v4615 = vand.u32 %v3756, 4294901760
    %4616 = vmatpush2.msra.mxu0 %v4615
    %v4617 = vand.u32 %v3731, 4294901760
    %4618 = vmatprep.subr.mxu0 %v4617
    %v4619 = vand.u32 %v3730, 4294901760
    %4620 = vmatpush2.msra.mxu0 %v4619
    %v4621 = vand.u32 %v3729, 4294901760
    %4622 = vmatprep.subr.mxu0 %v4621
    %v4623 = vand.u32 %v3728, 4294901760
    %4624 = vmatpush2.msra.mxu0 %v4623
    %v4625 = vand.u32 %v3727, 4294901760
    %4626 = vmatprep.subr.mxu0 %v4625
    %v4627 = vand.u32 %v3726, 4294901760
    %4628 = vmatpush2.msra.mxu0 %v4627
    %v4629 = vand.u32 %v3725, 4294901760
    %4630 = vmatprep.subr.mxu0 %v4629
    %v4631 = vand.u32 %v3724, 4294901760
    %4632 = vmatpush2.msra.mxu0 %v4631
    %v4633 = vand.u32 %v3699, 4294901760
    %4634 = vmatprep.subr.mxu0 %v4633
    %v4635 = vand.u32 %v3698, 4294901760
    %4636 = vmatpush2.msra.mxu0 %v4635
    %v4637 = vand.u32 %v3697, 4294901760
    %4638 = vmatprep.subr.mxu0 %v4637
    %v4639 = vand.u32 %v3696, 4294901760
    %4640 = vmatpush2.msra.mxu0 %v4639
    %v4641 = vand.u32 %v3695, 4294901760
    %4642 = vmatprep.subr.mxu0 %v4641
    %v4643 = vand.u32 %v3694, 4294901760
    %4644 = vmatpush2.msra.mxu0 %v4643
    %v4645 = vand.u32 %v3693, 4294901760
    %4646 = vmatprep.subr.mxu0 %v4645
    %v4647 = vand.u32 %v3692, 4294901760
    %4648 = vmatpush2.msra.mxu0 %v4647
    %v4649 = vand.u32 %v3539, 4294901760
    %4650 = vmatprep.subr.mxu0 %v4649
    %v4651 = vand.u32 %v3538, 4294901760
    %4652 = vmatpush2.msra.mxu0 %v4651
    %v4653 = vand.u32 %v3537, 4294901760
    %4654 = vmatprep.subr.mxu0 %v4653
    %v4655 = vand.u32 %v3536, 4294901760
    %4656 = vmatpush2.msra.mxu0 %v4655
    %v4657 = vand.u32 %v3535, 4294901760
    %4658 = vmatprep.subr.mxu0 %v4657
    %v4659 = vand.u32 %v3534, 4294901760
    %4660 = vmatpush2.msra.mxu0 %v4659
    %v4661 = vand.u32 %v3533, 4294901760
    %4662 = vmatprep.subr.mxu0 %v4661
    %v4663 = vand.u32 %v3532, 4294901760
    %4664 = vmatpush2.msra.mxu0 %v4663
    %v4665 = vand.u32 %v39, 4294901760
    %v4666 = vsub.f32 %v39, %v4665
    %v4667 = vand.u32 %v4666, 4294901760
    %4668 = vmatprep.mubr.f32.mxu0 %v4667
    %v4669 = vand.u32 %v38, 4294901760
    %v4670 = vsub.f32 %v38, %v4669
    %v4671 = vand.u32 %v4670, 4294901760
    %4672 = vmatmul.mubr.f32.gmra.mxu0 %v4671
    %v4673 = vpop.f32.mrf.mxu0
    %v4674 = vadd.f32 %v4533, %v4673
    %v4675 = vpop.f32.mrf.mxu0
    %v4676 = vadd.f32 %v4535, %v4675
    %4677 = vdwg.mxu0
    %v4678 = vand.u32 %v3667, 4294901760
    %v4679 = vsub.f32 %v3667, %v4678
    %v4680 = vand.u32 %v4679, 4294901760
    %4681 = vmatprep.subr.mxu0 %v4680
    %v4682 = vand.u32 %v3666, 4294901760
    %v4683 = vsub.f32 %v3666, %v4682
    %v4684 = vand.u32 %v4683, 4294901760
    %4685 = vmatpush1.msra.mxu0 %v4684
    %v4686 = vand.u32 %v3665, 4294901760
    %v4687 = vsub.f32 %v3665, %v4686
    %v4688 = vand.u32 %v4687, 4294901760
    %4689 = vmatprep.subr.mxu0 %v4688
    %v4690 = vand.u32 %v3664, 4294901760
    %v4691 = vsub.f32 %v3664, %v4690
    %v4692 = vand.u32 %v4691, 4294901760
    %4693 = vmatpush1.msra.mxu0 %v4692
    %v4694 = vand.u32 %v3663, 4294901760
    %v4695 = vsub.f32 %v3663, %v4694
    %v4696 = vand.u32 %v4695, 4294901760
    %4697 = vmatprep.subr.mxu0 %v4696
    %v4698 = vand.u32 %v3662, 4294901760
    %v4699 = vsub.f32 %v3662, %v4698
    %v4700 = vand.u32 %v4699, 4294901760
    %4701 = vmatpush1.msra.mxu0 %v4700
    %v4702 = vand.u32 %v3661, 4294901760
    %v4703 = vsub.f32 %v3661, %v4702
    %v4704 = vand.u32 %v4703, 4294901760
    %4705 = vmatprep.subr.mxu0 %v4704
    %v4706 = vand.u32 %v3660, 4294901760
    %v4707 = vsub.f32 %v3660, %v4706
    %v4708 = vand.u32 %v4707, 4294901760
    %4709 = vmatpush1.msra.mxu0 %v4708
    %v4710 = vand.u32 %v3635, 4294901760
    %v4711 = vsub.f32 %v3635, %v4710
    %v4712 = vand.u32 %v4711, 4294901760
    %4713 = vmatprep.subr.mxu0 %v4712
    %v4714 = vand.u32 %v3634, 4294901760
    %v4715 = vsub.f32 %v3634, %v4714
    %v4716 = vand.u32 %v4715, 4294901760
    %4717 = vmatpush1.msra.mxu0 %v4716
    %v4718 = vand.u32 %v3633, 4294901760
    %v4719 = vsub.f32 %v3633, %v4718
    %v4720 = vand.u32 %v4719, 4294901760
    %4721 = vmatprep.subr.mxu0 %v4720
    %v4722 = vand.u32 %v3632, 4294901760
    %v4723 = vsub.f32 %v3632, %v4722
    %v4724 = vand.u32 %v4723, 4294901760
    %4725 = vmatpush1.msra.mxu0 %v4724
    %v4726 = vand.u32 %v3631, 4294901760
    %v4727 = vsub.f32 %v3631, %v4726
    %v4728 = vand.u32 %v4727, 4294901760
    %4729 = vmatprep.subr.mxu0 %v4728
    %v4730 = vand.u32 %v3630, 4294901760
    %v4731 = vsub.f32 %v3630, %v4730
    %v4732 = vand.u32 %v4731, 4294901760
    %4733 = vmatpush1.msra.mxu0 %v4732
    %v4734 = vand.u32 %v3629, 4294901760
    %v4735 = vsub.f32 %v3629, %v4734
    %v4736 = vand.u32 %v4735, 4294901760
    %4737 = vmatprep.subr.mxu0 %v4736
    %v4738 = vand.u32 %v3628, 4294901760
    %v4739 = vsub.f32 %v3628, %v4738
    %v4740 = vand.u32 %v4739, 4294901760
    %4741 = vmatpush1.msra.mxu0 %v4740
    %v4742 = vand.u32 %v3603, 4294901760
    %v4743 = vsub.f32 %v3603, %v4742
    %v4744 = vand.u32 %v4743, 4294901760
    %4745 = vmatprep.subr.mxu0 %v4744
    %v4746 = vand.u32 %v3602, 4294901760
    %v4747 = vsub.f32 %v3602, %v4746
    %v4748 = vand.u32 %v4747, 4294901760
    %4749 = vmatpush1.msra.mxu0 %v4748
    %v4750 = vand.u32 %v3601, 4294901760
    %v4751 = vsub.f32 %v3601, %v4750
    %v4752 = vand.u32 %v4751, 4294901760
    %4753 = vmatprep.subr.mxu0 %v4752
    %v4754 = vand.u32 %v3600, 4294901760
    %v4755 = vsub.f32 %v3600, %v4754
    %v4756 = vand.u32 %v4755, 4294901760
    %4757 = vmatpush1.msra.mxu0 %v4756
    %v4758 = vand.u32 %v3599, 4294901760
    %v4759 = vsub.f32 %v3599, %v4758
    %v4760 = vand.u32 %v4759, 4294901760
    %4761 = vmatprep.subr.mxu0 %v4760
    %v4762 = vand.u32 %v3598, 4294901760
    %v4763 = vsub.f32 %v3598, %v4762
    %v4764 = vand.u32 %v4763, 4294901760
    %4765 = vmatpush1.msra.mxu0 %v4764
    %v4766 = vand.u32 %v3597, 4294901760
    %v4767 = vsub.f32 %v3597, %v4766
    %v4768 = vand.u32 %v4767, 4294901760
    %4769 = vmatprep.subr.mxu0 %v4768
    %v4770 = vand.u32 %v3596, 4294901760
    %v4771 = vsub.f32 %v3596, %v4770
    %v4772 = vand.u32 %v4771, 4294901760
    %4773 = vmatpush1.msra.mxu0 %v4772
    %v4774 = vand.u32 %v3571, 4294901760
    %v4775 = vsub.f32 %v3571, %v4774
    %v4776 = vand.u32 %v4775, 4294901760
    %4777 = vmatprep.subr.mxu0 %v4776
    %v4778 = vand.u32 %v3570, 4294901760
    %v4779 = vsub.f32 %v3570, %v4778
    %v4780 = vand.u32 %v4779, 4294901760
    %4781 = vmatpush1.msra.mxu0 %v4780
    %v4782 = vand.u32 %v3569, 4294901760
    %v4783 = vsub.f32 %v3569, %v4782
    %v4784 = vand.u32 %v4783, 4294901760
    %4785 = vmatprep.subr.mxu0 %v4784
    %v4786 = vand.u32 %v3568, 4294901760
    %v4787 = vsub.f32 %v3568, %v4786
    %v4788 = vand.u32 %v4787, 4294901760
    %4789 = vmatpush1.msra.mxu0 %v4788
    %v4790 = vand.u32 %v3567, 4294901760
    %v4791 = vsub.f32 %v3567, %v4790
    %v4792 = vand.u32 %v4791, 4294901760
    %4793 = vmatprep.subr.mxu0 %v4792
    %v4794 = vand.u32 %v3566, 4294901760
    %v4795 = vsub.f32 %v3566, %v4794
    %v4796 = vand.u32 %v4795, 4294901760
    %4797 = vmatpush1.msra.mxu0 %v4796
    %v4798 = vand.u32 %v3565, 4294901760
    %v4799 = vsub.f32 %v3565, %v4798
    %v4800 = vand.u32 %v4799, 4294901760
    %4801 = vmatprep.subr.mxu0 %v4800
    %v4802 = vand.u32 %v3564, 4294901760
    %v4803 = vsub.f32 %v3564, %v4802
    %v4804 = vand.u32 %v4803, 4294901760
    %4805 = vmatpush1.msra.mxu0 %v4804
    %v4806 = vand.u32 %v3763, 4294901760
    %v4807 = vsub.f32 %v3763, %v4806
    %v4808 = vand.u32 %v4807, 4294901760
    %4809 = vmatprep.subr.mxu0 %v4808
    %v4810 = vand.u32 %v3762, 4294901760
    %v4811 = vsub.f32 %v3762, %v4810
    %v4812 = vand.u32 %v4811, 4294901760
    %4813 = vmatpush2.msra.mxu0 %v4812
    %v4814 = vand.u32 %v3761, 4294901760
    %v4815 = vsub.f32 %v3761, %v4814
    %v4816 = vand.u32 %v4815, 4294901760
    %4817 = vmatprep.subr.mxu0 %v4816
    %v4818 = vand.u32 %v3760, 4294901760
    %v4819 = vsub.f32 %v3760, %v4818
    %v4820 = vand.u32 %v4819, 4294901760
    %4821 = vmatpush2.msra.mxu0 %v4820
    %v4822 = vand.u32 %v3759, 4294901760
    %v4823 = vsub.f32 %v3759, %v4822
    %v4824 = vand.u32 %v4823, 4294901760
    %4825 = vmatprep.subr.mxu0 %v4824
    %v4826 = vand.u32 %v3758, 4294901760
    %v4827 = vsub.f32 %v3758, %v4826
    %v4828 = vand.u32 %v4827, 4294901760
    %4829 = vmatpush2.msra.mxu0 %v4828
    %v4830 = vand.u32 %v3757, 4294901760
    %v4831 = vsub.f32 %v3757, %v4830
    %v4832 = vand.u32 %v4831, 4294901760
    %4833 = vmatprep.subr.mxu0 %v4832
    %v4834 = vand.u32 %v3756, 4294901760
    %v4835 = vsub.f32 %v3756, %v4834
    %v4836 = vand.u32 %v4835, 4294901760
    %4837 = vmatpush2.msra.mxu0 %v4836
    %v4838 = vand.u32 %v3731, 4294901760
    %v4839 = vsub.f32 %v3731, %v4838
    %v4840 = vand.u32 %v4839, 4294901760
    %4841 = vmatprep.subr.mxu0 %v4840
    %v4842 = vand.u32 %v3730, 4294901760
    %v4843 = vsub.f32 %v3730, %v4842
    %v4844 = vand.u32 %v4843, 4294901760
    %4845 = vmatpush2.msra.mxu0 %v4844
    %v4846 = vand.u32 %v3729, 4294901760
    %v4847 = vsub.f32 %v3729, %v4846
    %v4848 = vand.u32 %v4847, 4294901760
    %4849 = vmatprep.subr.mxu0 %v4848
    %v4850 = vand.u32 %v3728, 4294901760
    %v4851 = vsub.f32 %v3728, %v4850
    %v4852 = vand.u32 %v4851, 4294901760
    %4853 = vmatpush2.msra.mxu0 %v4852
    %v4854 = vand.u32 %v3727, 4294901760
    %v4855 = vsub.f32 %v3727, %v4854
    %v4856 = vand.u32 %v4855, 4294901760
    %4857 = vmatprep.subr.mxu0 %v4856
    %v4858 = vand.u32 %v3726, 4294901760
    %v4859 = vsub.f32 %v3726, %v4858
    %v4860 = vand.u32 %v4859, 4294901760
    %4861 = vmatpush2.msra.mxu0 %v4860
    %v4862 = vand.u32 %v3725, 4294901760
    %v4863 = vsub.f32 %v3725, %v4862
    %v4864 = vand.u32 %v4863, 4294901760
    %4865 = vmatprep.subr.mxu0 %v4864
    %v4866 = vand.u32 %v3724, 4294901760
    %v4867 = vsub.f32 %v3724, %v4866
    %v4868 = vand.u32 %v4867, 4294901760
    %4869 = vmatpush2.msra.mxu0 %v4868
    %v4870 = vand.u32 %v3699, 4294901760
    %v4871 = vsub.f32 %v3699, %v4870
    %v4872 = vand.u32 %v4871, 4294901760
    %4873 = vmatprep.subr.mxu0 %v4872
    %v4874 = vand.u32 %v3698, 4294901760
    %v4875 = vsub.f32 %v3698, %v4874
    %v4876 = vand.u32 %v4875, 4294901760
    %4877 = vmatpush2.msra.mxu0 %v4876
    %v4878 = vand.u32 %v3697, 4294901760
    %v4879 = vsub.f32 %v3697, %v4878
    %v4880 = vand.u32 %v4879, 4294901760
    %4881 = vmatprep.subr.mxu0 %v4880
    %v4882 = vand.u32 %v3696, 4294901760
    %v4883 = vsub.f32 %v3696, %v4882
    %v4884 = vand.u32 %v4883, 4294901760
    %4885 = vmatpush2.msra.mxu0 %v4884
    %v4886 = vand.u32 %v3695, 4294901760
    %v4887 = vsub.f32 %v3695, %v4886
    %v4888 = vand.u32 %v4887, 4294901760
    %4889 = vmatprep.subr.mxu0 %v4888
    %v4890 = vand.u32 %v3694, 4294901760
    %v4891 = vsub.f32 %v3694, %v4890
    %v4892 = vand.u32 %v4891, 4294901760
    %4893 = vmatpush2.msra.mxu0 %v4892
    %v4894 = vand.u32 %v3693, 4294901760
    %v4895 = vsub.f32 %v3693, %v4894
    %v4896 = vand.u32 %v4895, 4294901760
    %4897 = vmatprep.subr.mxu0 %v4896
    %v4898 = vand.u32 %v3692, 4294901760
    %v4899 = vsub.f32 %v3692, %v4898
    %v4900 = vand.u32 %v4899, 4294901760
    %4901 = vmatpush2.msra.mxu0 %v4900
    %v4902 = vand.u32 %v3539, 4294901760
    %v4903 = vsub.f32 %v3539, %v4902
    %v4904 = vand.u32 %v4903, 4294901760
    %4905 = vmatprep.subr.mxu0 %v4904
    %v4906 = vand.u32 %v3538, 4294901760
    %v4907 = vsub.f32 %v3538, %v4906
    %v4908 = vand.u32 %v4907, 4294901760
    %4909 = vmatpush2.msra.mxu0 %v4908
    %v4910 = vand.u32 %v3537, 4294901760
    %v4911 = vsub.f32 %v3537, %v4910
    %v4912 = vand.u32 %v4911, 4294901760
    %4913 = vmatprep.subr.mxu0 %v4912
    %v4914 = vand.u32 %v3536, 4294901760
    %v4915 = vsub.f32 %v3536, %v4914
    %v4916 = vand.u32 %v4915, 4294901760
    %4917 = vmatpush2.msra.mxu0 %v4916
    %v4918 = vand.u32 %v3535, 4294901760
    %v4919 = vsub.f32 %v3535, %v4918
    %v4920 = vand.u32 %v4919, 4294901760
    %4921 = vmatprep.subr.mxu0 %v4920
    %v4922 = vand.u32 %v3534, 4294901760
    %v4923 = vsub.f32 %v3534, %v4922
    %v4924 = vand.u32 %v4923, 4294901760
    %4925 = vmatpush2.msra.mxu0 %v4924
    %v4926 = vand.u32 %v3533, 4294901760
    %v4927 = vsub.f32 %v3533, %v4926
    %v4928 = vand.u32 %v4927, 4294901760
    %4929 = vmatprep.subr.mxu0 %v4928
    %v4930 = vand.u32 %v3532, 4294901760
    %v4931 = vsub.f32 %v3532, %v4930
    %v4932 = vand.u32 %v4931, 4294901760
    %4933 = vmatpush2.msra.mxu0 %v4932
    %v4934 = vand.u32 %v39, 4294901760
    %4935 = vmatprep.mubr.f32.mxu0 %v4934
    %v4936 = vand.u32 %v38, 4294901760
    %4937 = vmatmul.mubr.f32.gmra.mxu0 %v4936
    %v4938 = vpop.f32.mrf.mxu0
    %v4939 = vadd.f32 %v4674, %v4938
    %v4940 = vpop.f32.mrf.mxu0
    %v4941 = vadd.f32 %v4676, %v4940
    %4942 = vdwg.mxu0
    %v4943 = vand.u32 %v3667, 4294901760
    %4944 = vmatprep.subr.mxu0 %v4943
    %v4945 = vand.u32 %v3666, 4294901760
    %4946 = vmatpush1.msra.mxu0 %v4945
    %v4947 = vand.u32 %v3665, 4294901760
    %4948 = vmatprep.subr.mxu0 %v4947
    %v4949 = vand.u32 %v3664, 4294901760
    %4950 = vmatpush1.msra.mxu0 %v4949
    %v4951 = vand.u32 %v3663, 4294901760
    %4952 = vmatprep.subr.mxu0 %v4951
    %v4953 = vand.u32 %v3662, 4294901760
    %4954 = vmatpush1.msra.mxu0 %v4953
    %v4955 = vand.u32 %v3661, 4294901760
    %4956 = vmatprep.subr.mxu0 %v4955
    %v4957 = vand.u32 %v3660, 4294901760
    %4958 = vmatpush1.msra.mxu0 %v4957
    %v4959 = vand.u32 %v3635, 4294901760
    %4960 = vmatprep.subr.mxu0 %v4959
    %v4961 = vand.u32 %v3634, 4294901760
    %4962 = vmatpush1.msra.mxu0 %v4961
    %v4963 = vand.u32 %v3633, 4294901760
    %4964 = vmatprep.subr.mxu0 %v4963
    %v4965 = vand.u32 %v3632, 4294901760
    %4966 = vmatpush1.msra.mxu0 %v4965
    %v4967 = vand.u32 %v3631, 4294901760
    %4968 = vmatprep.subr.mxu0 %v4967
    %v4969 = vand.u32 %v3630, 4294901760
    %4970 = vmatpush1.msra.mxu0 %v4969
    %v4971 = vand.u32 %v3629, 4294901760
    %4972 = vmatprep.subr.mxu0 %v4971
    %v4973 = vand.u32 %v3628, 4294901760
    %4974 = vmatpush1.msra.mxu0 %v4973
    %v4975 = vand.u32 %v3603, 4294901760
    %4976 = vmatprep.subr.mxu0 %v4975
    %v4977 = vand.u32 %v3602, 4294901760
    %4978 = vmatpush1.msra.mxu0 %v4977
    %v4979 = vand.u32 %v3601, 4294901760
    %4980 = vmatprep.subr.mxu0 %v4979
    %v4981 = vand.u32 %v3600, 4294901760
    %4982 = vmatpush1.msra.mxu0 %v4981
    %v4983 = vand.u32 %v3599, 4294901760
    %4984 = vmatprep.subr.mxu0 %v4983
    %v4985 = vand.u32 %v3598, 4294901760
    %4986 = vmatpush1.msra.mxu0 %v4985
    %v4987 = vand.u32 %v3597, 4294901760
    %4988 = vmatprep.subr.mxu0 %v4987
    %v4989 = vand.u32 %v3596, 4294901760
    %4990 = vmatpush1.msra.mxu0 %v4989
    %v4991 = vand.u32 %v3571, 4294901760
    %4992 = vmatprep.subr.mxu0 %v4991
    %v4993 = vand.u32 %v3570, 4294901760
    %4994 = vmatpush1.msra.mxu0 %v4993
    %v4995 = vand.u32 %v3569, 4294901760
    %4996 = vmatprep.subr.mxu0 %v4995
    %v4997 = vand.u32 %v3568, 4294901760
    %4998 = vmatpush1.msra.mxu0 %v4997
    %v4999 = vand.u32 %v3567, 4294901760
    %5000 = vmatprep.subr.mxu0 %v4999
    %v5001 = vand.u32 %v3566, 4294901760
    %5002 = vmatpush1.msra.mxu0 %v5001
    %v5003 = vand.u32 %v3565, 4294901760
    %5004 = vmatprep.subr.mxu0 %v5003
    %v5005 = vand.u32 %v3564, 4294901760
    %5006 = vmatpush1.msra.mxu0 %v5005
    %v5007 = vand.u32 %v3763, 4294901760
    %5008 = vmatprep.subr.mxu0 %v5007
    %v5009 = vand.u32 %v3762, 4294901760
    %5010 = vmatpush2.msra.mxu0 %v5009
    %v5011 = vand.u32 %v3761, 4294901760
    %5012 = vmatprep.subr.mxu0 %v5011
    %v5013 = vand.u32 %v3760, 4294901760
    %5014 = vmatpush2.msra.mxu0 %v5013
    %v5015 = vand.u32 %v3759, 4294901760
    %5016 = vmatprep.subr.mxu0 %v5015
    %v5017 = vand.u32 %v3758, 4294901760
    %5018 = vmatpush2.msra.mxu0 %v5017
    %v5019 = vand.u32 %v3757, 4294901760
    %5020 = vmatprep.subr.mxu0 %v5019
    %v5021 = vand.u32 %v3756, 4294901760
    %5022 = vmatpush2.msra.mxu0 %v5021
    %v5023 = vand.u32 %v3731, 4294901760
    %5024 = vmatprep.subr.mxu0 %v5023
    %v5025 = vand.u32 %v3730, 4294901760
    %5026 = vmatpush2.msra.mxu0 %v5025
    %v5027 = vand.u32 %v3729, 4294901760
    %5028 = vmatprep.subr.mxu0 %v5027
    %v5029 = vand.u32 %v3728, 4294901760
    %5030 = vmatpush2.msra.mxu0 %v5029
    %v5031 = vand.u32 %v3727, 4294901760
    %5032 = vmatprep.subr.mxu0 %v5031
    %v5033 = vand.u32 %v3726, 4294901760
    %5034 = vmatpush2.msra.mxu0 %v5033
    %v5035 = vand.u32 %v3725, 4294901760
    %5036 = vmatprep.subr.mxu0 %v5035
    %v5037 = vand.u32 %v3724, 4294901760
    %5038 = vmatpush2.msra.mxu0 %v5037
    %v5039 = vand.u32 %v3699, 4294901760
    %5040 = vmatprep.subr.mxu0 %v5039
    %v5041 = vand.u32 %v3698, 4294901760
    %5042 = vmatpush2.msra.mxu0 %v5041
    %v5043 = vand.u32 %v3697, 4294901760
    %5044 = vmatprep.subr.mxu0 %v5043
    %v5045 = vand.u32 %v3696, 4294901760
    %5046 = vmatpush2.msra.mxu0 %v5045
    %v5047 = vand.u32 %v3695, 4294901760
    %5048 = vmatprep.subr.mxu0 %v5047
    %v5049 = vand.u32 %v3694, 4294901760
    %5050 = vmatpush2.msra.mxu0 %v5049
    %v5051 = vand.u32 %v3693, 4294901760
    %5052 = vmatprep.subr.mxu0 %v5051
    %v5053 = vand.u32 %v3692, 4294901760
    %5054 = vmatpush2.msra.mxu0 %v5053
    %v5055 = vand.u32 %v3539, 4294901760
    %5056 = vmatprep.subr.mxu0 %v5055
    %v5057 = vand.u32 %v3538, 4294901760
    %5058 = vmatpush2.msra.mxu0 %v5057
    %v5059 = vand.u32 %v3537, 4294901760
    %5060 = vmatprep.subr.mxu0 %v5059
    %v5061 = vand.u32 %v3536, 4294901760
    %5062 = vmatpush2.msra.mxu0 %v5061
    %v5063 = vand.u32 %v3535, 4294901760
    %5064 = vmatprep.subr.mxu0 %v5063
    %v5065 = vand.u32 %v3534, 4294901760
    %5066 = vmatpush2.msra.mxu0 %v5065
    %v5067 = vand.u32 %v3533, 4294901760
    %5068 = vmatprep.subr.mxu0 %v5067
    %v5069 = vand.u32 %v3532, 4294901760
    %5070 = vmatpush2.msra.mxu0 %v5069
    %v5071 = vand.u32 %v39, 4294901760
    %5072 = vmatprep.mubr.f32.mxu0 %v5071
    %v5073 = vand.u32 %v38, 4294901760
    %5074 = vmatmul.mubr.f32.gmra.mxu0 %v5073
    %v5075 = vpop.f32.mrf.mxu0
    %v5076 = vadd.f32 %v4939, %v5075
    %v5077 = vpop.f32.mrf.mxu0
    %v5078 = vadd.f32 %v4941, %v5077
    %5079 = vdwg.mxu0
    %5080 = vmatprep.subr.mxu0 0.0
    %5081 = vmatpush1.msra.mxu0 0.0
    %5082 = vmatprep.subr.mxu0 0.0
    %5083 = vmatpush1.msra.mxu0 0.0
    %5084 = vmatprep.subr.mxu0 0.0
    %5085 = vmatpush1.msra.mxu0 0.0
    %5086 = vmatprep.subr.mxu0 0.0
    %5087 = vmatpush1.msra.mxu0 0.0
    %5088 = vmatprep.subr.mxu0 0.0
    %5089 = vmatpush1.msra.mxu0 0.0
    %5090 = vmatprep.subr.mxu0 0.0
    %5091 = vmatpush1.msra.mxu0 0.0
    %5092 = vmatprep.subr.mxu0 0.0
    %5093 = vmatpush1.msra.mxu0 0.0
    %5094 = vmatprep.subr.mxu0 0.0
    %5095 = vmatpush1.msra.mxu0 0.0
    %5096 = vmatprep.subr.mxu0 0.0
    %5097 = vmatpush1.msra.mxu0 0.0
    %5098 = vmatprep.subr.mxu0 0.0
    %5099 = vmatpush1.msra.mxu0 0.0
    %5100 = vmatprep.subr.mxu0 0.0
    %5101 = vmatpush1.msra.mxu0 0.0
    %5102 = vmatprep.subr.mxu0 0.0
    %5103 = vmatpush1.msra.mxu0 0.0
    %v5104 = vand.u32 %v3795, 4294901760
    %5105 = vmatprep.subr.mxu0 %v5104
    %v5106 = vand.u32 %v3794, 4294901760
    %5107 = vmatpush1.msra.mxu0 %v5106
    %v5108 = vand.u32 %v3793, 4294901760
    %5109 = vmatprep.subr.mxu0 %v5108
    %v5110 = vand.u32 %v3792, 4294901760
    %5111 = vmatpush1.msra.mxu0 %v5110
    %v5112 = vand.u32 %v3791, 4294901760
    %5113 = vmatprep.subr.mxu0 %v5112
    %v5114 = vand.u32 %v3790, 4294901760
    %5115 = vmatpush1.msra.mxu0 %v5114
    %v5116 = vand.u32 %v3789, 4294901760
    %5117 = vmatprep.subr.mxu0 %v5116
    %v5118 = vand.u32 %v3788, 4294901760
    %5119 = vmatpush1.msra.mxu0 %v5118
    %5120 = vmatprep.subr.mxu0 0.0
    %5121 = vmatpush2.msra.mxu0 0.0
    %5122 = vmatprep.subr.mxu0 0.0
    %5123 = vmatpush2.msra.mxu0 0.0
    %5124 = vmatprep.subr.mxu0 0.0
    %5125 = vmatpush2.msra.mxu0 0.0
    %5126 = vmatprep.subr.mxu0 0.0
    %5127 = vmatpush2.msra.mxu0 0.0
    %5128 = vmatprep.subr.mxu0 0.0
    %5129 = vmatpush2.msra.mxu0 0.0
    %5130 = vmatprep.subr.mxu0 0.0
    %5131 = vmatpush2.msra.mxu0 0.0
    %5132 = vmatprep.subr.mxu0 0.0
    %5133 = vmatpush2.msra.mxu0 0.0
    %5134 = vmatprep.subr.mxu0 0.0
    %5135 = vmatpush2.msra.mxu0 0.0
    %5136 = vmatprep.subr.mxu0 0.0
    %5137 = vmatpush2.msra.mxu0 0.0
    %5138 = vmatprep.subr.mxu0 0.0
    %5139 = vmatpush2.msra.mxu0 0.0
    %5140 = vmatprep.subr.mxu0 0.0
    %5141 = vmatpush2.msra.mxu0 0.0
    %5142 = vmatprep.subr.mxu0 0.0
    %5143 = vmatpush2.msra.mxu0 0.0
    %5144 = vmatprep.subr.mxu0 0.0
    %5145 = vmatpush2.msra.mxu0 0.0
    %5146 = vmatprep.subr.mxu0 0.0
    %5147 = vmatpush2.msra.mxu0 0.0
    %5148 = vmatprep.subr.mxu0 0.0
    %5149 = vmatpush2.msra.mxu0 0.0
    %5150 = vmatprep.subr.mxu0 0.0
    %5151 = vmatpush2.msra.mxu0 0.0
    %5152 = vmatprep.mubr.f32.mxu0 0.0
    %v5153 = vand.u32 %v1078, 4294901760
    %v5154 = vsub.f32 %v1078, %v5153
    %v5155 = vand.u32 %v5154, 4294901760
    %v5156 = vsub.f32 %v5154, %v5155
    %v5157 = vand.u32 %v5156, 4294901760
    %5158 = vmatmul.mubr.f32.gmra.mxu0 %v5157
    %v5159 = vpop.f32.mrf.mxu0
    %v5160 = vadd.f32 %v5076, %v5159
    %v5161 = vpop.f32.mrf.mxu0
    %v5162 = vadd.f32 %v5078, %v5161
    %5163 = vdwg.mxu0
    %5164 = vmatprep.subr.mxu0 0.0
    %5165 = vmatpush1.msra.mxu0 0.0
    %5166 = vmatprep.subr.mxu0 0.0
    %5167 = vmatpush1.msra.mxu0 0.0
    %5168 = vmatprep.subr.mxu0 0.0
    %5169 = vmatpush1.msra.mxu0 0.0
    %5170 = vmatprep.subr.mxu0 0.0
    %5171 = vmatpush1.msra.mxu0 0.0
    %5172 = vmatprep.subr.mxu0 0.0
    %5173 = vmatpush1.msra.mxu0 0.0
    %5174 = vmatprep.subr.mxu0 0.0
    %5175 = vmatpush1.msra.mxu0 0.0
    %5176 = vmatprep.subr.mxu0 0.0
    %5177 = vmatpush1.msra.mxu0 0.0
    %5178 = vmatprep.subr.mxu0 0.0
    %5179 = vmatpush1.msra.mxu0 0.0
    %5180 = vmatprep.subr.mxu0 0.0
    %5181 = vmatpush1.msra.mxu0 0.0
    %5182 = vmatprep.subr.mxu0 0.0
    %5183 = vmatpush1.msra.mxu0 0.0
    %5184 = vmatprep.subr.mxu0 0.0
    %5185 = vmatpush1.msra.mxu0 0.0
    %5186 = vmatprep.subr.mxu0 0.0
    %5187 = vmatpush1.msra.mxu0 0.0
    %v5188 = vand.u32 %v3795, 4294901760
    %v5189 = vsub.f32 %v3795, %v5188
    %v5190 = vand.u32 %v5189, 4294901760
    %v5191 = vsub.f32 %v5189, %v5190
    %v5192 = vand.u32 %v5191, 4294901760
    %5193 = vmatprep.subr.mxu0 %v5192
    %v5194 = vand.u32 %v3794, 4294901760
    %v5195 = vsub.f32 %v3794, %v5194
    %v5196 = vand.u32 %v5195, 4294901760
    %v5197 = vsub.f32 %v5195, %v5196
    %v5198 = vand.u32 %v5197, 4294901760
    %5199 = vmatpush1.msra.mxu0 %v5198
    %v5200 = vand.u32 %v3793, 4294901760
    %v5201 = vsub.f32 %v3793, %v5200
    %v5202 = vand.u32 %v5201, 4294901760
    %v5203 = vsub.f32 %v5201, %v5202
    %v5204 = vand.u32 %v5203, 4294901760
    %5205 = vmatprep.subr.mxu0 %v5204
    %v5206 = vand.u32 %v3792, 4294901760
    %v5207 = vsub.f32 %v3792, %v5206
    %v5208 = vand.u32 %v5207, 4294901760
    %v5209 = vsub.f32 %v5207, %v5208
    %v5210 = vand.u32 %v5209, 4294901760
    %5211 = vmatpush1.msra.mxu0 %v5210
    %v5212 = vand.u32 %v3791, 4294901760
    %v5213 = vsub.f32 %v3791, %v5212
    %v5214 = vand.u32 %v5213, 4294901760
    %v5215 = vsub.f32 %v5213, %v5214
    %v5216 = vand.u32 %v5215, 4294901760
    %5217 = vmatprep.subr.mxu0 %v5216
    %v5218 = vand.u32 %v3790, 4294901760
    %v5219 = vsub.f32 %v3790, %v5218
    %v5220 = vand.u32 %v5219, 4294901760
    %v5221 = vsub.f32 %v5219, %v5220
    %v5222 = vand.u32 %v5221, 4294901760
    %5223 = vmatpush1.msra.mxu0 %v5222
    %v5224 = vand.u32 %v3789, 4294901760
    %v5225 = vsub.f32 %v3789, %v5224
    %v5226 = vand.u32 %v5225, 4294901760
    %v5227 = vsub.f32 %v5225, %v5226
    %v5228 = vand.u32 %v5227, 4294901760
    %5229 = vmatprep.subr.mxu0 %v5228
    %v5230 = vand.u32 %v3788, 4294901760
    %v5231 = vsub.f32 %v3788, %v5230
    %v5232 = vand.u32 %v5231, 4294901760
    %v5233 = vsub.f32 %v5231, %v5232
    %v5234 = vand.u32 %v5233, 4294901760
    %5235 = vmatpush1.msra.mxu0 %v5234
    %5236 = vmatprep.subr.mxu0 0.0
    %5237 = vmatpush2.msra.mxu0 0.0
    %5238 = vmatprep.subr.mxu0 0.0
    %5239 = vmatpush2.msra.mxu0 0.0
    %5240 = vmatprep.subr.mxu0 0.0
    %5241 = vmatpush2.msra.mxu0 0.0
    %5242 = vmatprep.subr.mxu0 0.0
    %5243 = vmatpush2.msra.mxu0 0.0
    %5244 = vmatprep.subr.mxu0 0.0
    %5245 = vmatpush2.msra.mxu0 0.0
    %5246 = vmatprep.subr.mxu0 0.0
    %5247 = vmatpush2.msra.mxu0 0.0
    %5248 = vmatprep.subr.mxu0 0.0
    %5249 = vmatpush2.msra.mxu0 0.0
    %5250 = vmatprep.subr.mxu0 0.0
    %5251 = vmatpush2.msra.mxu0 0.0
    %5252 = vmatprep.subr.mxu0 0.0
    %5253 = vmatpush2.msra.mxu0 0.0
    %5254 = vmatprep.subr.mxu0 0.0
    %5255 = vmatpush2.msra.mxu0 0.0
    %5256 = vmatprep.subr.mxu0 0.0
    %5257 = vmatpush2.msra.mxu0 0.0
    %5258 = vmatprep.subr.mxu0 0.0
    %5259 = vmatpush2.msra.mxu0 0.0
    %5260 = vmatprep.subr.mxu0 0.0
    %5261 = vmatpush2.msra.mxu0 0.0
    %5262 = vmatprep.subr.mxu0 0.0
    %5263 = vmatpush2.msra.mxu0 0.0
    %5264 = vmatprep.subr.mxu0 0.0
    %5265 = vmatpush2.msra.mxu0 0.0
    %5266 = vmatprep.subr.mxu0 0.0
    %5267 = vmatpush2.msra.mxu0 0.0
    %5268 = vmatprep.mubr.f32.mxu0 0.0
    %v5269 = vand.u32 %v1078, 4294901760
    %5270 = vmatmul.mubr.f32.gmra.mxu0 %v5269
    %v5271 = vpop.f32.mrf.mxu0
    %v5272 = vadd.f32 %v5160, %v5271
    %v5273 = vpop.f32.mrf.mxu0
    %v5274 = vadd.f32 %v5162, %v5273
    %5275 = vdwg.mxu0
    %5276 = vmatprep.subr.mxu0 0.0
    %5277 = vmatpush1.msra.mxu0 0.0
    %5278 = vmatprep.subr.mxu0 0.0
    %5279 = vmatpush1.msra.mxu0 0.0
    %5280 = vmatprep.subr.mxu0 0.0
    %5281 = vmatpush1.msra.mxu0 0.0
    %5282 = vmatprep.subr.mxu0 0.0
    %5283 = vmatpush1.msra.mxu0 0.0
    %5284 = vmatprep.subr.mxu0 0.0
    %5285 = vmatpush1.msra.mxu0 0.0
    %5286 = vmatprep.subr.mxu0 0.0
    %5287 = vmatpush1.msra.mxu0 0.0
    %5288 = vmatprep.subr.mxu0 0.0
    %5289 = vmatpush1.msra.mxu0 0.0
    %5290 = vmatprep.subr.mxu0 0.0
    %5291 = vmatpush1.msra.mxu0 0.0
    %5292 = vmatprep.subr.mxu0 0.0
    %5293 = vmatpush1.msra.mxu0 0.0
    %5294 = vmatprep.subr.mxu0 0.0
    %5295 = vmatpush1.msra.mxu0 0.0
    %5296 = vmatprep.subr.mxu0 0.0
    %5297 = vmatpush1.msra.mxu0 0.0
    %5298 = vmatprep.subr.mxu0 0.0
    %5299 = vmatpush1.msra.mxu0 0.0
    %v5300 = vand.u32 %v3795, 4294901760
    %v5301 = vsub.f32 %v3795, %v5300
    %5302 = vmatprep.subr.mxu0 %v5301
    %v5303 = vand.u32 %v3794, 4294901760
    %v5304 = vsub.f32 %v3794, %v5303
    %5305 = vmatpush1.msra.mxu0 %v5304
    %v5306 = vand.u32 %v3793, 4294901760
    %v5307 = vsub.f32 %v3793, %v5306
    %5308 = vmatprep.subr.mxu0 %v5307
    %v5309 = vand.u32 %v3792, 4294901760
    %v5310 = vsub.f32 %v3792, %v5309
    %5311 = vmatpush1.msra.mxu0 %v5310
    %v5312 = vand.u32 %v3791, 4294901760
    %v5313 = vsub.f32 %v3791, %v5312
    %5314 = vmatprep.subr.mxu0 %v5313
    %v5315 = vand.u32 %v3790, 4294901760
    %v5316 = vsub.f32 %v3790, %v5315
    %5317 = vmatpush1.msra.mxu0 %v5316
    %v5318 = vand.u32 %v3789, 4294901760
    %v5319 = vsub.f32 %v3789, %v5318
    %5320 = vmatprep.subr.mxu0 %v5319
    %v5321 = vand.u32 %v3788, 4294901760
    %v5322 = vsub.f32 %v3788, %v5321
    %5323 = vmatpush1.msra.mxu0 %v5322
    %5324 = vmatprep.subr.mxu0 0.0
    %5325 = vmatpush2.msra.mxu0 0.0
    %5326 = vmatprep.subr.mxu0 0.0
    %5327 = vmatpush2.msra.mxu0 0.0
    %5328 = vmatprep.subr.mxu0 0.0
    %5329 = vmatpush2.msra.mxu0 0.0
    %5330 = vmatprep.subr.mxu0 0.0
    %5331 = vmatpush2.msra.mxu0 0.0
    %5332 = vmatprep.subr.mxu0 0.0
    %5333 = vmatpush2.msra.mxu0 0.0
    %5334 = vmatprep.subr.mxu0 0.0
    %5335 = vmatpush2.msra.mxu0 0.0
    %5336 = vmatprep.subr.mxu0 0.0
    %5337 = vmatpush2.msra.mxu0 0.0
    %5338 = vmatprep.subr.mxu0 0.0
    %5339 = vmatpush2.msra.mxu0 0.0
    %5340 = vmatprep.subr.mxu0 0.0
    %5341 = vmatpush2.msra.mxu0 0.0
    %5342 = vmatprep.subr.mxu0 0.0
    %5343 = vmatpush2.msra.mxu0 0.0
    %5344 = vmatprep.subr.mxu0 0.0
    %5345 = vmatpush2.msra.mxu0 0.0
    %5346 = vmatprep.subr.mxu0 0.0
    %5347 = vmatpush2.msra.mxu0 0.0
    %5348 = vmatprep.subr.mxu0 0.0
    %5349 = vmatpush2.msra.mxu0 0.0
    %5350 = vmatprep.subr.mxu0 0.0
    %5351 = vmatpush2.msra.mxu0 0.0
    %5352 = vmatprep.subr.mxu0 0.0
    %5353 = vmatpush2.msra.mxu0 0.0
    %5354 = vmatprep.subr.mxu0 0.0
    %5355 = vmatpush2.msra.mxu0 0.0
    %5356 = vmatprep.mubr.f32.mxu0 0.0
    %v5357 = vand.u32 %v1078, 4294901760
    %v5358 = vsub.f32 %v1078, %v5357
    %5359 = vmatmul.mubr.f32.gmra.mxu0 %v5358
    %v5360 = vpop.f32.mrf.mxu0
    %v5361 = vadd.f32 %v5272, %v5360
    %v5362 = vpop.f32.mrf.mxu0
    %v5363 = vadd.f32 %v5274, %v5362
    %5364 = vdwg.mxu0
    %5365 = vmatprep.subr.mxu0 0.0
    %5366 = vmatpush1.msra.mxu0 0.0
    %5367 = vmatprep.subr.mxu0 0.0
    %5368 = vmatpush1.msra.mxu0 0.0
    %5369 = vmatprep.subr.mxu0 0.0
    %5370 = vmatpush1.msra.mxu0 0.0
    %5371 = vmatprep.subr.mxu0 0.0
    %5372 = vmatpush1.msra.mxu0 0.0
    %5373 = vmatprep.subr.mxu0 0.0
    %5374 = vmatpush1.msra.mxu0 0.0
    %5375 = vmatprep.subr.mxu0 0.0
    %5376 = vmatpush1.msra.mxu0 0.0
    %5377 = vmatprep.subr.mxu0 0.0
    %5378 = vmatpush1.msra.mxu0 0.0
    %5379 = vmatprep.subr.mxu0 0.0
    %5380 = vmatpush1.msra.mxu0 0.0
    %5381 = vmatprep.subr.mxu0 0.0
    %5382 = vmatpush1.msra.mxu0 0.0
    %5383 = vmatprep.subr.mxu0 0.0
    %5384 = vmatpush1.msra.mxu0 0.0
    %5385 = vmatprep.subr.mxu0 0.0
    %5386 = vmatpush1.msra.mxu0 0.0
    %5387 = vmatprep.subr.mxu0 0.0
    %5388 = vmatpush1.msra.mxu0 0.0
    %v5389 = vand.u32 %v3795, 4294901760
    %5390 = vmatprep.subr.mxu0 %v5389
    %v5391 = vand.u32 %v3794, 4294901760
    %5392 = vmatpush1.msra.mxu0 %v5391
    %v5393 = vand.u32 %v3793, 4294901760
    %5394 = vmatprep.subr.mxu0 %v5393
    %v5395 = vand.u32 %v3792, 4294901760
    %5396 = vmatpush1.msra.mxu0 %v5395
    %v5397 = vand.u32 %v3791, 4294901760
    %5398 = vmatprep.subr.mxu0 %v5397
    %v5399 = vand.u32 %v3790, 4294901760
    %5400 = vmatpush1.msra.mxu0 %v5399
    %v5401 = vand.u32 %v3789, 4294901760
    %5402 = vmatprep.subr.mxu0 %v5401
    %v5403 = vand.u32 %v3788, 4294901760
    %5404 = vmatpush1.msra.mxu0 %v5403
    %5405 = vmatprep.subr.mxu0 0.0
    %5406 = vmatpush2.msra.mxu0 0.0
    %5407 = vmatprep.subr.mxu0 0.0
    %5408 = vmatpush2.msra.mxu0 0.0
    %5409 = vmatprep.subr.mxu0 0.0
    %5410 = vmatpush2.msra.mxu0 0.0
    %5411 = vmatprep.subr.mxu0 0.0
    %5412 = vmatpush2.msra.mxu0 0.0
    %5413 = vmatprep.subr.mxu0 0.0
    %5414 = vmatpush2.msra.mxu0 0.0
    %5415 = vmatprep.subr.mxu0 0.0
    %5416 = vmatpush2.msra.mxu0 0.0
    %5417 = vmatprep.subr.mxu0 0.0
    %5418 = vmatpush2.msra.mxu0 0.0
    %5419 = vmatprep.subr.mxu0 0.0
    %5420 = vmatpush2.msra.mxu0 0.0
    %5421 = vmatprep.subr.mxu0 0.0
    %5422 = vmatpush2.msra.mxu0 0.0
    %5423 = vmatprep.subr.mxu0 0.0
    %5424 = vmatpush2.msra.mxu0 0.0
    %5425 = vmatprep.subr.mxu0 0.0
    %5426 = vmatpush2.msra.mxu0 0.0
    %5427 = vmatprep.subr.mxu0 0.0
    %5428 = vmatpush2.msra.mxu0 0.0
    %5429 = vmatprep.subr.mxu0 0.0
    %5430 = vmatpush2.msra.mxu0 0.0
    %5431 = vmatprep.subr.mxu0 0.0
    %5432 = vmatpush2.msra.mxu0 0.0
    %5433 = vmatprep.subr.mxu0 0.0
    %5434 = vmatpush2.msra.mxu0 0.0
    %5435 = vmatprep.subr.mxu0 0.0
    %5436 = vmatpush2.msra.mxu0 0.0
    %5437 = vmatprep.mubr.f32.mxu0 0.0
    %v5438 = vand.u32 %v1078, 4294901760
    %v5439 = vsub.f32 %v1078, %v5438
    %v5440 = vand.u32 %v5439, 4294901760
    %5441 = vmatmul.mubr.f32.gmra.mxu0 %v5440
    %v5442 = vpop.f32.mrf.mxu0
    %v5443 = vadd.f32 %v5361, %v5442
    %v5444 = vpop.f32.mrf.mxu0
    %v5445 = vadd.f32 %v5363, %v5444
    %5446 = vdwg.mxu0
    %5447 = vmatprep.subr.mxu0 0.0
    %5448 = vmatpush1.msra.mxu0 0.0
    %5449 = vmatprep.subr.mxu0 0.0
    %5450 = vmatpush1.msra.mxu0 0.0
    %5451 = vmatprep.subr.mxu0 0.0
    %5452 = vmatpush1.msra.mxu0 0.0
    %5453 = vmatprep.subr.mxu0 0.0
    %5454 = vmatpush1.msra.mxu0 0.0
    %5455 = vmatprep.subr.mxu0 0.0
    %5456 = vmatpush1.msra.mxu0 0.0
    %5457 = vmatprep.subr.mxu0 0.0
    %5458 = vmatpush1.msra.mxu0 0.0
    %5459 = vmatprep.subr.mxu0 0.0
    %5460 = vmatpush1.msra.mxu0 0.0
    %5461 = vmatprep.subr.mxu0 0.0
    %5462 = vmatpush1.msra.mxu0 0.0
    %5463 = vmatprep.subr.mxu0 0.0
    %5464 = vmatpush1.msra.mxu0 0.0
    %5465 = vmatprep.subr.mxu0 0.0
    %5466 = vmatpush1.msra.mxu0 0.0
    %5467 = vmatprep.subr.mxu0 0.0
    %5468 = vmatpush1.msra.mxu0 0.0
    %5469 = vmatprep.subr.mxu0 0.0
    %5470 = vmatpush1.msra.mxu0 0.0
    %v5471 = vand.u32 %v3795, 4294901760
    %v5472 = vsub.f32 %v3795, %v5471
    %v5473 = vand.u32 %v5472, 4294901760
    %5474 = vmatprep.subr.mxu0 %v5473
    %v5475 = vand.u32 %v3794, 4294901760
    %v5476 = vsub.f32 %v3794, %v5475
    %v5477 = vand.u32 %v5476, 4294901760
    %5478 = vmatpush1.msra.mxu0 %v5477
    %v5479 = vand.u32 %v3793, 4294901760
    %v5480 = vsub.f32 %v3793, %v5479
    %v5481 = vand.u32 %v5480, 4294901760
    %5482 = vmatprep.subr.mxu0 %v5481
    %v5483 = vand.u32 %v3792, 4294901760
    %v5484 = vsub.f32 %v3792, %v5483
    %v5485 = vand.u32 %v5484, 4294901760
    %5486 = vmatpush1.msra.mxu0 %v5485
    %v5487 = vand.u32 %v3791, 4294901760
    %v5488 = vsub.f32 %v3791, %v5487
    %v5489 = vand.u32 %v5488, 4294901760
    %5490 = vmatprep.subr.mxu0 %v5489
    %v5491 = vand.u32 %v3790, 4294901760
    %v5492 = vsub.f32 %v3790, %v5491
    %v5493 = vand.u32 %v5492, 4294901760
    %5494 = vmatpush1.msra.mxu0 %v5493
    %v5495 = vand.u32 %v3789, 4294901760
    %v5496 = vsub.f32 %v3789, %v5495
    %v5497 = vand.u32 %v5496, 4294901760
    %5498 = vmatprep.subr.mxu0 %v5497
    %v5499 = vand.u32 %v3788, 4294901760
    %v5500 = vsub.f32 %v3788, %v5499
    %v5501 = vand.u32 %v5500, 4294901760
    %5502 = vmatpush1.msra.mxu0 %v5501
    %5503 = vmatprep.subr.mxu0 0.0
    %5504 = vmatpush2.msra.mxu0 0.0
    %5505 = vmatprep.subr.mxu0 0.0
    %5506 = vmatpush2.msra.mxu0 0.0
    %5507 = vmatprep.subr.mxu0 0.0
    %5508 = vmatpush2.msra.mxu0 0.0
    %5509 = vmatprep.subr.mxu0 0.0
    %5510 = vmatpush2.msra.mxu0 0.0
    %5511 = vmatprep.subr.mxu0 0.0
    %5512 = vmatpush2.msra.mxu0 0.0
    %5513 = vmatprep.subr.mxu0 0.0
    %5514 = vmatpush2.msra.mxu0 0.0
    %5515 = vmatprep.subr.mxu0 0.0
    %5516 = vmatpush2.msra.mxu0 0.0
    %5517 = vmatprep.subr.mxu0 0.0
    %5518 = vmatpush2.msra.mxu0 0.0
    %5519 = vmatprep.subr.mxu0 0.0
    %5520 = vmatpush2.msra.mxu0 0.0
    %5521 = vmatprep.subr.mxu0 0.0
    %5522 = vmatpush2.msra.mxu0 0.0
    %5523 = vmatprep.subr.mxu0 0.0
    %5524 = vmatpush2.msra.mxu0 0.0
    %5525 = vmatprep.subr.mxu0 0.0
    %5526 = vmatpush2.msra.mxu0 0.0
    %5527 = vmatprep.subr.mxu0 0.0
    %5528 = vmatpush2.msra.mxu0 0.0
    %5529 = vmatprep.subr.mxu0 0.0
    %5530 = vmatpush2.msra.mxu0 0.0
    %5531 = vmatprep.subr.mxu0 0.0
    %5532 = vmatpush2.msra.mxu0 0.0
    %5533 = vmatprep.subr.mxu0 0.0
    %5534 = vmatpush2.msra.mxu0 0.0
    %5535 = vmatprep.mubr.f32.mxu0 0.0
    %v5536 = vand.u32 %v1078, 4294901760
    %5537 = vmatmul.mubr.f32.gmra.mxu0 %v5536
    %v5538 = vpop.f32.mrf.mxu0
    %v5539 = vadd.f32 %v5443, %v5538
    %v5540 = vpop.f32.mrf.mxu0
    %v5541 = vadd.f32 %v5445, %v5540
    %5542 = vdwg.mxu0
    %5543 = vmatprep.subr.mxu0 0.0
    %5544 = vmatpush1.msra.mxu0 0.0
    %5545 = vmatprep.subr.mxu0 0.0
    %5546 = vmatpush1.msra.mxu0 0.0
    %5547 = vmatprep.subr.mxu0 0.0
    %5548 = vmatpush1.msra.mxu0 0.0
    %5549 = vmatprep.subr.mxu0 0.0
    %5550 = vmatpush1.msra.mxu0 0.0
    %5551 = vmatprep.subr.mxu0 0.0
    %5552 = vmatpush1.msra.mxu0 0.0
    %5553 = vmatprep.subr.mxu0 0.0
    %5554 = vmatpush1.msra.mxu0 0.0
    %5555 = vmatprep.subr.mxu0 0.0
    %5556 = vmatpush1.msra.mxu0 0.0
    %5557 = vmatprep.subr.mxu0 0.0
    %5558 = vmatpush1.msra.mxu0 0.0
    %5559 = vmatprep.subr.mxu0 0.0
    %5560 = vmatpush1.msra.mxu0 0.0
    %5561 = vmatprep.subr.mxu0 0.0
    %5562 = vmatpush1.msra.mxu0 0.0
    %5563 = vmatprep.subr.mxu0 0.0
    %5564 = vmatpush1.msra.mxu0 0.0
    %5565 = vmatprep.subr.mxu0 0.0
    %5566 = vmatpush1.msra.mxu0 0.0
    %v5567 = vand.u32 %v3795, 4294901760
    %5568 = vmatprep.subr.mxu0 %v5567
    %v5569 = vand.u32 %v3794, 4294901760
    %5570 = vmatpush1.msra.mxu0 %v5569
    %v5571 = vand.u32 %v3793, 4294901760
    %5572 = vmatprep.subr.mxu0 %v5571
    %v5573 = vand.u32 %v3792, 4294901760
    %5574 = vmatpush1.msra.mxu0 %v5573
    %v5575 = vand.u32 %v3791, 4294901760
    %5576 = vmatprep.subr.mxu0 %v5575
    %v5577 = vand.u32 %v3790, 4294901760
    %5578 = vmatpush1.msra.mxu0 %v5577
    %v5579 = vand.u32 %v3789, 4294901760
    %5580 = vmatprep.subr.mxu0 %v5579
    %v5581 = vand.u32 %v3788, 4294901760
    %5582 = vmatpush1.msra.mxu0 %v5581
    %5583 = vmatprep.subr.mxu0 0.0
    %5584 = vmatpush2.msra.mxu0 0.0
    %5585 = vmatprep.subr.mxu0 0.0
    %5586 = vmatpush2.msra.mxu0 0.0
    %5587 = vmatprep.subr.mxu0 0.0
    %5588 = vmatpush2.msra.mxu0 0.0
    %5589 = vmatprep.subr.mxu0 0.0
    %5590 = vmatpush2.msra.mxu0 0.0
    %5591 = vmatprep.subr.mxu0 0.0
    %5592 = vmatpush2.msra.mxu0 0.0
    %5593 = vmatprep.subr.mxu0 0.0
    %5594 = vmatpush2.msra.mxu0 0.0
    %5595 = vmatprep.subr.mxu0 0.0
    %5596 = vmatpush2.msra.mxu0 0.0
    %5597 = vmatprep.subr.mxu0 0.0
    %5598 = vmatpush2.msra.mxu0 0.0
    %5599 = vmatprep.subr.mxu0 0.0
    %5600 = vmatpush2.msra.mxu0 0.0
    %5601 = vmatprep.subr.mxu0 0.0
    %5602 = vmatpush2.msra.mxu0 0.0
    %5603 = vmatprep.subr.mxu0 0.0
    %5604 = vmatpush2.msra.mxu0 0.0
    %5605 = vmatprep.subr.mxu0 0.0
    %5606 = vmatpush2.msra.mxu0 0.0
    %5607 = vmatprep.subr.mxu0 0.0
    %5608 = vmatpush2.msra.mxu0 0.0
    %5609 = vmatprep.subr.mxu0 0.0
    %5610 = vmatpush2.msra.mxu0 0.0
    %5611 = vmatprep.subr.mxu0 0.0
    %5612 = vmatpush2.msra.mxu0 0.0
    %5613 = vmatprep.subr.mxu0 0.0
    %5614 = vmatpush2.msra.mxu0 0.0
    %5615 = vmatprep.mubr.f32.mxu0 0.0
    %v5616 = vand.u32 %v1078, 4294901760
    %5617 = vmatmul.mubr.f32.gmra.mxu0 %v5616
    %v5618 = vpop.f32.mrf.mxu0
    %v5619 = vadd.f32 %v5539, %v5618
    %v5620 = vpop.f32.mrf.mxu0
    %v5621 = vadd.f32 %v5541, %v5620
    %5622 = vdwg.mxu0
    %s5623 = scalar_lea.vmem [#allocation5], 32
    %5624 = vst [vmem:[%s5623] sm:$0xff] %v2912
    %5625 = vst [vmem:[%s5623 + $0x8] sm:$0xff] %v2913
    %5626 = vst [vmem:[%s5623 + $0x10] sm:$0xff] %v5619
    %5627 = vst [vmem:[%s5623 + $0x18] sm:$0xff] %v5621
    // Predicated region
    $region26: #{tpu_custom_call.1} parent=1 // pred_check
      _
    $region27: #{tpu_custom_call.1} parent=1 // pred_check_branch
      %5629 = sbr.rel (0) target = $region29
    $region28: #{tpu_custom_call.1} parent=1 // pred_region
      %s5631 = ssub.s32 1024, 1024
      %5632 = vsyncadd [#allocation4], %s5631
      %s5633 = sshll.u32 [#allocation5], 4
      %s5634 = int_to_ptr.vmem [resolvable:$true] %s5633
      %5639 = dma.vmem_to_hbm [thread:$0]  %s5634, 1024, %s5, [#allocation4], 256, 256, 16
    $region29: #{tpu_custom_call.1} parent=1 // pred_fallthru
      _
    // Predicated region
    $region30: #{tpu_custom_call.1} parent=1 // pred_check
      _
    $region31: #{tpu_custom_call.1} parent=1 // pred_check_branch
      %5641 = sbr.rel (0) target = $region33
    $region32: #{tpu_custom_call.1} parent=1 // pred_region
      %5642 = dma.done [#allocation4], 1024
    $region33: #{tpu_custom_call.1} parent=1 // pred_fallthru
      _
    %5643 = vsyncpa [#allocation3], 1
    %5644 = vsyncpa [#allocation4], 1

</llo_original>
